<compile_context>
chip_gen: v6e
topology: v6e:2x2x1
jax: 0.10.0
libtpu: 0.0.40
codegen_flags: <defaults>
</compile_context>

<pallas_src>
import math

import jax
import jax.numpy as jnp
from jax.experimental import pallas as pl
from jax.experimental.pallas import tpu as pltpu

# ---- model hyper-parameters (small, consistent with the module) -------------
BATCH = 2
SEQ = 8
DIM = 32                      # input_dim
NUM_HEADS = 4
HEAD_DIM = DIM // NUM_HEADS   # 8

# Lane-dense padding of the feature dim (last dim -> full 128-lane vreg width).
DP = 128                      # padded feature dim
HP = DP // HEAD_DIM           # 16 "heads" over the padded dim; heads
                              # NUM_HEADS..HP-1 are identically zero.


def _sinusoidal_pe(seq_len, dim, dtype=jnp.float32):
    """Standard sinusoidal positional encoding table, shape (seq_len, dim)."""
    pos = jnp.arange(seq_len, dtype=jnp.float32)[:, None]              # (S, 1)
    div = jnp.exp(jnp.arange(0, dim, 2, dtype=jnp.float32)
                  * (-math.log(10000.0) / dim))                        # (D/2,)
    pe = jnp.zeros((seq_len, dim), dtype=jnp.float32)
    pe = pe.at[:, 0::2].set(jnp.sin(pos * div))
    pe = pe.at[:, 1::2].set(jnp.cos(pos * div))
    return pe.astype(dtype)


# ----------------------------- Pallas kernel ---------------------------------
def attention_kernel(x_ref, pe_ref, wqkv_ref, bqkv_ref, wp_ref, bp_ref, o_ref):
    # Per grid step (= one batch element), everything lane-dense:
    #   x_ref / pe_ref / o_ref : (SEQ, DP)
    #   wqkv_ref               : (DP, 3*DP)     bqkv_ref : (1, 3*DP)
    #   wp_ref                 : (DP, DP)       bp_ref   : (1, DP)
    S = x_ref.shape[0]

    x = x_ref[...] + pe_ref[...]                     # positional encoding add
    # (dropout after pos-encoding: identity in eval mode)

    # Fused Q/K/V projection; 1/sqrt(head_dim) pre-folded into the Q columns.
    qkv = jnp.dot(x, wqkv_ref[...],
                  preferred_element_type=jnp.float32) + bqkv_ref[...]  # (S, 3*DP)
    q = qkv[:, 0 * DP:1 * DP]                        # 128-wide, lane-aligned slices
    k = qkv[:, 1 * DP:2 * DP]
    v = qkv[:, 2 * DP:3 * DP]

    # View the padded feature dim as HP heads of HEAD_DIM.  The real NUM_HEADS
    # heads occupy the first DIM columns; the padded heads have zero q/k/v, so
    # their context is exactly zero (attn @ 0 == 0) and the zero-padded output
    # projection rows kill anything else -> no garbage lanes leak through.
    def heads_first(t):                              # (S, DP) -> (HP, S, HEAD_DIM)
        return jnp.swapaxes(t.reshape(S, HP, HEAD_DIM), 0, 1)

    qh, kh, vh = heads_first(q), heads_first(k), heads_first(v)

    # Batched contractions; contract on the last dim of both operands
    # (no explicit k^T materialization).
    s = jnp.einsum('hqd,hkd->hqk', qh, kh,
                   preferred_element_type=jnp.float32)        # (HP, S, S)
    s = s - jnp.max(s, axis=-1, keepdims=True)
    e = jnp.exp(s)
    attn = e * pl.reciprocal(jnp.sum(e, axis=-1, keepdims=True), approx=False)
    # (attention dropout: identity in eval mode)
    ctx_h = jnp.einsum('hqk,hkd->hqd', attn, vh,
                       preferred_element_type=jnp.float32)    # (HP, S, HEAD_DIM)

    ctx = jnp.swapaxes(ctx_h, 0, 1).reshape(S, DP)            # padded cols are zero

    # Fused output projection.
    out = jnp.dot(ctx, wp_ref[...],
                  preferred_element_type=jnp.float32) + bp_ref[...]
    o_ref[...] = out.astype(o_ref.dtype)


# ----------------------------- wrapper ---------------------------------------
def _pad2d(a, rows, cols):
    return jnp.pad(a, ((0, rows - a.shape[0]), (0, cols - a.shape[1])))


def prepare_params(params, seq_len):
    """One-time (hoisted) constant construction: PE table + fused/padded weights."""
    scale = 1.0 / math.sqrt(HEAD_DIM)
    w_qkv = jnp.concatenate([_pad2d(params["wq"] * scale, DP, DP),
                             _pad2d(params["wk"], DP, DP),
                             _pad2d(params["wv"], DP, DP)], axis=1)      # (DP, 3DP)
    b_qkv = jnp.concatenate([_pad2d(params["bq"] * scale, 1, DP),
                             _pad2d(params["bk"], 1, DP),
                             _pad2d(params["bv"], 1, DP)], axis=1)       # (1, 3DP)
    return {
        "pe": _pad2d(_sinusoidal_pe(seq_len, DIM), seq_len, DP),         # (S, DP)
        "w_qkv": w_qkv, "b_qkv": b_qkv,
        "wp": _pad2d(params["wp"], DP, DP),                              # (DP, DP)
        "bp": _pad2d(params["bp"], 1, DP),                               # (1, DP)
    }


@jax.jit
def attention_module(x, prep):
    """x: (B, S, D) float32.  prep: output of prepare_params (padded constants)."""
    B, S, D = x.shape
    x2d = _pad2d(x.reshape(B * S, D), B * S, DP)           # lane-dense (B*S, DP)

    out2d = pl.pallas_call(
        attention_kernel,
        out_shape=jax.ShapeDtypeStruct((B * S, DP), x.dtype),
        grid_spec=pltpu.PrefetchScalarGridSpec(
            num_scalar_prefetch=0,
            grid=(B,),                                       # shards across TCs (v7x)
            in_specs=[
                pl.BlockSpec((S, DP), lambda b: (b, 0)),         # x rows of batch b
                pl.BlockSpec((S, DP), lambda b: (0, 0)),         # shared PE table
                pl.BlockSpec((DP, 3 * DP), lambda b: (0, 0)),    # fused QKV weight
                pl.BlockSpec((1, 3 * DP), lambda b: (0, 0)),     # fused QKV bias
                pl.BlockSpec((DP, DP), lambda b: (0, 0)),        # output projection
                pl.BlockSpec((1, DP), lambda b: (0, 0)),         # output bias
            ],
            out_specs=pl.BlockSpec((S, DP), lambda b: (b, 0)),
        ),
        compiler_params=pltpu.CompilerParams(
            dimension_semantics=("parallel",)),
    )(x2d, prep["pe"], prep["w_qkv"], prep["b_qkv"], prep["wp"], prep["bp"])

    return out2d[:, :D].reshape(B, S, D)


# ----------------------------- reference & init -------------------------------
def init_params(key, dim):
    """Deterministic init; Linear weights stored pre-transposed as (in, out)."""
    ks = jax.random.split(key, 8)
    scale = 1.0 / math.sqrt(dim)
    mk_w = lambda k: jax.random.uniform(k, (dim, dim), jnp.float32, -scale, scale)
    mk_b = lambda k: jax.random.uniform(k, (1, dim), jnp.float32, -scale, scale)
    return {
        "wq": mk_w(ks[0]), "bq": mk_b(ks[1]),
        "wk": mk_w(ks[2]), "bk": mk_b(ks[3]),
        "wv": mk_w(ks[4]), "bv": mk_b(ks[5]),
        "wp": mk_w(ks[6]), "bp": mk_b(ks[7]),
    }


def attention_reference(x, params):
    """Pure-JAX forward pass mirroring the PyTorch module in eval mode."""
    B, S, D = x.shape
    xp = x + _sinusoidal_pe(S, D)[None]
    lin = lambda w, b: xp @ w + b
    split = lambda t: jnp.swapaxes(t.reshape(B, S, NUM_HEADS, HEAD_DIM), 1, 2)
    qh = split(lin(params["wq"], params["bq"]))
    kh = split(lin(params["wk"], params["bk"]))
    vh = split(lin(params["wv"], params["bv"]))
    scores = jnp.einsum('bhqd,bhkd->bhqk', qh, kh) / math.sqrt(HEAD_DIM)
    attn = jax.nn.softmax(scores, axis=-1)
    ctx = jnp.swapaxes(jnp.einsum('bhqk,bhkd->bhqd', attn, vh), 1, 2).reshape(B, S, D)
    return ctx @ params["wp"] + params["bp"]


if __name__ == "__main__":
    key = jax.random.PRNGKey(0)
    kx, kp = jax.random.split(key)
    x = jax.random.normal(kx, (BATCH, SEQ, DIM), dtype=jnp.float32)
    params = init_params(kp, DIM)

    prep = prepare_params(params, SEQ)        # constants built once, outside the call
    out = attention_module(x, prep)
    out = jax.block_until_ready(out)

    ref = attention_reference(x, params)
    assert out.shape == (BATCH, SEQ, DIM)
    assert bool(jnp.all(jnp.isfinite(out)))
    # Loose tolerance only covers MXU matmul-pass rounding differences; a head /
    # padding-lane bug would produce O(1) errors and fail this check.
    assert bool(jnp.allclose(out, ref, atol=2e-2, rtol=2e-2))
    print("KERNEL_OK")
</pallas_src>

<mosaic_0001>
module attributes {stable_mosaic.version = 11 : i64} {
  func.func @attention_kernel(%arg0: i32, %arg1: memref<8x128xf32, #tpu.memory_space<vmem>>, %arg2: memref<8x128xf32, #tpu.memory_space<vmem>>, %arg3: memref<128x384xf32, #tpu.memory_space<vmem>>, %arg4: memref<1x384xf32, #tpu.memory_space<vmem>>, %arg5: memref<128x128xf32, #tpu.memory_space<vmem>>, %arg6: memref<1x128xf32, #tpu.memory_space<vmem>>, %arg7: memref<8x128xf32, #tpu.memory_space<vmem>>) attributes {dimension_semantics = [#tpu.dimension_semantics<parallel>], iteration_bounds = array<i64: 2>, scalar_prefetch = 0 : i64, scratch_operands = 0 : i64, tpu.core_type = #tpu.core_type<tc>, window_params = [{transform_indices = @transform_0, window_bounds = array<i64: 8, 128>}, {pipeline_mode = #tpu.pipeline_mode<synchronous>, transform_indices = @transform_1, window_bounds = array<i64: 8, 128>}, {pipeline_mode = #tpu.pipeline_mode<synchronous>, transform_indices = @transform_2, window_bounds = array<i64: 128, 384>}, {pipeline_mode = #tpu.pipeline_mode<synchronous>, transform_indices = @transform_3, window_bounds = array<i64: 1, 384>}, {pipeline_mode = #tpu.pipeline_mode<synchronous>, transform_indices = @transform_4, window_bounds = array<i64: 128, 128>}, {pipeline_mode = #tpu.pipeline_mode<synchronous>, transform_indices = @transform_5, window_bounds = array<i64: 1, 128>}, {transform_indices = @transform_6, window_bounds = array<i64: 8, 128>}]} {
    %c0 = arith.constant 0 : index
    %c0_0 = arith.constant 0 : index
    %0 = vector.load %arg1[%c0, %c0_0] : memref<8x128xf32, #tpu.memory_space<vmem>>, vector<8x128xf32>
    %c0_1 = arith.constant 0 : index
    %c0_2 = arith.constant 0 : index
    %1 = vector.load %arg2[%c0_1, %c0_2] : memref<8x128xf32, #tpu.memory_space<vmem>>, vector<8x128xf32>
    %2 = arith.addf %0, %1 : vector<8x128xf32>
    %c0_3 = arith.constant 0 : index
    %c0_4 = arith.constant 0 : index
    %3 = vector.load %arg3[%c0_3, %c0_4] : memref<128x384xf32, #tpu.memory_space<vmem>>, vector<128x384xf32>
    %cst = arith.constant dense<0.000000e+00> : vector<8x384xf32>
    %4 = tpu.matmul %2, %3, %cst {dimension_numbers = #tpu.dot_dimension_numbers<[1], [0], [0], [1], [0, 0, 1, 1], [], []>} : vector<8x128xf32>, vector<128x384xf32>, vector<8x384xf32> -> vector<8x384xf32>
    %c0_5 = arith.constant 0 : index
    %c0_6 = arith.constant 0 : index
    %5 = vector.load %arg4[%c0_5, %c0_6] : memref<1x384xf32, #tpu.memory_space<vmem>>, vector<1x384xf32>
    %6 = vector.broadcast %5 : vector<1x384xf32> to vector<8x384xf32>
    %7 = arith.addf %4, %6 : vector<8x384xf32>
    %8 = vector.extract_strided_slice %7 {offsets = [0, 0], sizes = [8, 128], strides = [1, 1]} : vector<8x384xf32> to vector<8x128xf32>
    %9 = vector.extract_strided_slice %7 {offsets = [0, 128], sizes = [8, 128], strides = [1, 1]} : vector<8x384xf32> to vector<8x128xf32>
    %10 = vector.extract_strided_slice %7 {offsets = [0, 256], sizes = [8, 128], strides = [1, 1]} : vector<8x384xf32> to vector<8x128xf32>
    %11 = vector.shape_cast %8 : vector<8x128xf32> to vector<8x16x8xf32>
    %12 = tpu.transpose %11, [1, 0, 2] : vector<8x16x8xf32> -> vector<16x8x8xf32>
    %13 = vector.shape_cast %9 : vector<8x128xf32> to vector<8x16x8xf32>
    %14 = tpu.transpose %13, [1, 0, 2] : vector<8x16x8xf32> -> vector<16x8x8xf32>
    %15 = vector.shape_cast %10 : vector<8x128xf32> to vector<8x16x8xf32>
    %16 = tpu.transpose %15, [1, 0, 2] : vector<8x16x8xf32> -> vector<16x8x8xf32>
    "tpu.trace_start"() <{level = 10 : i32, message = "hqd,hkd->hqk"}> : () -> ()
    %cst_7 = arith.constant dense<0.000000e+00> : vector<16x8x8xf32>
    %17 = tpu.matmul %12, %14, %cst_7 {dimension_numbers = #tpu.dot_dimension_numbers<[2], [2], [1], [1], [0, 0, 0, 1, 1, 1], [0], [0]>} : vector<16x8x8xf32>, vector<16x8x8xf32>, vector<16x8x8xf32> -> vector<16x8x8xf32>
    "tpu.trace_stop"() : () -> ()
    %cst_8 = arith.constant dense<0xFF800000> : vector<16x8xf32>
    %18 = vector.multi_reduction <maximumf>, %17, %cst_8 [2] : vector<16x8x8xf32> to vector<16x8xf32>
    %19 = vector.shape_cast %18 : vector<16x8xf32> to vector<16x8x1xf32>
    %20 = vector.broadcast %19 : vector<16x8x1xf32> to vector<16x8x8xf32>
    %21 = arith.subf %17, %20 : vector<16x8x8xf32>
    %22 = math.exp %21 : vector<16x8x8xf32>
    %cst_9 = arith.constant dense<0.000000e+00> : vector<16x8xf32>
    %23 = vector.multi_reduction <add>, %22, %cst_9 [2] : vector<16x8x8xf32> to vector<16x8xf32>
    %24 = vector.shape_cast %23 : vector<16x8xf32> to vector<16x8x1xf32>
    %25 = tpu.reciprocal %24 : vector<16x8x1xf32> -> vector<16x8x1xf32>
    %26 = vector.broadcast %25 : vector<16x8x1xf32> to vector<16x8x8xf32>
    %27 = arith.mulf %22, %26 : vector<16x8x8xf32>
    "tpu.trace_start"() <{level = 10 : i32, message = "hqk,hkd->hqd"}> : () -> ()
    %cst_10 = arith.constant dense<0.000000e+00> : vector<16x8x8xf32>
    %28 = tpu.matmul %27, %16, %cst_10 {dimension_numbers = #tpu.dot_dimension_numbers<[2], [1], [1], [2], [0, 0, 0, 1, 1, 2], [0], [0]>} : vector<16x8x8xf32>, vector<16x8x8xf32>, vector<16x8x8xf32> -> vector<16x8x8xf32>
    "tpu.trace_stop"() : () -> ()
    %29 = tpu.transpose %28, [1, 0, 2] : vector<16x8x8xf32> -> vector<8x16x8xf32>
    %30 = vector.shape_cast %29 : vector<8x16x8xf32> to vector<8x128xf32>
    %c0_11 = arith.constant 0 : index
    %c0_12 = arith.constant 0 : index
    %31 = vector.load %arg5[%c0_11, %c0_12] : memref<128x128xf32, #tpu.memory_space<vmem>>, vector<128x128xf32>
    %cst_13 = arith.constant dense<0.000000e+00> : vector<8x128xf32>
    %32 = tpu.matmul %30, %31, %cst_13 {dimension_numbers = #tpu.dot_dimension_numbers<[1], [0], [0], [1], [0, 0, 1, 1], [], []>} : vector<8x128xf32>, vector<128x128xf32>, vector<8x128xf32> -> vector<8x128xf32>
    %c0_14 = arith.constant 0 : index
    %c0_15 = arith.constant 0 : index
    %33 = vector.load %arg6[%c0_14, %c0_15] : memref<1x128xf32, #tpu.memory_space<vmem>>, vector<1x128xf32>
    %34 = vector.broadcast %33 : vector<1x128xf32> to vector<8x128xf32>
    %35 = arith.addf %32, %34 : vector<8x128xf32>
    %c0_16 = arith.constant 0 : index
    %c0_17 = arith.constant 0 : index
    %36 = vector.load %arg7[%c0_16, %c0_17] : memref<8x128xf32, #tpu.memory_space<vmem>>, vector<8x128xf32>
    tpu.vector_store %arg7[%c0_16, %c0_17], %35 {strides = array<i32>} : memref<8x128xf32, #tpu.memory_space<vmem>>, vector<8x128xf32>,
    return
  }
  func.func @transform_0(%arg0: i32) -> (i32, i32) {
    %c0_i32 = arith.constant 0 : i32
    %c0_i32_0 = arith.constant 0 : i32
    return %arg0, %c0_i32 : i32, i32
  }
  func.func @transform_1(%arg0: i32) -> (i32, i32) {
    %c0_i32 = arith.constant 0 : i32
    %c0_i32_0 = arith.constant 0 : i32
    %c0_i32_1 = arith.constant 0 : i32
    return %c0_i32, %c0_i32_0 : i32, i32
  }
  func.func @transform_2(%arg0: i32) -> (i32, i32) {
    %c0_i32 = arith.constant 0 : i32
    %c0_i32_0 = arith.constant 0 : i32
    %c0_i32_1 = arith.constant 0 : i32
    return %c0_i32, %c0_i32_0 : i32, i32
  }
  func.func @transform_3(%arg0: i32) -> (i32, i32) {
    %c0_i32 = arith.constant 0 : i32
    %c0_i32_0 = arith.constant 0 : i32
    %c0_i32_1 = arith.constant 0 : i32
    return %c0_i32, %c0_i32_0 : i32, i32
  }
  func.func @transform_4(%arg0: i32) -> (i32, i32) {
    %c0_i32 = arith.constant 0 : i32
    %c0_i32_0 = arith.constant 0 : i32
    %c0_i32_1 = arith.constant 0 : i32
    return %c0_i32, %c0_i32_0 : i32, i32
  }
  func.func @transform_5(%arg0: i32) -> (i32, i32) {
    %c0_i32 = arith.constant 0 : i32
    %c0_i32_0 = arith.constant 0 : i32
    %c0_i32_1 = arith.constant 0 : i32
    return %c0_i32, %c0_i32_0 : i32, i32
  }
  func.func @transform_6(%arg0: i32) -> (i32, i32) {
    %c0_i32 = arith.constant 0 : i32
    %c0_i32_0 = arith.constant 0 : i32
    return %arg0, %c0_i32 : i32, i32
  }
}

</mosaic_0001>

<llo_original>
// kernel: attention_module.1
$region0: #{attention_module.1}
  #allocation0 [shape = 'u32[]', space=smem, size = 0x4, offset = 0x4, fixed_abs, tag = 'smem constant byte address 0x4 - core index']
  #allocation1 [shape = 'u32[144,128]{1,0:T(1,128)}', space=vmem, size = 0x12000, scoped, tag = 'internal scratch']
  %s0 = inlined_call_operand.vmem [shape: f32[16,128], index: 0, kind: input, shape index: {}]
  %s1 = inlined_call_operand.vmem [shape: f32[8,128], index: 1, kind: input, shape index: {}]
  %s2 = inlined_call_operand.hbm [shape: f32[128,384], index: 2, kind: input, shape index: {}]
  %s3 = inlined_call_operand.vmem [shape: f32[1,384], index: 3, kind: input, shape index: {}]
  %s4 = inlined_call_operand.hbm [shape: f32[128,128], index: 4, kind: input, shape index: {}]
  %s5 = inlined_call_operand.vmem [shape: f32[1,128], index: 5, kind: input, shape index: {}]
  %s6 = inlined_call_operand.vmem [shape: f32[16,128], index: 6, kind: output, shape index: {}]
  %s7 = sld [smem:[#allocation0]]
  $region65: #{attention_module.1} parent=0
    _
  %s9 = ssub.s32 1, %s7
  %s10 = scalar_select 0, %s9, %s7
  $region1: #{attention_module.1} parent=0
    #allocation2 [shape = 'u8[196608]{0}', space=vmem, size = 0x30000, scoped, tag = 'input window, operand 2, single buffered']
    #allocation3 [shape = 's32[2]{0}', space=sflag, size = 0x8, scoped, tag = 'scoped memory for attention_module.1']
    #allocation4 [shape = 'u8[65536]{0}', space=vmem, size = 0x10000, scoped, tag = 'input window, operand 4, single buffered']
    #allocation5 [shape = 's32[1]{0}', space=sflag, size = 0x4, scoped, tag = 'scoped memory for attention_module.1']
    %11 = vsyncpa [#allocation3], 0
    %12 = vsyncpa [#allocation5], 0
    loop: start=0, step=1, limit=4
    $region2: #{attention_module.1} parent=1 // loop_pre_header
      _
    $region3: #{attention_module.1} parent=1 // loop_header
      %s14 = sphi 0, %s18
      %p15 = scmp.ge.s32.totalorder %s14, 4
      %s24 = sphi 0, %s26
      %s27 = sphi 0, %s24
      %s28 = sphi 0, %s27
      %s44 = sphi 0, %s28
      %s48 = sphi 0, %s48
      %s50 = sphi 0, %s48
      %s51 = sphi 0, %s50
      %s65 = sphi 0, %s51
      %s69 = sphi 0, %s69
      %s71 = sphi 0, %s69
      %s72 = sphi 0, %s71
      %s86 = sphi 0, %s72
      %s90 = sphi 0, %s90
      %s92 = sphi 0, %s90
      %s93 = sphi 0, %s92
      %s107 = sphi 0, %s93
      %s111 = sphi 0, %s111
      %s113 = sphi 0, %s111
      %s114 = sphi 0, %s113
      %s128 = sphi 0, %s114
      %s132 = sphi 0, %s132
      %s134 = sphi 0, %s132
      %s135 = sphi 0, %s134
      %s149 = sphi 0, %s135
      %s155 = sphi 0, %s157
      %s158 = sphi 0, %s155
      %s159 = sphi 0, %s158
      %s175 = sphi 0, %s159
    $region4: #{attention_module.1} parent=1 // loop_header_branch
      %17 = sbr.rel (%p15) target = $region8
    $region5: #{attention_module.1} parent=1 // loop_body
      %s19 = ssub.s32 %s14, 1
      %s20 = ssub.s32 %s14, 2
      %s21 = sadd.s32 %s14, 1
      %s22 = ssub.s32 %s14, %s21
      %p23 = scmp.eq.s32.totalorder %s22, 0
      %s25 = sadd.s32 %s24, 1
      %s26 = scalar_select %p23, %s24, %s25
      %p29 = pneg %p23
      %p30 = scmp.eq.s32.totalorder %s14, 1
      %p31 = por %p29, %p30
      %p32 = scmp.ne.s32.totalorder %s24, %s27
      %p33 = scmp.eq.s32.totalorder %s14, 0
      %p34 = por %p32, %p33
      %p35 = scmp.ne.s32.totalorder %s24, %s27
      %p36 = scmp.eq.s32.totalorder %s19, 1
      %p37 = por %p35, %p36
      %p38 = scmp.ne.s32.totalorder %s27, %s28
      %p39 = scmp.eq.s32.totalorder %s19, 0
      %p40 = por %p38, %p39
      %p41 = scmp.ne.s32.totalorder %s27, %s28
      %p42 = scmp.eq.s32.totalorder %s20, 1
      %p43 = por %p41, %p42
      %p45 = scmp.ne.s32.totalorder %s28, %s44
      %p46 = scmp.eq.s32.totalorder %s20, 0
      %p47 = por %p45, %p46
      %s49 = sadd.s32 %s48, 1
      %p52 = scmp.eq.s32.totalorder %s14, 1
      %p53 = scmp.ne.s32.totalorder %s48, %s50
      %p54 = scmp.eq.s32.totalorder %s14, 0
      %p55 = por %p53, %p54
      %p56 = scmp.ne.s32.totalorder %s48, %s50
      %p57 = scmp.eq.s32.totalorder %s19, 1
      %p58 = por %p56, %p57
      %p59 = scmp.ne.s32.totalorder %s50, %s51
      %p60 = scmp.eq.s32.totalorder %s19, 0
      %p61 = por %p59, %p60
      %p62 = scmp.ne.s32.totalorder %s50, %s51
      %p63 = scmp.eq.s32.totalorder %s20, 1
      %p64 = por %p62, %p63
      %p66 = scmp.ne.s32.totalorder %s51, %s65
      %p67 = scmp.eq.s32.totalorder %s20, 0
      %p68 = por %p66, %p67
      %s70 = sadd.s32 %s69, 1
      %p73 = scmp.eq.s32.totalorder %s14, 1
      %p74 = scmp.ne.s32.totalorder %s69, %s71
      %p75 = scmp.eq.s32.totalorder %s14, 0
      %p76 = por %p74, %p75
      %p77 = scmp.ne.s32.totalorder %s69, %s71
      %p78 = scmp.eq.s32.totalorder %s19, 1
      %p79 = por %p77, %p78
      %p80 = scmp.ne.s32.totalorder %s71, %s72
      %p81 = scmp.eq.s32.totalorder %s19, 0
      %p82 = por %p80, %p81
      %p83 = scmp.ne.s32.totalorder %s71, %s72
      %p84 = scmp.eq.s32.totalorder %s20, 1
      %p85 = por %p83, %p84
      %p87 = scmp.ne.s32.totalorder %s72, %s86
      %p88 = scmp.eq.s32.totalorder %s20, 0
      %p89 = por %p87, %p88
      %s91 = sadd.s32 %s90, 1
      %p94 = scmp.eq.s32.totalorder %s14, 1
      %p95 = scmp.ne.s32.totalorder %s90, %s92
      %p96 = scmp.eq.s32.totalorder %s14, 0
      %p97 = por %p95, %p96
      %p98 = scmp.ne.s32.totalorder %s90, %s92
      %p99 = scmp.eq.s32.totalorder %s19, 1
      %p100 = por %p98, %p99
      %p101 = scmp.ne.s32.totalorder %s92, %s93
      %p102 = scmp.eq.s32.totalorder %s19, 0
      %p103 = por %p101, %p102
      %p104 = scmp.ne.s32.totalorder %s92, %s93
      %p105 = scmp.eq.s32.totalorder %s20, 1
      %p106 = por %p104, %p105
      %p108 = scmp.ne.s32.totalorder %s93, %s107
      %p109 = scmp.eq.s32.totalorder %s20, 0
      %p110 = por %p108, %p109
      %s112 = sadd.s32 %s111, 1
      %p115 = scmp.eq.s32.totalorder %s14, 1
      %p116 = scmp.ne.s32.totalorder %s111, %s113
      %p117 = scmp.eq.s32.totalorder %s14, 0
      %p118 = por %p116, %p117
      %p119 = scmp.ne.s32.totalorder %s111, %s113
      %p120 = scmp.eq.s32.totalorder %s19, 1
      %p121 = por %p119, %p120
      %p122 = scmp.ne.s32.totalorder %s113, %s114
      %p123 = scmp.eq.s32.totalorder %s19, 0
      %p124 = por %p122, %p123
      %p125 = scmp.ne.s32.totalorder %s113, %s114
      %p126 = scmp.eq.s32.totalorder %s20, 1
      %p127 = por %p125, %p126
      %p129 = scmp.ne.s32.totalorder %s114, %s128
      %p130 = scmp.eq.s32.totalorder %s20, 0
      %p131 = por %p129, %p130
      %s133 = sadd.s32 %s132, 1
      %p136 = scmp.eq.s32.totalorder %s14, 1
      %p137 = scmp.ne.s32.totalorder %s132, %s134
      %p138 = scmp.eq.s32.totalorder %s14, 0
      %p139 = por %p137, %p138
      %p140 = scmp.ne.s32.totalorder %s132, %s134
      %p141 = scmp.eq.s32.totalorder %s19, 1
      %p142 = por %p140, %p141
      %p143 = scmp.ne.s32.totalorder %s134, %s135
      %p144 = scmp.eq.s32.totalorder %s19, 0
      %p145 = por %p143, %p144
      %p146 = scmp.ne.s32.totalorder %s134, %s135
      %p147 = scmp.eq.s32.totalorder %s20, 1
      %p148 = por %p146, %p147
      %p150 = scmp.ne.s32.totalorder %s135, %s149
      %p151 = scmp.eq.s32.totalorder %s20, 0
      %p152 = por %p150, %p151
      %s153 = ssub.s32 %s14, %s21
      %p154 = scmp.eq.s32.totalorder %s153, 0
      %s156 = sadd.s32 %s155, 1
      %s157 = scalar_select %p154, %s155, %s156
      %p160 = pneg %p154
      %p161 = scmp.eq.s32.totalorder %s14, 1
      %p162 = por %p160, %p161
      %p163 = scmp.ne.s32.totalorder %s155, %s158
      %p164 = scmp.eq.s32.totalorder %s14, 0
      %p165 = por %p163, %p164
      %p166 = scmp.ne.s32.totalorder %s155, %s158
      %p167 = scmp.eq.s32.totalorder %s19, 1
      %p168 = por %p166, %p167
      %p169 = scmp.ne.s32.totalorder %s158, %s159
      %p170 = scmp.eq.s32.totalorder %s19, 0
      %p171 = por %p169, %p170
      %p172 = scmp.ne.s32.totalorder %s158, %s159
      %p173 = scmp.eq.s32.totalorder %s20, 1
      %p174 = por %p172, %p173
      %p176 = scmp.ne.s32.totalorder %s159, %s175
      %p177 = scmp.eq.s32.totalorder %s20, 0
      %p178 = por %p176, %p177
      %p179 = scmp.le.s32.totalorder 1, %s14
      %p180 = scmp.lt.s32.totalorder %s14, 3
      %p181 = pnand %p179, %p180
      %p182 = pneg %p181
      // Predicated region
      $region9: #{attention_module.1} parent=5 // pred_check
        _
      $region10: #{attention_module.1} parent=5 // pred_check_branch
        %184 = sbr.rel (%p181) target = $region12
      $region11: #{attention_module.1} parent=5 // pred_region
        %s185 = ssub.s32 %s14, 1
        // Predicated region
        $region13: #{attention_module.1} parent=11 // pred_check
          %p186 = pneg %p61
        $region14: #{attention_module.1} parent=11 // pred_check_branch
          %188 = sbr.rel (%p186) target = $region16
        $region15: #{attention_module.1} parent=11 // pred_region
          _
        $region16: #{attention_module.1} parent=11 // pred_fallthru
          _
        // Predicated region
        $region17: #{attention_module.1} parent=11 // pred_check
          %p189 = pneg %p82
        $region18: #{attention_module.1} parent=11 // pred_check_branch
          %191 = sbr.rel (%p189) target = $region20
        $region19: #{attention_module.1} parent=11 // pred_region
          %s193 = ssub.s32 6144, 6144
          %194 = vsyncadd [#allocation3], %s193
          %s195 = sshll.u32 [#allocation2], 4
          %s196 = int_to_ptr.vmem [resolvable:$true] %s195
          %201 = dma.hbm_to_vmem [thread:$0]  %s2, 6144, %s196, [#allocation3], 384, 384, 24
        $region20: #{attention_module.1} parent=11 // pred_fallthru
          _
        // Predicated region
        $region21: #{attention_module.1} parent=11 // pred_check
          %p202 = pneg %p103
        $region22: #{attention_module.1} parent=11 // pred_check_branch
          %204 = sbr.rel (%p202) target = $region24
        $region23: #{attention_module.1} parent=11 // pred_region
          _
        $region24: #{attention_module.1} parent=11 // pred_fallthru
          _
        // Predicated region
        $region25: #{attention_module.1} parent=11 // pred_check
          %p205 = pneg %p124
        $region26: #{attention_module.1} parent=11 // pred_check_branch
          %207 = sbr.rel (%p205) target = $region28
        $region27: #{attention_module.1} parent=11 // pred_region
          %s209 = ssub.s32 2048, 2048
          %210 = vsyncadd [#allocation5], %s209
          %s211 = sshll.u32 [#allocation4], 4
          %s212 = int_to_ptr.vmem [resolvable:$true] %s211
          %217 = dma.hbm_to_vmem [thread:$0]  %s4, 2048, %s212, [#allocation5], 128, 128, 8
        $region28: #{attention_module.1} parent=11 // pred_fallthru
          _
        // Predicated region
        $region29: #{attention_module.1} parent=11 // pred_check
          %p218 = pneg %p145
        $region30: #{attention_module.1} parent=11 // pred_check_branch
          %220 = sbr.rel (%p218) target = $region32
        $region31: #{attention_module.1} parent=11 // pred_region
          _
        $region32: #{attention_module.1} parent=11 // pred_fallthru
          _
      $region12: #{attention_module.1} parent=5 // pred_fallthru
        _
      %p221 = scmp.lt.s32.totalorder %s14, 2
      // Predicated region
      $region33: #{attention_module.1} parent=5 // pred_check
        %p222 = pneg %p221
      $region34: #{attention_module.1} parent=5 // pred_check_branch
        %224 = sbr.rel (%p222) target = $region36
      $region35: #{attention_module.1} parent=5 // pred_region
        // Predicated region
        $region37: #{attention_module.1} parent=35 // pred_check
          %p225 = pneg %p34
        $region38: #{attention_module.1} parent=35 // pred_check_branch
          %227 = sbr.rel (%p225) target = $region40
        $region39: #{attention_module.1} parent=35 // pred_region
          %p228 = scmp.lt.s32.totalorder %s14, 1
          %s229 = scalar_select %p228, %s14, 1
          %s230 = smul.addr %s229, 8
          %s231 = scalar_lea.vmem %s0, %s230
        $region40: #{attention_module.1} parent=35 // pred_fallthru
          _
      $region36: #{attention_module.1} parent=5 // pred_fallthru
        _
      %p232 = scmp.le.s32.totalorder 1, %s14
      %p233 = scmp.lt.s32.totalorder %s14, 3
      %p234 = pnand %p232, %p233
      %p235 = pneg %p234
      // Predicated region
      $region41: #{attention_module.1} parent=5 // pred_check
        _
      $region42: #{attention_module.1} parent=5 // pred_check_branch
        %237 = sbr.rel (%p234) target = $region44
      $region43: #{attention_module.1} parent=5 // pred_region
        %s238 = ssub.s32 %s14, 1
        // Predicated region
        $region45: #{attention_module.1} parent=43 // pred_check
          %p239 = pneg %p82
        $region46: #{attention_module.1} parent=43 // pred_check_branch
          %241 = sbr.rel (%p239) target = $region48
        $region47: #{attention_module.1} parent=43 // pred_region
          %242 = dma.done [#allocation3], 6144
        $region48: #{attention_module.1} parent=43 // pred_fallthru
          _
        // Predicated region
        $region49: #{attention_module.1} parent=43 // pred_check
          %p243 = pneg %p124
        $region50: #{attention_module.1} parent=43 // pred_check_branch
          %245 = sbr.rel (%p243) target = $region52
        $region51: #{attention_module.1} parent=43 // pred_region
          %246 = dma.done [#allocation5], 2048
        $region52: #{attention_module.1} parent=43 // pred_fallthru
          _
        %p247 = scmp.lt.s32.totalorder %s19, 1
        %s248 = scalar_select %p247, %s19, 1
        %s249 = smul.addr %s248, 8
        %s250 = scalar_lea.vmem %s0, %s249
        %p251 = pneg %p40
        %p252 = pneg %p37
        %p253 = pneg %p61
        %p254 = pneg %p58
        %p255 = pneg %p82
        %p256 = pneg %p79
        %p257 = pneg %p103
        %p258 = pneg %p100
        %p259 = pneg %p124
        %p260 = pneg %p121
        %p261 = pneg %p145
        %p262 = pneg %p142
        %p263 = pneg %p171
        %p264 = pneg %p168
        %p265 = scmp.lt.s32.totalorder %s19, 1
        %s266 = scalar_select %p265, %s19, 1
        %s267 = smul.addr %s266, 8
        %s268 = scalar_lea.vmem %s6, %s267
        %p269 = scmp.lt.s32.totalorder %s19, 1
        %s270 = scalar_select %p269, %s19, 1
        %s271 = smul.addr %s270, 8
        %s272 = scalar_lea.vmem %s0, %s271
        %p273 = scmp.lt.s32.totalorder %s19, 1
        %s274 = scalar_select %p273, %s19, 1
        %s275 = smul.addr %s274, 8
        %s276 = scalar_lea.vmem %s6, %s275
        %v277 = vld [vmem:[%s272] sm:$0xff]
        %v278 = vld [vmem:[%s1] sm:$0xff]
        %v279 = vadd.f32 %v277, %v278
        %v280 = vld [vmem:[#allocation2] sm:$0xff]
        %v281 = vld [vmem:[#allocation2 + $0x8] sm:$0xff]
        %v282 = vld [vmem:[#allocation2 + $0x10] sm:$0xff]
        %v283 = vld [vmem:[#allocation2 + $0x18] sm:$0xff]
        %v284 = vld [vmem:[#allocation2 + $0x20] sm:$0xff]
        %v285 = vld [vmem:[#allocation2 + $0x28] sm:$0xff]
        %v286 = vld [vmem:[#allocation2 + $0x30] sm:$0xff]
        %v287 = vld [vmem:[#allocation2 + $0x38] sm:$0xff]
        %v288 = vld [vmem:[#allocation2 + $0x40] sm:$0xff]
        %v289 = vld [vmem:[#allocation2 + $0x48] sm:$0xff]
        %v290 = vld [vmem:[#allocation2 + $0x50] sm:$0xff]
        %v291 = vld [vmem:[#allocation2 + $0x58] sm:$0xff]
        %v292 = vld [vmem:[#allocation2 + $0x60] sm:$0xff]
        %v293 = vld [vmem:[#allocation2 + $0x68] sm:$0xff]
        %v294 = vld [vmem:[#allocation2 + $0x70] sm:$0xff]
        %v295 = vld [vmem:[#allocation2 + $0x78] sm:$0xff]
        %v296 = vld [vmem:[#allocation2 + $0x80] sm:$0xff]
        %v297 = vld [vmem:[#allocation2 + $0x88] sm:$0xff]
        %v298 = vld [vmem:[#allocation2 + $0x90] sm:$0xff]
        %v299 = vld [vmem:[#allocation2 + $0x98] sm:$0xff]
        %v300 = vld [vmem:[#allocation2 + $0xa0] sm:$0xff]
        %v301 = vld [vmem:[#allocation2 + $0xa8] sm:$0xff]
        %v302 = vld [vmem:[#allocation2 + $0xb0] sm:$0xff]
        %v303 = vld [vmem:[#allocation2 + $0xb8] sm:$0xff]
        %v304 = vld [vmem:[#allocation2 + $0xc0] sm:$0xff]
        %v305 = vld [vmem:[#allocation2 + $0xc8] sm:$0xff]
        %v306 = vld [vmem:[#allocation2 + $0xd0] sm:$0xff]
        %v307 = vld [vmem:[#allocation2 + $0xd8] sm:$0xff]
        %v308 = vld [vmem:[#allocation2 + $0xe0] sm:$0xff]
        %v309 = vld [vmem:[#allocation2 + $0xe8] sm:$0xff]
        %v310 = vld [vmem:[#allocation2 + $0xf0] sm:$0xff]
        %v311 = vld [vmem:[#allocation2 + $0xf8] sm:$0xff]
        %v312 = vld [vmem:[#allocation2 + $0x100] sm:$0xff]
        %v313 = vld [vmem:[#allocation2 + $0x108] sm:$0xff]
        %v314 = vld [vmem:[#allocation2 + $0x110] sm:$0xff]
        %v315 = vld [vmem:[#allocation2 + $0x118] sm:$0xff]
        %v316 = vld [vmem:[#allocation2 + $0x120] sm:$0xff]
        %v317 = vld [vmem:[#allocation2 + $0x128] sm:$0xff]
        %v318 = vld [vmem:[#allocation2 + $0x130] sm:$0xff]
        %v319 = vld [vmem:[#allocation2 + $0x138] sm:$0xff]
        %v320 = vld [vmem:[#allocation2 + $0x140] sm:$0xff]
        %v321 = vld [vmem:[#allocation2 + $0x148] sm:$0xff]
        %v322 = vld [vmem:[#allocation2 + $0x150] sm:$0xff]
        %v323 = vld [vmem:[#allocation2 + $0x158] sm:$0xff]
        %v324 = vld [vmem:[#allocation2 + $0x160] sm:$0xff]
        %v325 = vld [vmem:[#allocation2 + $0x168] sm:$0xff]
        %v326 = vld [vmem:[#allocation2 + $0x170] sm:$0xff]
        %v327 = vld [vmem:[#allocation2 + $0x178] sm:$0xff]
        %v328 = vld [vmem:[%s3] sm:$0x7]
        %v330 = vlaneseq
        %v331 = vshrl.u32 %v330, 7
        %v332 = vsub.s32 0, %v331
        %v333 = vrot.slane %v328, %v332
        %v334 = vlaneseq
        %v335 = vshrl.u32 %v334, 7
        %v336 = vsub.s32 1, %v335
        %v337 = vrot.slane %v328, %v336
        %v338 = vlaneseq
        %v339 = vshrl.u32 %v338, 7
        %v340 = vsub.s32 2, %v339
        %v341 = vrot.slane %v328, %v340
        %345 = vmatprep.subr.mxu0 %v326
        %346 = vmatpush1.msra.mxu0 %v325
        %347 = vmatprep.subr.mxu0 %v323
        %348 = vmatpush1.msra.mxu0 %v322
        %349 = vmatprep.subr.mxu0 %v320
        %350 = vmatpush1.msra.mxu0 %v319
        %351 = vmatprep.subr.mxu0 %v317
        %352 = vmatpush1.msra.mxu0 %v316
        %353 = vmatprep.subr.mxu0 %v314
        %354 = vmatpush1.msra.mxu0 %v313
        %355 = vmatprep.subr.mxu0 %v311
        %356 = vmatpush1.msra.mxu0 %v310
        %357 = vmatprep.subr.mxu0 %v308
        %358 = vmatpush1.msra.mxu0 %v307
        %359 = vmatprep.subr.mxu0 %v305
        %360 = vmatpush1.msra.mxu0 %v304
        %361 = vmatprep.subr.mxu0 %v302
        %362 = vmatpush1.msra.mxu0 %v301
        %363 = vmatprep.subr.mxu0 %v299
        %364 = vmatpush1.msra.mxu0 %v298
        %365 = vmatprep.subr.mxu0 %v296
        %366 = vmatpush1.msra.mxu0 %v295
        %367 = vmatprep.subr.mxu0 %v293
        %368 = vmatpush1.msra.mxu0 %v292
        %369 = vmatprep.subr.mxu0 %v290
        %370 = vmatpush1.msra.mxu0 %v289
        %371 = vmatprep.subr.mxu0 %v287
        %372 = vmatpush1.msra.mxu0 %v286
        %373 = vmatprep.subr.mxu0 %v284
        %374 = vmatpush1.msra.mxu0 %v283
        %375 = vmatprep.subr.mxu0 %v281
        %376 = vmatpush1.msra.mxu0 %v280
        %377 = vmatprep.subr.mxu0 0.0
        %378 = vmatpush2.msra.mxu0 0.0
        %379 = vmatprep.subr.mxu0 0.0
        %380 = vmatpush2.msra.mxu0 0.0
        %381 = vmatprep.subr.mxu0 0.0
        %382 = vmatpush2.msra.mxu0 0.0
        %383 = vmatprep.subr.mxu0 0.0
        %384 = vmatpush2.msra.mxu0 0.0
        %385 = vmatprep.subr.mxu0 0.0
        %386 = vmatpush2.msra.mxu0 0.0
        %387 = vmatprep.subr.mxu0 0.0
        %388 = vmatpush2.msra.mxu0 0.0
        %389 = vmatprep.subr.mxu0 0.0
        %390 = vmatpush2.msra.mxu0 0.0
        %391 = vmatprep.subr.mxu0 0.0
        %392 = vmatpush2.msra.mxu0 0.0
        %393 = vmatprep.subr.mxu0 0.0
        %394 = vmatpush2.msra.mxu0 0.0
        %395 = vmatprep.subr.mxu0 0.0
        %396 = vmatpush2.msra.mxu0 0.0
        %397 = vmatprep.subr.mxu0 0.0
        %398 = vmatpush2.msra.mxu0 0.0
        %399 = vmatprep.subr.mxu0 0.0
        %400 = vmatpush2.msra.mxu0 0.0
        %401 = vmatprep.subr.mxu0 0.0
        %402 = vmatpush2.msra.mxu0 0.0
        %403 = vmatprep.subr.mxu0 0.0
        %404 = vmatpush2.msra.mxu0 0.0
        %405 = vmatprep.subr.mxu0 0.0
        %406 = vmatpush2.msra.mxu0 0.0
        %407 = vmatprep.subr.mxu0 0.0
        %408 = vmatpush2.msra.mxu0 0.0
        %409 = vmatprep.mubr.f32.mxu0 0.0
        %410 = vmatmul.mubr.f32.gmra.mxu0 %v279
        %v411 = vpop.f32.mrf.mxu0
        %v412 = vadd.f32 %v333, %v411
        %v413 = vpop.f32.mrf.mxu0
        %v414 = vadd.f32 %v337, %v413
        %415 = vdwg.mxu0
        %416 = vmatprep.subr.mxu0 0.0
        %417 = vmatpush1.msra.mxu0 %v327
        %418 = vmatprep.subr.mxu0 0.0
        %419 = vmatpush1.msra.mxu0 %v324
        %420 = vmatprep.subr.mxu0 0.0
        %421 = vmatpush1.msra.mxu0 %v321
        %422 = vmatprep.subr.mxu0 0.0
        %423 = vmatpush1.msra.mxu0 %v318
        %424 = vmatprep.subr.mxu0 0.0
        %425 = vmatpush1.msra.mxu0 %v315
        %426 = vmatprep.subr.mxu0 0.0
        %427 = vmatpush1.msra.mxu0 %v312
        %428 = vmatprep.subr.mxu0 0.0
        %429 = vmatpush1.msra.mxu0 %v309
        %430 = vmatprep.subr.mxu0 0.0
        %431 = vmatpush1.msra.mxu0 %v306
        %432 = vmatprep.subr.mxu0 0.0
        %433 = vmatpush1.msra.mxu0 %v303
        %434 = vmatprep.subr.mxu0 0.0
        %435 = vmatpush1.msra.mxu0 %v300
        %436 = vmatprep.subr.mxu0 0.0
        %437 = vmatpush1.msra.mxu0 %v297
        %438 = vmatprep.subr.mxu0 0.0
        %439 = vmatpush1.msra.mxu0 %v294
        %440 = vmatprep.subr.mxu0 0.0
        %441 = vmatpush1.msra.mxu0 %v291
        %442 = vmatprep.subr.mxu0 0.0
        %443 = vmatpush1.msra.mxu0 %v288
        %444 = vmatprep.subr.mxu0 0.0
        %445 = vmatpush1.msra.mxu0 %v285
        %446 = vmatprep.subr.mxu0 0.0
        %447 = vmatpush1.msra.mxu0 %v282
        %448 = vmatprep.subr.mxu0 0.0
        %449 = vmatpush2.msra.mxu0 0.0
        %450 = vmatprep.subr.mxu0 0.0
        %451 = vmatpush2.msra.mxu0 0.0
        %452 = vmatprep.subr.mxu0 0.0
        %453 = vmatpush2.msra.mxu0 0.0
        %454 = vmatprep.subr.mxu0 0.0
        %455 = vmatpush2.msra.mxu0 0.0
        %456 = vmatprep.subr.mxu0 0.0
        %457 = vmatpush2.msra.mxu0 0.0
        %458 = vmatprep.subr.mxu0 0.0
        %459 = vmatpush2.msra.mxu0 0.0
        %460 = vmatprep.subr.mxu0 0.0
        %461 = vmatpush2.msra.mxu0 0.0
        %462 = vmatprep.subr.mxu0 0.0
        %463 = vmatpush2.msra.mxu0 0.0
        %464 = vmatprep.subr.mxu0 0.0
        %465 = vmatpush2.msra.mxu0 0.0
        %466 = vmatprep.subr.mxu0 0.0
        %467 = vmatpush2.msra.mxu0 0.0
        %468 = vmatprep.subr.mxu0 0.0
        %469 = vmatpush2.msra.mxu0 0.0
        %470 = vmatprep.subr.mxu0 0.0
        %471 = vmatpush2.msra.mxu0 0.0
        %472 = vmatprep.subr.mxu0 0.0
        %473 = vmatpush2.msra.mxu0 0.0
        %474 = vmatprep.subr.mxu0 0.0
        %475 = vmatpush2.msra.mxu0 0.0
        %476 = vmatprep.subr.mxu0 0.0
        %477 = vmatpush2.msra.mxu0 0.0
        %478 = vmatprep.subr.mxu0 0.0
        %479 = vmatpush2.msra.mxu0 0.0
        %480 = vmatprep.mubr.f32.mxu0 0.0
        %481 = vmatmul.mubr.f32.gmra.mxu0 %v279
        %v482 = vpop.f32.mrf.mxu0
        %v483 = vadd.f32 %v341, %v482
        %v484 = vpop.f32.mrf.mxu0
        %485 = vdwg.mxu0
        %487 = vrot.lane.b32.xlu0 %v412, 120
        %v488 = vpop.permute.xlu0 %487
        %490 = vrot.lane.b32.xlu0 %v412, 112
        %v491 = vpop.permute.xlu0 %490
        %493 = vrot.lane.b32.xlu0 %v412, 104
        %v494 = vpop.permute.xlu0 %493
        %496 = vrot.lane.b32.xlu0 %v412, 96
        %v497 = vpop.permute.xlu0 %496
        %499 = vrot.lane.b32.xlu0 %v412, 88
        %v500 = vpop.permute.xlu0 %499
        %502 = vrot.lane.b32.xlu0 %v412, 80
        %v503 = vpop.permute.xlu0 %502
        %505 = vrot.lane.b32.xlu0 %v412, 72
        %v506 = vpop.permute.xlu0 %505
        %508 = vrot.lane.b32.xlu0 %v412, 64
        %v509 = vpop.permute.xlu0 %508
        %511 = vrot.lane.b32.xlu0 %v412, 56
        %v512 = vpop.permute.xlu0 %511
        %514 = vrot.lane.b32.xlu0 %v412, 48
        %v515 = vpop.permute.xlu0 %514
        %517 = vrot.lane.b32.xlu0 %v412, 40
        %v518 = vpop.permute.xlu0 %517
        %520 = vrot.lane.b32.xlu0 %v412, 32
        %v521 = vpop.permute.xlu0 %520
        %523 = vrot.lane.b32.xlu0 %v412, 24
        %v524 = vpop.permute.xlu0 %523
        %526 = vrot.lane.b32.xlu0 %v412, 16
        %v527 = vpop.permute.xlu0 %526
        %529 = vrot.lane.b32.xlu0 %v412, 8
        %v530 = vpop.permute.xlu0 %529
        %v532 = vcombine.low %v412, %v491
        %v533 = vcombine.high %v412, %v491
        %v535 = vunpack.c.l.s4 1983009808
        %v536 = vunpack.c.0.s8 %v535
        %v537 = vlaneseq
        %v538 = vshrl.u32 %v537, 7
        %v539 = vsub.s32 %v536, %v538
        %v540 = vrot.slane %v532, %v539
        %v542 = vunpack.c.l.s4 1983009808
        %v543 = vunpack.c.0.s8 %v542
        %v544 = vlaneseq
        %v545 = vshrl.u32 %v544, 7
        %v546 = vsub.s32 %v543, %v545
        %v547 = vrot.slane %v533, %v546
        %v548 = vcombine.low %v488, %v494
        %v549 = vcombine.high %v488, %v494
        %v551 = vunpack.c.l.s4 1983009808
        %v552 = vunpack.c.0.s8 %v551
        %v553 = vlaneseq
        %v554 = vshrl.u32 %v553, 7
        %v555 = vsub.s32 %v552, %v554
        %v556 = vrot.slane %v548, %v555
        %v558 = vunpack.c.l.s4 1983009808
        %v559 = vunpack.c.0.s8 %v558
        %v560 = vlaneseq
        %v561 = vshrl.u32 %v560, 7
        %v562 = vsub.s32 %v559, %v561
        %v563 = vrot.slane %v549, %v562
        %v564 = vcombine.low %v497, %v503
        %v565 = vcombine.high %v497, %v503
        %v567 = vunpack.c.l.s4 1983009808
        %v568 = vunpack.c.0.s8 %v567
        %v569 = vlaneseq
        %v570 = vshrl.u32 %v569, 7
        %v571 = vsub.s32 %v568, %v570
        %v572 = vrot.slane %v564, %v571
        %v574 = vunpack.c.l.s4 1983009808
        %v575 = vunpack.c.0.s8 %v574
        %v576 = vlaneseq
        %v577 = vshrl.u32 %v576, 7
        %v578 = vsub.s32 %v575, %v577
        %v579 = vrot.slane %v565, %v578
        %v580 = vcombine.low %v500, %v506
        %v581 = vcombine.high %v500, %v506
        %v583 = vunpack.c.l.s4 1983009808
        %v584 = vunpack.c.0.s8 %v583
        %v585 = vlaneseq
        %v586 = vshrl.u32 %v585, 7
        %v587 = vsub.s32 %v584, %v586
        %v588 = vrot.slane %v580, %v587
        %v590 = vunpack.c.l.s4 1983009808
        %v591 = vunpack.c.0.s8 %v590
        %v592 = vlaneseq
        %v593 = vshrl.u32 %v592, 7
        %v594 = vsub.s32 %v591, %v593
        %v595 = vrot.slane %v581, %v594
        %v596 = vcombine.low %v540, %v556
        %v597 = vcombine.high %v540, %v556
        %v599 = vunpack.c.l.s4 1934713408
        %v600 = vunpack.c.0.s8 %v599
        %v601 = vlaneseq
        %v602 = vshrl.u32 %v601, 7
        %v603 = vsub.s32 %v600, %v602
        %v604 = vrot.slane %v596, %v603
        %v606 = vunpack.c.l.s4 1934713408
        %v607 = vunpack.c.0.s8 %v606
        %v608 = vlaneseq
        %v609 = vshrl.u32 %v608, 7
        %v610 = vsub.s32 %v607, %v609
        %v611 = vrot.slane %v597, %v610
        %v612 = vcombine.low %v547, %v563
        %v613 = vcombine.high %v547, %v563
        %v615 = vunpack.c.l.s4 1934713408
        %v616 = vunpack.c.0.s8 %v615
        %v617 = vlaneseq
        %v618 = vshrl.u32 %v617, 7
        %v619 = vsub.s32 %v616, %v618
        %v620 = vrot.slane %v612, %v619
        %v622 = vunpack.c.l.s4 1934713408
        %v623 = vunpack.c.0.s8 %v622
        %v624 = vlaneseq
        %v625 = vshrl.u32 %v624, 7
        %v626 = vsub.s32 %v623, %v625
        %v627 = vrot.slane %v613, %v626
        %v628 = vcombine.low %v572, %v588
        %v629 = vcombine.high %v572, %v588
        %v631 = vunpack.c.l.s4 1934713408
        %v632 = vunpack.c.0.s8 %v631
        %v633 = vlaneseq
        %v634 = vshrl.u32 %v633, 7
        %v635 = vsub.s32 %v632, %v634
        %v636 = vrot.slane %v628, %v635
        %v638 = vunpack.c.l.s4 1934713408
        %v639 = vunpack.c.0.s8 %v638
        %v640 = vlaneseq
        %v641 = vshrl.u32 %v640, 7
        %v642 = vsub.s32 %v639, %v641
        %v643 = vrot.slane %v629, %v642
        %v644 = vcombine.low %v579, %v595
        %v645 = vcombine.high %v579, %v595
        %v647 = vunpack.c.l.s4 1934713408
        %v648 = vunpack.c.0.s8 %v647
        %v649 = vlaneseq
        %v650 = vshrl.u32 %v649, 7
        %v651 = vsub.s32 %v648, %v650
        %v652 = vrot.slane %v644, %v651
        %v654 = vunpack.c.l.s4 1934713408
        %v655 = vunpack.c.0.s8 %v654
        %v656 = vlaneseq
        %v657 = vshrl.u32 %v656, 7
        %v658 = vsub.s32 %v655, %v657
        %v659 = vrot.slane %v645, %v658
        %v660 = vcombine.low %v604, %v636
        %v661 = vcombine.high %v604, %v636
        %v662 = vcombine.low %v611, %v643
        %v663 = vcombine.high %v611, %v643
        %v664 = vcombine.low %v620, %v652
        %v665 = vcombine.high %v620, %v652
        %v666 = vcombine.low %v627, %v659
        %v667 = vcombine.high %v627, %v659
        %v668 = vcombine.low %v509, %v515
        %v669 = vcombine.high %v509, %v515
        %v671 = vunpack.c.l.s4 1983009808
        %v672 = vunpack.c.0.s8 %v671
        %v673 = vlaneseq
        %v674 = vshrl.u32 %v673, 7
        %v675 = vsub.s32 %v672, %v674
        %v676 = vrot.slane %v668, %v675
        %v678 = vunpack.c.l.s4 1983009808
        %v679 = vunpack.c.0.s8 %v678
        %v680 = vlaneseq
        %v681 = vshrl.u32 %v680, 7
        %v682 = vsub.s32 %v679, %v681
        %v683 = vrot.slane %v669, %v682
        %v684 = vcombine.low %v512, %v518
        %v685 = vcombine.high %v512, %v518
        %v687 = vunpack.c.l.s4 1983009808
        %v688 = vunpack.c.0.s8 %v687
        %v689 = vlaneseq
        %v690 = vshrl.u32 %v689, 7
        %v691 = vsub.s32 %v688, %v690
        %v692 = vrot.slane %v684, %v691
        %v694 = vunpack.c.l.s4 1983009808
        %v695 = vunpack.c.0.s8 %v694
        %v696 = vlaneseq
        %v697 = vshrl.u32 %v696, 7
        %v698 = vsub.s32 %v695, %v697
        %v699 = vrot.slane %v685, %v698
        %v700 = vcombine.low %v521, %v527
        %v701 = vcombine.high %v521, %v527
        %v703 = vunpack.c.l.s4 1983009808
        %v704 = vunpack.c.0.s8 %v703
        %v705 = vlaneseq
        %v706 = vshrl.u32 %v705, 7
        %v707 = vsub.s32 %v704, %v706
        %v708 = vrot.slane %v700, %v707
        %v710 = vunpack.c.l.s4 1983009808
        %v711 = vunpack.c.0.s8 %v710
        %v712 = vlaneseq
        %v713 = vshrl.u32 %v712, 7
        %v714 = vsub.s32 %v711, %v713
        %v715 = vrot.slane %v701, %v714
        %v716 = vcombine.low %v524, %v530
        %v717 = vcombine.high %v524, %v530
        %v719 = vunpack.c.l.s4 1983009808
        %v720 = vunpack.c.0.s8 %v719
        %v721 = vlaneseq
        %v722 = vshrl.u32 %v721, 7
        %v723 = vsub.s32 %v720, %v722
        %v724 = vrot.slane %v716, %v723
        %v726 = vunpack.c.l.s4 1983009808
        %v727 = vunpack.c.0.s8 %v726
        %v728 = vlaneseq
        %v729 = vshrl.u32 %v728, 7
        %v730 = vsub.s32 %v727, %v729
        %v731 = vrot.slane %v717, %v730
        %v732 = vcombine.low %v676, %v692
        %v733 = vcombine.high %v676, %v692
        %v735 = vunpack.c.l.s4 1934713408
        %v736 = vunpack.c.0.s8 %v735
        %v737 = vlaneseq
        %v738 = vshrl.u32 %v737, 7
        %v739 = vsub.s32 %v736, %v738
        %v740 = vrot.slane %v732, %v739
        %v742 = vunpack.c.l.s4 1934713408
        %v743 = vunpack.c.0.s8 %v742
        %v744 = vlaneseq
        %v745 = vshrl.u32 %v744, 7
        %v746 = vsub.s32 %v743, %v745
        %v747 = vrot.slane %v733, %v746
        %v748 = vcombine.low %v683, %v699
        %v749 = vcombine.high %v683, %v699
        %v751 = vunpack.c.l.s4 1934713408
        %v752 = vunpack.c.0.s8 %v751
        %v753 = vlaneseq
        %v754 = vshrl.u32 %v753, 7
        %v755 = vsub.s32 %v752, %v754
        %v756 = vrot.slane %v748, %v755
        %v758 = vunpack.c.l.s4 1934713408
        %v759 = vunpack.c.0.s8 %v758
        %v760 = vlaneseq
        %v761 = vshrl.u32 %v760, 7
        %v762 = vsub.s32 %v759, %v761
        %v763 = vrot.slane %v749, %v762
        %v764 = vcombine.low %v708, %v724
        %v765 = vcombine.high %v708, %v724
        %v767 = vunpack.c.l.s4 1934713408
        %v768 = vunpack.c.0.s8 %v767
        %v769 = vlaneseq
        %v770 = vshrl.u32 %v769, 7
        %v771 = vsub.s32 %v768, %v770
        %v772 = vrot.slane %v764, %v771
        %v774 = vunpack.c.l.s4 1934713408
        %v775 = vunpack.c.0.s8 %v774
        %v776 = vlaneseq
        %v777 = vshrl.u32 %v776, 7
        %v778 = vsub.s32 %v775, %v777
        %v779 = vrot.slane %v765, %v778
        %v780 = vcombine.low %v715, %v731
        %v781 = vcombine.high %v715, %v731
        %v783 = vunpack.c.l.s4 1934713408
        %v784 = vunpack.c.0.s8 %v783
        %v785 = vlaneseq
        %v786 = vshrl.u32 %v785, 7
        %v787 = vsub.s32 %v784, %v786
        %v788 = vrot.slane %v780, %v787
        %v790 = vunpack.c.l.s4 1934713408
        %v791 = vunpack.c.0.s8 %v790
        %v792 = vlaneseq
        %v793 = vshrl.u32 %v792, 7
        %v794 = vsub.s32 %v791, %v793
        %v795 = vrot.slane %v781, %v794
        %v796 = vcombine.low %v740, %v772
        %v797 = vcombine.high %v740, %v772
        %v798 = vcombine.low %v747, %v779
        %v799 = vcombine.high %v747, %v779
        %v800 = vcombine.low %v756, %v788
        %v801 = vcombine.high %v756, %v788
        %v802 = vcombine.low %v763, %v795
        %v803 = vcombine.high %v763, %v795
        %v804 = vcombine.low %v660, %v662
        %v805 = vcombine.high %v660, %v662
        %v807 = vunpack.c.l.s4 1983009808
        %v808 = vunpack.c.0.s8 %v807
        %v809 = vlaneseq
        %v810 = vshrl.u32 %v809, 7
        %v811 = vsub.s32 %v808, %v810
        %v812 = vrot.slane %v804, %v811
        %v814 = vunpack.c.l.s4 1983009808
        %v815 = vunpack.c.0.s8 %v814
        %v816 = vlaneseq
        %v817 = vshrl.u32 %v816, 7
        %v818 = vsub.s32 %v815, %v817
        %v819 = vrot.slane %v805, %v818
        %v820 = vcombine.low %v661, %v663
        %v821 = vcombine.high %v661, %v663
        %v823 = vunpack.c.l.s4 1983009808
        %v824 = vunpack.c.0.s8 %v823
        %v825 = vlaneseq
        %v826 = vshrl.u32 %v825, 7
        %v827 = vsub.s32 %v824, %v826
        %v828 = vrot.slane %v820, %v827
        %v830 = vunpack.c.l.s4 1983009808
        %v831 = vunpack.c.0.s8 %v830
        %v832 = vlaneseq
        %v833 = vshrl.u32 %v832, 7
        %v834 = vsub.s32 %v831, %v833
        %v835 = vrot.slane %v821, %v834
        %v836 = vcombine.low %v664, %v666
        %v837 = vcombine.high %v664, %v666
        %v839 = vunpack.c.l.s4 1983009808
        %v840 = vunpack.c.0.s8 %v839
        %v841 = vlaneseq
        %v842 = vshrl.u32 %v841, 7
        %v843 = vsub.s32 %v840, %v842
        %v844 = vrot.slane %v836, %v843
        %v846 = vunpack.c.l.s4 1983009808
        %v847 = vunpack.c.0.s8 %v846
        %v848 = vlaneseq
        %v849 = vshrl.u32 %v848, 7
        %v850 = vsub.s32 %v847, %v849
        %v851 = vrot.slane %v837, %v850
        %v852 = vcombine.low %v665, %v667
        %v853 = vcombine.high %v665, %v667
        %v855 = vunpack.c.l.s4 1983009808
        %v856 = vunpack.c.0.s8 %v855
        %v857 = vlaneseq
        %v858 = vshrl.u32 %v857, 7
        %v859 = vsub.s32 %v856, %v858
        %v860 = vrot.slane %v852, %v859
        %v862 = vunpack.c.l.s4 1983009808
        %v863 = vunpack.c.0.s8 %v862
        %v864 = vlaneseq
        %v865 = vshrl.u32 %v864, 7
        %v866 = vsub.s32 %v863, %v865
        %v867 = vrot.slane %v853, %v866
        %v868 = vcombine.low %v812, %v828
        %v869 = vcombine.high %v812, %v828
        %v871 = vunpack.c.l.s4 1934713408
        %v872 = vunpack.c.0.s8 %v871
        %v873 = vlaneseq
        %v874 = vshrl.u32 %v873, 7
        %v875 = vsub.s32 %v872, %v874
        %v876 = vrot.slane %v868, %v875
        %v878 = vunpack.c.l.s4 1934713408
        %v879 = vunpack.c.0.s8 %v878
        %v880 = vlaneseq
        %v881 = vshrl.u32 %v880, 7
        %v882 = vsub.s32 %v879, %v881
        %v883 = vrot.slane %v869, %v882
        %v884 = vcombine.low %v819, %v835
        %v885 = vcombine.high %v819, %v835
        %v887 = vunpack.c.l.s4 1934713408
        %v888 = vunpack.c.0.s8 %v887
        %v889 = vlaneseq
        %v890 = vshrl.u32 %v889, 7
        %v891 = vsub.s32 %v888, %v890
        %v892 = vrot.slane %v884, %v891
        %v894 = vunpack.c.l.s4 1934713408
        %v895 = vunpack.c.0.s8 %v894
        %v896 = vlaneseq
        %v897 = vshrl.u32 %v896, 7
        %v898 = vsub.s32 %v895, %v897
        %v899 = vrot.slane %v885, %v898
        %v900 = vcombine.low %v844, %v860
        %v901 = vcombine.high %v844, %v860
        %v903 = vunpack.c.l.s4 1934713408
        %v904 = vunpack.c.0.s8 %v903
        %v905 = vlaneseq
        %v906 = vshrl.u32 %v905, 7
        %v907 = vsub.s32 %v904, %v906
        %v908 = vrot.slane %v900, %v907
        %v910 = vunpack.c.l.s4 1934713408
        %v911 = vunpack.c.0.s8 %v910
        %v912 = vlaneseq
        %v913 = vshrl.u32 %v912, 7
        %v914 = vsub.s32 %v911, %v913
        %v915 = vrot.slane %v901, %v914
        %v916 = vcombine.low %v851, %v867
        %v917 = vcombine.high %v851, %v867
        %v919 = vunpack.c.l.s4 1934713408
        %v920 = vunpack.c.0.s8 %v919
        %v921 = vlaneseq
        %v922 = vshrl.u32 %v921, 7
        %v923 = vsub.s32 %v920, %v922
        %v924 = vrot.slane %v916, %v923
        %v926 = vunpack.c.l.s4 1934713408
        %v927 = vunpack.c.0.s8 %v926
        %v928 = vlaneseq
        %v929 = vshrl.u32 %v928, 7
        %v930 = vsub.s32 %v927, %v929
        %v931 = vrot.slane %v917, %v930
        %v932 = vcombine.low %v876, %v908
        %v933 = vcombine.high %v876, %v908
        %v934 = vcombine.low %v883, %v915
        %v935 = vcombine.high %v883, %v915
        %v936 = vcombine.low %v892, %v924
        %v937 = vcombine.high %v892, %v924
        %v938 = vcombine.low %v899, %v931
        %v939 = vcombine.high %v899, %v931
        %v940 = vcombine.low %v796, %v798
        %v941 = vcombine.high %v796, %v798
        %v943 = vunpack.c.l.s4 1983009808
        %v944 = vunpack.c.0.s8 %v943
        %v945 = vlaneseq
        %v946 = vshrl.u32 %v945, 7
        %v947 = vsub.s32 %v944, %v946
        %v948 = vrot.slane %v940, %v947
        %v950 = vunpack.c.l.s4 1983009808
        %v951 = vunpack.c.0.s8 %v950
        %v952 = vlaneseq
        %v953 = vshrl.u32 %v952, 7
        %v954 = vsub.s32 %v951, %v953
        %v955 = vrot.slane %v941, %v954
        %v956 = vcombine.low %v797, %v799
        %v957 = vcombine.high %v797, %v799
        %v959 = vunpack.c.l.s4 1983009808
        %v960 = vunpack.c.0.s8 %v959
        %v961 = vlaneseq
        %v962 = vshrl.u32 %v961, 7
        %v963 = vsub.s32 %v960, %v962
        %v964 = vrot.slane %v956, %v963
        %v966 = vunpack.c.l.s4 1983009808
        %v967 = vunpack.c.0.s8 %v966
        %v968 = vlaneseq
        %v969 = vshrl.u32 %v968, 7
        %v970 = vsub.s32 %v967, %v969
        %v971 = vrot.slane %v957, %v970
        %v972 = vcombine.low %v800, %v802
        %v973 = vcombine.high %v800, %v802
        %v975 = vunpack.c.l.s4 1983009808
        %v976 = vunpack.c.0.s8 %v975
        %v977 = vlaneseq
        %v978 = vshrl.u32 %v977, 7
        %v979 = vsub.s32 %v976, %v978
        %v980 = vrot.slane %v972, %v979
        %v982 = vunpack.c.l.s4 1983009808
        %v983 = vunpack.c.0.s8 %v982
        %v984 = vlaneseq
        %v985 = vshrl.u32 %v984, 7
        %v986 = vsub.s32 %v983, %v985
        %v987 = vrot.slane %v973, %v986
        %v988 = vcombine.low %v801, %v803
        %v989 = vcombine.high %v801, %v803
        %v991 = vunpack.c.l.s4 1983009808
        %v992 = vunpack.c.0.s8 %v991
        %v993 = vlaneseq
        %v994 = vshrl.u32 %v993, 7
        %v995 = vsub.s32 %v992, %v994
        %v996 = vrot.slane %v988, %v995
        %v998 = vunpack.c.l.s4 1983009808
        %v999 = vunpack.c.0.s8 %v998
        %v1000 = vlaneseq
        %v1001 = vshrl.u32 %v1000, 7
        %v1002 = vsub.s32 %v999, %v1001
        %v1003 = vrot.slane %v989, %v1002
        %v1004 = vcombine.low %v948, %v964
        %v1005 = vcombine.high %v948, %v964
        %v1007 = vunpack.c.l.s4 1934713408
        %v1008 = vunpack.c.0.s8 %v1007
        %v1009 = vlaneseq
        %v1010 = vshrl.u32 %v1009, 7
        %v1011 = vsub.s32 %v1008, %v1010
        %v1012 = vrot.slane %v1004, %v1011
        %v1014 = vunpack.c.l.s4 1934713408
        %v1015 = vunpack.c.0.s8 %v1014
        %v1016 = vlaneseq
        %v1017 = vshrl.u32 %v1016, 7
        %v1018 = vsub.s32 %v1015, %v1017
        %v1019 = vrot.slane %v1005, %v1018
        %v1020 = vcombine.low %v955, %v971
        %v1021 = vcombine.high %v955, %v971
        %v1023 = vunpack.c.l.s4 1934713408
        %v1024 = vunpack.c.0.s8 %v1023
        %v1025 = vlaneseq
        %v1026 = vshrl.u32 %v1025, 7
        %v1027 = vsub.s32 %v1024, %v1026
        %v1028 = vrot.slane %v1020, %v1027
        %v1030 = vunpack.c.l.s4 1934713408
        %v1031 = vunpack.c.0.s8 %v1030
        %v1032 = vlaneseq
        %v1033 = vshrl.u32 %v1032, 7
        %v1034 = vsub.s32 %v1031, %v1033
        %v1035 = vrot.slane %v1021, %v1034
        %v1036 = vcombine.low %v980, %v996
        %v1037 = vcombine.high %v980, %v996
        %v1039 = vunpack.c.l.s4 1934713408
        %v1040 = vunpack.c.0.s8 %v1039
        %v1041 = vlaneseq
        %v1042 = vshrl.u32 %v1041, 7
        %v1043 = vsub.s32 %v1040, %v1042
        %v1044 = vrot.slane %v1036, %v1043
        %v1046 = vunpack.c.l.s4 1934713408
        %v1047 = vunpack.c.0.s8 %v1046
        %v1048 = vlaneseq
        %v1049 = vshrl.u32 %v1048, 7
        %v1050 = vsub.s32 %v1047, %v1049
        %v1051 = vrot.slane %v1037, %v1050
        %v1052 = vcombine.low %v987, %v1003
        %v1053 = vcombine.high %v987, %v1003
        %v1055 = vunpack.c.l.s4 1934713408
        %v1056 = vunpack.c.0.s8 %v1055
        %v1057 = vlaneseq
        %v1058 = vshrl.u32 %v1057, 7
        %v1059 = vsub.s32 %v1056, %v1058
        %v1060 = vrot.slane %v1052, %v1059
        %v1062 = vunpack.c.l.s4 1934713408
        %v1063 = vunpack.c.0.s8 %v1062
        %v1064 = vlaneseq
        %v1065 = vshrl.u32 %v1064, 7
        %v1066 = vsub.s32 %v1063, %v1065
        %v1067 = vrot.slane %v1053, %v1066
        %v1068 = vcombine.low %v1012, %v1044
        %v1069 = vcombine.high %v1012, %v1044
        %v1070 = vcombine.low %v1019, %v1051
        %v1071 = vcombine.high %v1019, %v1051
        %v1072 = vcombine.low %v1028, %v1060
        %v1073 = vcombine.high %v1028, %v1060
        %v1074 = vcombine.low %v1035, %v1067
        %v1075 = vcombine.high %v1035, %v1067
        %1077 = vrot.lane.b32.xlu0 %v414, 120
        %v1078 = vpop.permute.xlu0 %1077
        %1080 = vrot.lane.b32.xlu0 %v414, 112
        %v1081 = vpop.permute.xlu0 %1080
        %1083 = vrot.lane.b32.xlu0 %v414, 104
        %v1084 = vpop.permute.xlu0 %1083
        %1086 = vrot.lane.b32.xlu0 %v414, 96
        %v1087 = vpop.permute.xlu0 %1086
        %1089 = vrot.lane.b32.xlu0 %v414, 88
        %v1090 = vpop.permute.xlu0 %1089
        %1092 = vrot.lane.b32.xlu0 %v414, 80
        %v1093 = vpop.permute.xlu0 %1092
        %1095 = vrot.lane.b32.xlu0 %v414, 72
        %v1096 = vpop.permute.xlu0 %1095
        %1098 = vrot.lane.b32.xlu0 %v414, 64
        %v1099 = vpop.permute.xlu0 %1098
        %1101 = vrot.lane.b32.xlu0 %v414, 56
        %v1102 = vpop.permute.xlu0 %1101
        %1104 = vrot.lane.b32.xlu0 %v414, 48
        %v1105 = vpop.permute.xlu0 %1104
        %1107 = vrot.lane.b32.xlu0 %v414, 40
        %v1108 = vpop.permute.xlu0 %1107
        %1110 = vrot.lane.b32.xlu0 %v414, 32
        %v1111 = vpop.permute.xlu0 %1110
        %1113 = vrot.lane.b32.xlu0 %v414, 24
        %v1114 = vpop.permute.xlu0 %1113
        %1116 = vrot.lane.b32.xlu0 %v414, 16
        %v1117 = vpop.permute.xlu0 %1116
        %1119 = vrot.lane.b32.xlu0 %v414, 8
        %v1120 = vpop.permute.xlu0 %1119
        %v1122 = vcombine.low %v414, %v1081
        %v1123 = vcombine.high %v414, %v1081
        %v1125 = vunpack.c.l.s4 1983009808
        %v1126 = vunpack.c.0.s8 %v1125
        %v1127 = vlaneseq
        %v1128 = vshrl.u32 %v1127, 7
        %v1129 = vsub.s32 %v1126, %v1128
        %v1130 = vrot.slane %v1122, %v1129
        %v1132 = vunpack.c.l.s4 1983009808
        %v1133 = vunpack.c.0.s8 %v1132
        %v1134 = vlaneseq
        %v1135 = vshrl.u32 %v1134, 7
        %v1136 = vsub.s32 %v1133, %v1135
        %v1137 = vrot.slane %v1123, %v1136
        %v1138 = vcombine.low %v1078, %v1084
        %v1139 = vcombine.high %v1078, %v1084
        %v1141 = vunpack.c.l.s4 1983009808
        %v1142 = vunpack.c.0.s8 %v1141
        %v1143 = vlaneseq
        %v1144 = vshrl.u32 %v1143, 7
        %v1145 = vsub.s32 %v1142, %v1144
        %v1146 = vrot.slane %v1138, %v1145
        %v1148 = vunpack.c.l.s4 1983009808
        %v1149 = vunpack.c.0.s8 %v1148
        %v1150 = vlaneseq
        %v1151 = vshrl.u32 %v1150, 7
        %v1152 = vsub.s32 %v1149, %v1151
        %v1153 = vrot.slane %v1139, %v1152
        %v1154 = vcombine.low %v1087, %v1093
        %v1155 = vcombine.high %v1087, %v1093
        %v1157 = vunpack.c.l.s4 1983009808
        %v1158 = vunpack.c.0.s8 %v1157
        %v1159 = vlaneseq
        %v1160 = vshrl.u32 %v1159, 7
        %v1161 = vsub.s32 %v1158, %v1160
        %v1162 = vrot.slane %v1154, %v1161
        %v1164 = vunpack.c.l.s4 1983009808
        %v1165 = vunpack.c.0.s8 %v1164
        %v1166 = vlaneseq
        %v1167 = vshrl.u32 %v1166, 7
        %v1168 = vsub.s32 %v1165, %v1167
        %v1169 = vrot.slane %v1155, %v1168
        %v1170 = vcombine.low %v1090, %v1096
        %v1171 = vcombine.high %v1090, %v1096
        %v1173 = vunpack.c.l.s4 1983009808
        %v1174 = vunpack.c.0.s8 %v1173
        %v1175 = vlaneseq
        %v1176 = vshrl.u32 %v1175, 7
        %v1177 = vsub.s32 %v1174, %v1176
        %v1178 = vrot.slane %v1170, %v1177
        %v1180 = vunpack.c.l.s4 1983009808
        %v1181 = vunpack.c.0.s8 %v1180
        %v1182 = vlaneseq
        %v1183 = vshrl.u32 %v1182, 7
        %v1184 = vsub.s32 %v1181, %v1183
        %v1185 = vrot.slane %v1171, %v1184
        %v1186 = vcombine.low %v1130, %v1146
        %v1187 = vcombine.high %v1130, %v1146
        %v1189 = vunpack.c.l.s4 1934713408
        %v1190 = vunpack.c.0.s8 %v1189
        %v1191 = vlaneseq
        %v1192 = vshrl.u32 %v1191, 7
        %v1193 = vsub.s32 %v1190, %v1192
        %v1194 = vrot.slane %v1186, %v1193
        %v1196 = vunpack.c.l.s4 1934713408
        %v1197 = vunpack.c.0.s8 %v1196
        %v1198 = vlaneseq
        %v1199 = vshrl.u32 %v1198, 7
        %v1200 = vsub.s32 %v1197, %v1199
        %v1201 = vrot.slane %v1187, %v1200
        %v1202 = vcombine.low %v1137, %v1153
        %v1203 = vcombine.high %v1137, %v1153
        %v1205 = vunpack.c.l.s4 1934713408
        %v1206 = vunpack.c.0.s8 %v1205
        %v1207 = vlaneseq
        %v1208 = vshrl.u32 %v1207, 7
        %v1209 = vsub.s32 %v1206, %v1208
        %v1210 = vrot.slane %v1202, %v1209
        %v1212 = vunpack.c.l.s4 1934713408
        %v1213 = vunpack.c.0.s8 %v1212
        %v1214 = vlaneseq
        %v1215 = vshrl.u32 %v1214, 7
        %v1216 = vsub.s32 %v1213, %v1215
        %v1217 = vrot.slane %v1203, %v1216
        %v1218 = vcombine.low %v1162, %v1178
        %v1219 = vcombine.high %v1162, %v1178
        %v1221 = vunpack.c.l.s4 1934713408
        %v1222 = vunpack.c.0.s8 %v1221
        %v1223 = vlaneseq
        %v1224 = vshrl.u32 %v1223, 7
        %v1225 = vsub.s32 %v1222, %v1224
        %v1226 = vrot.slane %v1218, %v1225
        %v1228 = vunpack.c.l.s4 1934713408
        %v1229 = vunpack.c.0.s8 %v1228
        %v1230 = vlaneseq
        %v1231 = vshrl.u32 %v1230, 7
        %v1232 = vsub.s32 %v1229, %v1231
        %v1233 = vrot.slane %v1219, %v1232
        %v1234 = vcombine.low %v1169, %v1185
        %v1235 = vcombine.high %v1169, %v1185
        %v1237 = vunpack.c.l.s4 1934713408
        %v1238 = vunpack.c.0.s8 %v1237
        %v1239 = vlaneseq
        %v1240 = vshrl.u32 %v1239, 7
        %v1241 = vsub.s32 %v1238, %v1240
        %v1242 = vrot.slane %v1234, %v1241
        %v1244 = vunpack.c.l.s4 1934713408
        %v1245 = vunpack.c.0.s8 %v1244
        %v1246 = vlaneseq
        %v1247 = vshrl.u32 %v1246, 7
        %v1248 = vsub.s32 %v1245, %v1247
        %v1249 = vrot.slane %v1235, %v1248
        %v1250 = vcombine.low %v1194, %v1226
        %v1251 = vcombine.high %v1194, %v1226
        %v1252 = vcombine.low %v1201, %v1233
        %v1253 = vcombine.high %v1201, %v1233
        %v1254 = vcombine.low %v1210, %v1242
        %v1255 = vcombine.high %v1210, %v1242
        %v1256 = vcombine.low %v1217, %v1249
        %v1257 = vcombine.high %v1217, %v1249
        %v1258 = vcombine.low %v1099, %v1105
        %v1259 = vcombine.high %v1099, %v1105
        %v1261 = vunpack.c.l.s4 1983009808
        %v1262 = vunpack.c.0.s8 %v1261
        %v1263 = vlaneseq
        %v1264 = vshrl.u32 %v1263, 7
        %v1265 = vsub.s32 %v1262, %v1264
        %v1266 = vrot.slane %v1258, %v1265
        %v1268 = vunpack.c.l.s4 1983009808
        %v1269 = vunpack.c.0.s8 %v1268
        %v1270 = vlaneseq
        %v1271 = vshrl.u32 %v1270, 7
        %v1272 = vsub.s32 %v1269, %v1271
        %v1273 = vrot.slane %v1259, %v1272
        %v1274 = vcombine.low %v1102, %v1108
        %v1275 = vcombine.high %v1102, %v1108
        %v1277 = vunpack.c.l.s4 1983009808
        %v1278 = vunpack.c.0.s8 %v1277
        %v1279 = vlaneseq
        %v1280 = vshrl.u32 %v1279, 7
        %v1281 = vsub.s32 %v1278, %v1280
        %v1282 = vrot.slane %v1274, %v1281
        %v1284 = vunpack.c.l.s4 1983009808
        %v1285 = vunpack.c.0.s8 %v1284
        %v1286 = vlaneseq
        %v1287 = vshrl.u32 %v1286, 7
        %v1288 = vsub.s32 %v1285, %v1287
        %v1289 = vrot.slane %v1275, %v1288
        %v1290 = vcombine.low %v1111, %v1117
        %v1291 = vcombine.high %v1111, %v1117
        %v1293 = vunpack.c.l.s4 1983009808
        %v1294 = vunpack.c.0.s8 %v1293
        %v1295 = vlaneseq
        %v1296 = vshrl.u32 %v1295, 7
        %v1297 = vsub.s32 %v1294, %v1296
        %v1298 = vrot.slane %v1290, %v1297
        %v1300 = vunpack.c.l.s4 1983009808
        %v1301 = vunpack.c.0.s8 %v1300
        %v1302 = vlaneseq
        %v1303 = vshrl.u32 %v1302, 7
        %v1304 = vsub.s32 %v1301, %v1303
        %v1305 = vrot.slane %v1291, %v1304
        %v1306 = vcombine.low %v1114, %v1120
        %v1307 = vcombine.high %v1114, %v1120
        %v1309 = vunpack.c.l.s4 1983009808
        %v1310 = vunpack.c.0.s8 %v1309
        %v1311 = vlaneseq
        %v1312 = vshrl.u32 %v1311, 7
        %v1313 = vsub.s32 %v1310, %v1312
        %v1314 = vrot.slane %v1306, %v1313
        %v1316 = vunpack.c.l.s4 1983009808
        %v1317 = vunpack.c.0.s8 %v1316
        %v1318 = vlaneseq
        %v1319 = vshrl.u32 %v1318, 7
        %v1320 = vsub.s32 %v1317, %v1319
        %v1321 = vrot.slane %v1307, %v1320
        %v1322 = vcombine.low %v1266, %v1282
        %v1323 = vcombine.high %v1266, %v1282
        %v1325 = vunpack.c.l.s4 1934713408
        %v1326 = vunpack.c.0.s8 %v1325
        %v1327 = vlaneseq
        %v1328 = vshrl.u32 %v1327, 7
        %v1329 = vsub.s32 %v1326, %v1328
        %v1330 = vrot.slane %v1322, %v1329
        %v1332 = vunpack.c.l.s4 1934713408
        %v1333 = vunpack.c.0.s8 %v1332
        %v1334 = vlaneseq
        %v1335 = vshrl.u32 %v1334, 7
        %v1336 = vsub.s32 %v1333, %v1335
        %v1337 = vrot.slane %v1323, %v1336
        %v1338 = vcombine.low %v1273, %v1289
        %v1339 = vcombine.high %v1273, %v1289
        %v1341 = vunpack.c.l.s4 1934713408
        %v1342 = vunpack.c.0.s8 %v1341
        %v1343 = vlaneseq
        %v1344 = vshrl.u32 %v1343, 7
        %v1345 = vsub.s32 %v1342, %v1344
        %v1346 = vrot.slane %v1338, %v1345
        %v1348 = vunpack.c.l.s4 1934713408
        %v1349 = vunpack.c.0.s8 %v1348
        %v1350 = vlaneseq
        %v1351 = vshrl.u32 %v1350, 7
        %v1352 = vsub.s32 %v1349, %v1351
        %v1353 = vrot.slane %v1339, %v1352
        %v1354 = vcombine.low %v1298, %v1314
        %v1355 = vcombine.high %v1298, %v1314
        %v1357 = vunpack.c.l.s4 1934713408
        %v1358 = vunpack.c.0.s8 %v1357
        %v1359 = vlaneseq
        %v1360 = vshrl.u32 %v1359, 7
        %v1361 = vsub.s32 %v1358, %v1360
        %v1362 = vrot.slane %v1354, %v1361
        %v1364 = vunpack.c.l.s4 1934713408
        %v1365 = vunpack.c.0.s8 %v1364
        %v1366 = vlaneseq
        %v1367 = vshrl.u32 %v1366, 7
        %v1368 = vsub.s32 %v1365, %v1367
        %v1369 = vrot.slane %v1355, %v1368
        %v1370 = vcombine.low %v1305, %v1321
        %v1371 = vcombine.high %v1305, %v1321
        %v1373 = vunpack.c.l.s4 1934713408
        %v1374 = vunpack.c.0.s8 %v1373
        %v1375 = vlaneseq
        %v1376 = vshrl.u32 %v1375, 7
        %v1377 = vsub.s32 %v1374, %v1376
        %v1378 = vrot.slane %v1370, %v1377
        %v1380 = vunpack.c.l.s4 1934713408
        %v1381 = vunpack.c.0.s8 %v1380
        %v1382 = vlaneseq
        %v1383 = vshrl.u32 %v1382, 7
        %v1384 = vsub.s32 %v1381, %v1383
        %v1385 = vrot.slane %v1371, %v1384
        %v1386 = vcombine.low %v1330, %v1362
        %v1387 = vcombine.high %v1330, %v1362
        %v1388 = vcombine.low %v1337, %v1369
        %v1389 = vcombine.high %v1337, %v1369
        %v1390 = vcombine.low %v1346, %v1378
        %v1391 = vcombine.high %v1346, %v1378
        %v1392 = vcombine.low %v1353, %v1385
        %v1393 = vcombine.high %v1353, %v1385
        %v1394 = vcombine.low %v1250, %v1252
        %v1395 = vcombine.high %v1250, %v1252
        %v1397 = vunpack.c.l.s4 1983009808
        %v1398 = vunpack.c.0.s8 %v1397
        %v1399 = vlaneseq
        %v1400 = vshrl.u32 %v1399, 7
        %v1401 = vsub.s32 %v1398, %v1400
        %v1402 = vrot.slane %v1394, %v1401
        %v1404 = vunpack.c.l.s4 1983009808
        %v1405 = vunpack.c.0.s8 %v1404
        %v1406 = vlaneseq
        %v1407 = vshrl.u32 %v1406, 7
        %v1408 = vsub.s32 %v1405, %v1407
        %v1409 = vrot.slane %v1395, %v1408
        %v1410 = vcombine.low %v1251, %v1253
        %v1411 = vcombine.high %v1251, %v1253
        %v1413 = vunpack.c.l.s4 1983009808
        %v1414 = vunpack.c.0.s8 %v1413
        %v1415 = vlaneseq
        %v1416 = vshrl.u32 %v1415, 7
        %v1417 = vsub.s32 %v1414, %v1416
        %v1418 = vrot.slane %v1410, %v1417
        %v1420 = vunpack.c.l.s4 1983009808
        %v1421 = vunpack.c.0.s8 %v1420
        %v1422 = vlaneseq
        %v1423 = vshrl.u32 %v1422, 7
        %v1424 = vsub.s32 %v1421, %v1423
        %v1425 = vrot.slane %v1411, %v1424
        %v1426 = vcombine.low %v1254, %v1256
        %v1427 = vcombine.high %v1254, %v1256
        %v1429 = vunpack.c.l.s4 1983009808
        %v1430 = vunpack.c.0.s8 %v1429
        %v1431 = vlaneseq
        %v1432 = vshrl.u32 %v1431, 7
        %v1433 = vsub.s32 %v1430, %v1432
        %v1434 = vrot.slane %v1426, %v1433
        %v1436 = vunpack.c.l.s4 1983009808
        %v1437 = vunpack.c.0.s8 %v1436
        %v1438 = vlaneseq
        %v1439 = vshrl.u32 %v1438, 7
        %v1440 = vsub.s32 %v1437, %v1439
        %v1441 = vrot.slane %v1427, %v1440
        %v1442 = vcombine.low %v1255, %v1257
        %v1443 = vcombine.high %v1255, %v1257
        %v1445 = vunpack.c.l.s4 1983009808
        %v1446 = vunpack.c.0.s8 %v1445
        %v1447 = vlaneseq
        %v1448 = vshrl.u32 %v1447, 7
        %v1449 = vsub.s32 %v1446, %v1448
        %v1450 = vrot.slane %v1442, %v1449
        %v1452 = vunpack.c.l.s4 1983009808
        %v1453 = vunpack.c.0.s8 %v1452
        %v1454 = vlaneseq
        %v1455 = vshrl.u32 %v1454, 7
        %v1456 = vsub.s32 %v1453, %v1455
        %v1457 = vrot.slane %v1443, %v1456
        %v1458 = vcombine.low %v1402, %v1418
        %v1459 = vcombine.high %v1402, %v1418
        %v1461 = vunpack.c.l.s4 1934713408
        %v1462 = vunpack.c.0.s8 %v1461
        %v1463 = vlaneseq
        %v1464 = vshrl.u32 %v1463, 7
        %v1465 = vsub.s32 %v1462, %v1464
        %v1466 = vrot.slane %v1458, %v1465
        %v1468 = vunpack.c.l.s4 1934713408
        %v1469 = vunpack.c.0.s8 %v1468
        %v1470 = vlaneseq
        %v1471 = vshrl.u32 %v1470, 7
        %v1472 = vsub.s32 %v1469, %v1471
        %v1473 = vrot.slane %v1459, %v1472
        %v1474 = vcombine.low %v1409, %v1425
        %v1475 = vcombine.high %v1409, %v1425
        %v1477 = vunpack.c.l.s4 1934713408
        %v1478 = vunpack.c.0.s8 %v1477
        %v1479 = vlaneseq
        %v1480 = vshrl.u32 %v1479, 7
        %v1481 = vsub.s32 %v1478, %v1480
        %v1482 = vrot.slane %v1474, %v1481
        %v1484 = vunpack.c.l.s4 1934713408
        %v1485 = vunpack.c.0.s8 %v1484
        %v1486 = vlaneseq
        %v1487 = vshrl.u32 %v1486, 7
        %v1488 = vsub.s32 %v1485, %v1487
        %v1489 = vrot.slane %v1475, %v1488
        %v1490 = vcombine.low %v1434, %v1450
        %v1491 = vcombine.high %v1434, %v1450
        %v1493 = vunpack.c.l.s4 1934713408
        %v1494 = vunpack.c.0.s8 %v1493
        %v1495 = vlaneseq
        %v1496 = vshrl.u32 %v1495, 7
        %v1497 = vsub.s32 %v1494, %v1496
        %v1498 = vrot.slane %v1490, %v1497
        %v1500 = vunpack.c.l.s4 1934713408
        %v1501 = vunpack.c.0.s8 %v1500
        %v1502 = vlaneseq
        %v1503 = vshrl.u32 %v1502, 7
        %v1504 = vsub.s32 %v1501, %v1503
        %v1505 = vrot.slane %v1491, %v1504
        %v1506 = vcombine.low %v1441, %v1457
        %v1507 = vcombine.high %v1441, %v1457
        %v1509 = vunpack.c.l.s4 1934713408
        %v1510 = vunpack.c.0.s8 %v1509
        %v1511 = vlaneseq
        %v1512 = vshrl.u32 %v1511, 7
        %v1513 = vsub.s32 %v1510, %v1512
        %v1514 = vrot.slane %v1506, %v1513
        %v1516 = vunpack.c.l.s4 1934713408
        %v1517 = vunpack.c.0.s8 %v1516
        %v1518 = vlaneseq
        %v1519 = vshrl.u32 %v1518, 7
        %v1520 = vsub.s32 %v1517, %v1519
        %v1521 = vrot.slane %v1507, %v1520
        %v1522 = vcombine.low %v1466, %v1498
        %v1523 = vcombine.high %v1466, %v1498
        %v1524 = vcombine.low %v1473, %v1505
        %v1525 = vcombine.high %v1473, %v1505
        %v1526 = vcombine.low %v1482, %v1514
        %v1527 = vcombine.high %v1482, %v1514
        %v1528 = vcombine.low %v1489, %v1521
        %v1529 = vcombine.high %v1489, %v1521
        %v1530 = vcombine.low %v1386, %v1388
        %v1531 = vcombine.high %v1386, %v1388
        %v1533 = vunpack.c.l.s4 1983009808
        %v1534 = vunpack.c.0.s8 %v1533
        %v1535 = vlaneseq
        %v1536 = vshrl.u32 %v1535, 7
        %v1537 = vsub.s32 %v1534, %v1536
        %v1538 = vrot.slane %v1530, %v1537
        %v1540 = vunpack.c.l.s4 1983009808
        %v1541 = vunpack.c.0.s8 %v1540
        %v1542 = vlaneseq
        %v1543 = vshrl.u32 %v1542, 7
        %v1544 = vsub.s32 %v1541, %v1543
        %v1545 = vrot.slane %v1531, %v1544
        %v1546 = vcombine.low %v1387, %v1389
        %v1547 = vcombine.high %v1387, %v1389
        %v1549 = vunpack.c.l.s4 1983009808
        %v1550 = vunpack.c.0.s8 %v1549
        %v1551 = vlaneseq
        %v1552 = vshrl.u32 %v1551, 7
        %v1553 = vsub.s32 %v1550, %v1552
        %v1554 = vrot.slane %v1546, %v1553
        %v1556 = vunpack.c.l.s4 1983009808
        %v1557 = vunpack.c.0.s8 %v1556
        %v1558 = vlaneseq
        %v1559 = vshrl.u32 %v1558, 7
        %v1560 = vsub.s32 %v1557, %v1559
        %v1561 = vrot.slane %v1547, %v1560
        %v1562 = vcombine.low %v1390, %v1392
        %v1563 = vcombine.high %v1390, %v1392
        %v1565 = vunpack.c.l.s4 1983009808
        %v1566 = vunpack.c.0.s8 %v1565
        %v1567 = vlaneseq
        %v1568 = vshrl.u32 %v1567, 7
        %v1569 = vsub.s32 %v1566, %v1568
        %v1570 = vrot.slane %v1562, %v1569
        %v1572 = vunpack.c.l.s4 1983009808
        %v1573 = vunpack.c.0.s8 %v1572
        %v1574 = vlaneseq
        %v1575 = vshrl.u32 %v1574, 7
        %v1576 = vsub.s32 %v1573, %v1575
        %v1577 = vrot.slane %v1563, %v1576
        %v1578 = vcombine.low %v1391, %v1393
        %v1579 = vcombine.high %v1391, %v1393
        %v1581 = vunpack.c.l.s4 1983009808
        %v1582 = vunpack.c.0.s8 %v1581
        %v1583 = vlaneseq
        %v1584 = vshrl.u32 %v1583, 7
        %v1585 = vsub.s32 %v1582, %v1584
        %v1586 = vrot.slane %v1578, %v1585
        %v1588 = vunpack.c.l.s4 1983009808
        %v1589 = vunpack.c.0.s8 %v1588
        %v1590 = vlaneseq
        %v1591 = vshrl.u32 %v1590, 7
        %v1592 = vsub.s32 %v1589, %v1591
        %v1593 = vrot.slane %v1579, %v1592
        %v1594 = vcombine.low %v1538, %v1554
        %v1595 = vcombine.high %v1538, %v1554
        %v1597 = vunpack.c.l.s4 1934713408
        %v1598 = vunpack.c.0.s8 %v1597
        %v1599 = vlaneseq
        %v1600 = vshrl.u32 %v1599, 7
        %v1601 = vsub.s32 %v1598, %v1600
        %v1602 = vrot.slane %v1594, %v1601
        %v1604 = vunpack.c.l.s4 1934713408
        %v1605 = vunpack.c.0.s8 %v1604
        %v1606 = vlaneseq
        %v1607 = vshrl.u32 %v1606, 7
        %v1608 = vsub.s32 %v1605, %v1607
        %v1609 = vrot.slane %v1595, %v1608
        %v1610 = vcombine.low %v1545, %v1561
        %v1611 = vcombine.high %v1545, %v1561
        %v1613 = vunpack.c.l.s4 1934713408
        %v1614 = vunpack.c.0.s8 %v1613
        %v1615 = vlaneseq
        %v1616 = vshrl.u32 %v1615, 7
        %v1617 = vsub.s32 %v1614, %v1616
        %v1618 = vrot.slane %v1610, %v1617
        %v1620 = vunpack.c.l.s4 1934713408
        %v1621 = vunpack.c.0.s8 %v1620
        %v1622 = vlaneseq
        %v1623 = vshrl.u32 %v1622, 7
        %v1624 = vsub.s32 %v1621, %v1623
        %v1625 = vrot.slane %v1611, %v1624
        %v1626 = vcombine.low %v1570, %v1586
        %v1627 = vcombine.high %v1570, %v1586
        %v1629 = vunpack.c.l.s4 1934713408
        %v1630 = vunpack.c.0.s8 %v1629
        %v1631 = vlaneseq
        %v1632 = vshrl.u32 %v1631, 7
        %v1633 = vsub.s32 %v1630, %v1632
        %v1634 = vrot.slane %v1626, %v1633
        %v1636 = vunpack.c.l.s4 1934713408
        %v1637 = vunpack.c.0.s8 %v1636
        %v1638 = vlaneseq
        %v1639 = vshrl.u32 %v1638, 7
        %v1640 = vsub.s32 %v1637, %v1639
        %v1641 = vrot.slane %v1627, %v1640
        %v1642 = vcombine.low %v1577, %v1593
        %v1643 = vcombine.high %v1577, %v1593
        %v1645 = vunpack.c.l.s4 1934713408
        %v1646 = vunpack.c.0.s8 %v1645
        %v1647 = vlaneseq
        %v1648 = vshrl.u32 %v1647, 7
        %v1649 = vsub.s32 %v1646, %v1648
        %v1650 = vrot.slane %v1642, %v1649
        %v1652 = vunpack.c.l.s4 1934713408
        %v1653 = vunpack.c.0.s8 %v1652
        %v1654 = vlaneseq
        %v1655 = vshrl.u32 %v1654, 7
        %v1656 = vsub.s32 %v1653, %v1655
        %v1657 = vrot.slane %v1643, %v1656
        %v1658 = vcombine.low %v1602, %v1634
        %v1659 = vcombine.high %v1602, %v1634
        %v1660 = vcombine.low %v1609, %v1641
        %v1661 = vcombine.high %v1609, %v1641
        %v1662 = vcombine.low %v1618, %v1650
        %v1663 = vcombine.high %v1618, %v1650
        %v1664 = vcombine.low %v1625, %v1657
        %v1665 = vcombine.high %v1625, %v1657
        %1667 = vrot.lane.b32.xlu0 %v483, 120
        %v1668 = vpop.permute.xlu0 %1667
        %1670 = vrot.lane.b32.xlu0 %v483, 112
        %v1671 = vpop.permute.xlu0 %1670
        %1673 = vrot.lane.b32.xlu0 %v483, 104
        %v1674 = vpop.permute.xlu0 %1673
        %1676 = vrot.lane.b32.xlu0 %v483, 96
        %v1677 = vpop.permute.xlu0 %1676
        %1679 = vrot.lane.b32.xlu0 %v483, 88
        %v1680 = vpop.permute.xlu0 %1679
        %1682 = vrot.lane.b32.xlu0 %v483, 80
        %v1683 = vpop.permute.xlu0 %1682
        %1685 = vrot.lane.b32.xlu0 %v483, 72
        %v1686 = vpop.permute.xlu0 %1685
        %1688 = vrot.lane.b32.xlu0 %v483, 64
        %v1689 = vpop.permute.xlu0 %1688
        %1691 = vrot.lane.b32.xlu0 %v483, 56
        %v1692 = vpop.permute.xlu0 %1691
        %1694 = vrot.lane.b32.xlu0 %v483, 48
        %v1695 = vpop.permute.xlu0 %1694
        %1697 = vrot.lane.b32.xlu0 %v483, 40
        %v1698 = vpop.permute.xlu0 %1697
        %1700 = vrot.lane.b32.xlu0 %v483, 32
        %v1701 = vpop.permute.xlu0 %1700
        %1703 = vrot.lane.b32.xlu0 %v483, 24
        %v1704 = vpop.permute.xlu0 %1703
        %1706 = vrot.lane.b32.xlu0 %v483, 16
        %v1707 = vpop.permute.xlu0 %1706
        %1709 = vrot.lane.b32.xlu0 %v483, 8
        %v1710 = vpop.permute.xlu0 %1709
        %v1712 = vcombine.low %v483, %v1671
        %v1713 = vcombine.high %v483, %v1671
        %v1715 = vunpack.c.l.s4 1983009808
        %v1716 = vunpack.c.0.s8 %v1715
        %v1717 = vlaneseq
        %v1718 = vshrl.u32 %v1717, 7
        %v1719 = vsub.s32 %v1716, %v1718
        %v1720 = vrot.slane %v1712, %v1719
        %v1722 = vunpack.c.l.s4 1983009808
        %v1723 = vunpack.c.0.s8 %v1722
        %v1724 = vlaneseq
        %v1725 = vshrl.u32 %v1724, 7
        %v1726 = vsub.s32 %v1723, %v1725
        %v1727 = vrot.slane %v1713, %v1726
        %v1728 = vcombine.low %v1668, %v1674
        %v1729 = vcombine.high %v1668, %v1674
        %v1731 = vunpack.c.l.s4 1983009808
        %v1732 = vunpack.c.0.s8 %v1731
        %v1733 = vlaneseq
        %v1734 = vshrl.u32 %v1733, 7
        %v1735 = vsub.s32 %v1732, %v1734
        %v1736 = vrot.slane %v1728, %v1735
        %v1738 = vunpack.c.l.s4 1983009808
        %v1739 = vunpack.c.0.s8 %v1738
        %v1740 = vlaneseq
        %v1741 = vshrl.u32 %v1740, 7
        %v1742 = vsub.s32 %v1739, %v1741
        %v1743 = vrot.slane %v1729, %v1742
        %v1744 = vcombine.low %v1677, %v1683
        %v1745 = vcombine.high %v1677, %v1683
        %v1747 = vunpack.c.l.s4 1983009808
        %v1748 = vunpack.c.0.s8 %v1747
        %v1749 = vlaneseq
        %v1750 = vshrl.u32 %v1749, 7
        %v1751 = vsub.s32 %v1748, %v1750
        %v1752 = vrot.slane %v1744, %v1751
        %v1754 = vunpack.c.l.s4 1983009808
        %v1755 = vunpack.c.0.s8 %v1754
        %v1756 = vlaneseq
        %v1757 = vshrl.u32 %v1756, 7
        %v1758 = vsub.s32 %v1755, %v1757
        %v1759 = vrot.slane %v1745, %v1758
        %v1760 = vcombine.low %v1680, %v1686
        %v1761 = vcombine.high %v1680, %v1686
        %v1763 = vunpack.c.l.s4 1983009808
        %v1764 = vunpack.c.0.s8 %v1763
        %v1765 = vlaneseq
        %v1766 = vshrl.u32 %v1765, 7
        %v1767 = vsub.s32 %v1764, %v1766
        %v1768 = vrot.slane %v1760, %v1767
        %v1770 = vunpack.c.l.s4 1983009808
        %v1771 = vunpack.c.0.s8 %v1770
        %v1772 = vlaneseq
        %v1773 = vshrl.u32 %v1772, 7
        %v1774 = vsub.s32 %v1771, %v1773
        %v1775 = vrot.slane %v1761, %v1774
        %v1776 = vcombine.low %v1720, %v1736
        %v1777 = vcombine.high %v1720, %v1736
        %v1779 = vunpack.c.l.s4 1934713408
        %v1780 = vunpack.c.0.s8 %v1779
        %v1781 = vlaneseq
        %v1782 = vshrl.u32 %v1781, 7
        %v1783 = vsub.s32 %v1780, %v1782
        %v1784 = vrot.slane %v1776, %v1783
        %v1786 = vunpack.c.l.s4 1934713408
        %v1787 = vunpack.c.0.s8 %v1786
        %v1788 = vlaneseq
        %v1789 = vshrl.u32 %v1788, 7
        %v1790 = vsub.s32 %v1787, %v1789
        %v1791 = vrot.slane %v1777, %v1790
        %v1792 = vcombine.low %v1727, %v1743
        %v1793 = vcombine.high %v1727, %v1743
        %v1795 = vunpack.c.l.s4 1934713408
        %v1796 = vunpack.c.0.s8 %v1795
        %v1797 = vlaneseq
        %v1798 = vshrl.u32 %v1797, 7
        %v1799 = vsub.s32 %v1796, %v1798
        %v1800 = vrot.slane %v1792, %v1799
        %v1802 = vunpack.c.l.s4 1934713408
        %v1803 = vunpack.c.0.s8 %v1802
        %v1804 = vlaneseq
        %v1805 = vshrl.u32 %v1804, 7
        %v1806 = vsub.s32 %v1803, %v1805
        %v1807 = vrot.slane %v1793, %v1806
        %v1808 = vcombine.low %v1752, %v1768
        %v1809 = vcombine.high %v1752, %v1768
        %v1811 = vunpack.c.l.s4 1934713408
        %v1812 = vunpack.c.0.s8 %v1811
        %v1813 = vlaneseq
        %v1814 = vshrl.u32 %v1813, 7
        %v1815 = vsub.s32 %v1812, %v1814
        %v1816 = vrot.slane %v1808, %v1815
        %v1818 = vunpack.c.l.s4 1934713408
        %v1819 = vunpack.c.0.s8 %v1818
        %v1820 = vlaneseq
        %v1821 = vshrl.u32 %v1820, 7
        %v1822 = vsub.s32 %v1819, %v1821
        %v1823 = vrot.slane %v1809, %v1822
        %v1824 = vcombine.low %v1759, %v1775
        %v1825 = vcombine.high %v1759, %v1775
        %v1827 = vunpack.c.l.s4 1934713408
        %v1828 = vunpack.c.0.s8 %v1827
        %v1829 = vlaneseq
        %v1830 = vshrl.u32 %v1829, 7
        %v1831 = vsub.s32 %v1828, %v1830
        %v1832 = vrot.slane %v1824, %v1831
        %v1834 = vunpack.c.l.s4 1934713408
        %v1835 = vunpack.c.0.s8 %v1834
        %v1836 = vlaneseq
        %v1837 = vshrl.u32 %v1836, 7
        %v1838 = vsub.s32 %v1835, %v1837
        %v1839 = vrot.slane %v1825, %v1838
        %v1840 = vcombine.low %v1784, %v1816
        %v1841 = vcombine.high %v1784, %v1816
        %v1842 = vcombine.low %v1791, %v1823
        %v1843 = vcombine.high %v1791, %v1823
        %v1844 = vcombine.low %v1800, %v1832
        %v1845 = vcombine.high %v1800, %v1832
        %v1846 = vcombine.low %v1807, %v1839
        %v1847 = vcombine.high %v1807, %v1839
        %v1848 = vcombine.low %v1689, %v1695
        %v1849 = vcombine.high %v1689, %v1695
        %v1851 = vunpack.c.l.s4 1983009808
        %v1852 = vunpack.c.0.s8 %v1851
        %v1853 = vlaneseq
        %v1854 = vshrl.u32 %v1853, 7
        %v1855 = vsub.s32 %v1852, %v1854
        %v1856 = vrot.slane %v1848, %v1855
        %v1858 = vunpack.c.l.s4 1983009808
        %v1859 = vunpack.c.0.s8 %v1858
        %v1860 = vlaneseq
        %v1861 = vshrl.u32 %v1860, 7
        %v1862 = vsub.s32 %v1859, %v1861
        %v1863 = vrot.slane %v1849, %v1862
        %v1864 = vcombine.low %v1692, %v1698
        %v1865 = vcombine.high %v1692, %v1698
        %v1867 = vunpack.c.l.s4 1983009808
        %v1868 = vunpack.c.0.s8 %v1867
        %v1869 = vlaneseq
        %v1870 = vshrl.u32 %v1869, 7
        %v1871 = vsub.s32 %v1868, %v1870
        %v1872 = vrot.slane %v1864, %v1871
        %v1874 = vunpack.c.l.s4 1983009808
        %v1875 = vunpack.c.0.s8 %v1874
        %v1876 = vlaneseq
        %v1877 = vshrl.u32 %v1876, 7
        %v1878 = vsub.s32 %v1875, %v1877
        %v1879 = vrot.slane %v1865, %v1878
        %v1880 = vcombine.low %v1701, %v1707
        %v1881 = vcombine.high %v1701, %v1707
        %v1883 = vunpack.c.l.s4 1983009808
        %v1884 = vunpack.c.0.s8 %v1883
        %v1885 = vlaneseq
        %v1886 = vshrl.u32 %v1885, 7
        %v1887 = vsub.s32 %v1884, %v1886
        %v1888 = vrot.slane %v1880, %v1887
        %v1890 = vunpack.c.l.s4 1983009808
        %v1891 = vunpack.c.0.s8 %v1890
        %v1892 = vlaneseq
        %v1893 = vshrl.u32 %v1892, 7
        %v1894 = vsub.s32 %v1891, %v1893
        %v1895 = vrot.slane %v1881, %v1894
        %v1896 = vcombine.low %v1704, %v1710
        %v1897 = vcombine.high %v1704, %v1710
        %v1899 = vunpack.c.l.s4 1983009808
        %v1900 = vunpack.c.0.s8 %v1899
        %v1901 = vlaneseq
        %v1902 = vshrl.u32 %v1901, 7
        %v1903 = vsub.s32 %v1900, %v1902
        %v1904 = vrot.slane %v1896, %v1903
        %v1906 = vunpack.c.l.s4 1983009808
        %v1907 = vunpack.c.0.s8 %v1906
        %v1908 = vlaneseq
        %v1909 = vshrl.u32 %v1908, 7
        %v1910 = vsub.s32 %v1907, %v1909
        %v1911 = vrot.slane %v1897, %v1910
        %v1912 = vcombine.low %v1856, %v1872
        %v1913 = vcombine.high %v1856, %v1872
        %v1915 = vunpack.c.l.s4 1934713408
        %v1916 = vunpack.c.0.s8 %v1915
        %v1917 = vlaneseq
        %v1918 = vshrl.u32 %v1917, 7
        %v1919 = vsub.s32 %v1916, %v1918
        %v1920 = vrot.slane %v1912, %v1919
        %v1922 = vunpack.c.l.s4 1934713408
        %v1923 = vunpack.c.0.s8 %v1922
        %v1924 = vlaneseq
        %v1925 = vshrl.u32 %v1924, 7
        %v1926 = vsub.s32 %v1923, %v1925
        %v1927 = vrot.slane %v1913, %v1926
        %v1928 = vcombine.low %v1863, %v1879
        %v1929 = vcombine.high %v1863, %v1879
        %v1931 = vunpack.c.l.s4 1934713408
        %v1932 = vunpack.c.0.s8 %v1931
        %v1933 = vlaneseq
        %v1934 = vshrl.u32 %v1933, 7
        %v1935 = vsub.s32 %v1932, %v1934
        %v1936 = vrot.slane %v1928, %v1935
        %v1938 = vunpack.c.l.s4 1934713408
        %v1939 = vunpack.c.0.s8 %v1938
        %v1940 = vlaneseq
        %v1941 = vshrl.u32 %v1940, 7
        %v1942 = vsub.s32 %v1939, %v1941
        %v1943 = vrot.slane %v1929, %v1942
        %v1944 = vcombine.low %v1888, %v1904
        %v1945 = vcombine.high %v1888, %v1904
        %v1947 = vunpack.c.l.s4 1934713408
        %v1948 = vunpack.c.0.s8 %v1947
        %v1949 = vlaneseq
        %v1950 = vshrl.u32 %v1949, 7
        %v1951 = vsub.s32 %v1948, %v1950
        %v1952 = vrot.slane %v1944, %v1951
        %v1954 = vunpack.c.l.s4 1934713408
        %v1955 = vunpack.c.0.s8 %v1954
        %v1956 = vlaneseq
        %v1957 = vshrl.u32 %v1956, 7
        %v1958 = vsub.s32 %v1955, %v1957
        %v1959 = vrot.slane %v1945, %v1958
        %v1960 = vcombine.low %v1895, %v1911
        %v1961 = vcombine.high %v1895, %v1911
        %v1963 = vunpack.c.l.s4 1934713408
        %v1964 = vunpack.c.0.s8 %v1963
        %v1965 = vlaneseq
        %v1966 = vshrl.u32 %v1965, 7
        %v1967 = vsub.s32 %v1964, %v1966
        %v1968 = vrot.slane %v1960, %v1967
        %v1970 = vunpack.c.l.s4 1934713408
        %v1971 = vunpack.c.0.s8 %v1970
        %v1972 = vlaneseq
        %v1973 = vshrl.u32 %v1972, 7
        %v1974 = vsub.s32 %v1971, %v1973
        %v1975 = vrot.slane %v1961, %v1974
        %v1976 = vcombine.low %v1920, %v1952
        %v1977 = vcombine.high %v1920, %v1952
        %v1978 = vcombine.low %v1927, %v1959
        %v1979 = vcombine.high %v1927, %v1959
        %v1980 = vcombine.low %v1936, %v1968
        %v1981 = vcombine.high %v1936, %v1968
        %v1982 = vcombine.low %v1943, %v1975
        %v1983 = vcombine.high %v1943, %v1975
        %v1984 = vcombine.low %v1840, %v1842
        %v1985 = vcombine.high %v1840, %v1842
        %v1987 = vunpack.c.l.s4 1983009808
        %v1988 = vunpack.c.0.s8 %v1987
        %v1989 = vlaneseq
        %v1990 = vshrl.u32 %v1989, 7
        %v1991 = vsub.s32 %v1988, %v1990
        %v1992 = vrot.slane %v1984, %v1991
        %v1994 = vunpack.c.l.s4 1983009808
        %v1995 = vunpack.c.0.s8 %v1994
        %v1996 = vlaneseq
        %v1997 = vshrl.u32 %v1996, 7
        %v1998 = vsub.s32 %v1995, %v1997
        %v1999 = vrot.slane %v1985, %v1998
        %v2000 = vcombine.low %v1841, %v1843
        %v2001 = vcombine.high %v1841, %v1843
        %v2003 = vunpack.c.l.s4 1983009808
        %v2004 = vunpack.c.0.s8 %v2003
        %v2005 = vlaneseq
        %v2006 = vshrl.u32 %v2005, 7
        %v2007 = vsub.s32 %v2004, %v2006
        %v2008 = vrot.slane %v2000, %v2007
        %v2010 = vunpack.c.l.s4 1983009808
        %v2011 = vunpack.c.0.s8 %v2010
        %v2012 = vlaneseq
        %v2013 = vshrl.u32 %v2012, 7
        %v2014 = vsub.s32 %v2011, %v2013
        %v2015 = vrot.slane %v2001, %v2014
        %v2016 = vcombine.low %v1844, %v1846
        %v2017 = vcombine.high %v1844, %v1846
        %v2019 = vunpack.c.l.s4 1983009808
        %v2020 = vunpack.c.0.s8 %v2019
        %v2021 = vlaneseq
        %v2022 = vshrl.u32 %v2021, 7
        %v2023 = vsub.s32 %v2020, %v2022
        %v2024 = vrot.slane %v2016, %v2023
        %v2026 = vunpack.c.l.s4 1983009808
        %v2027 = vunpack.c.0.s8 %v2026
        %v2028 = vlaneseq
        %v2029 = vshrl.u32 %v2028, 7
        %v2030 = vsub.s32 %v2027, %v2029
        %v2031 = vrot.slane %v2017, %v2030
        %v2032 = vcombine.low %v1845, %v1847
        %v2033 = vcombine.high %v1845, %v1847
        %v2035 = vunpack.c.l.s4 1983009808
        %v2036 = vunpack.c.0.s8 %v2035
        %v2037 = vlaneseq
        %v2038 = vshrl.u32 %v2037, 7
        %v2039 = vsub.s32 %v2036, %v2038
        %v2040 = vrot.slane %v2032, %v2039
        %v2042 = vunpack.c.l.s4 1983009808
        %v2043 = vunpack.c.0.s8 %v2042
        %v2044 = vlaneseq
        %v2045 = vshrl.u32 %v2044, 7
        %v2046 = vsub.s32 %v2043, %v2045
        %v2047 = vrot.slane %v2033, %v2046
        %v2048 = vcombine.low %v1992, %v2008
        %v2049 = vcombine.high %v1992, %v2008
        %v2051 = vunpack.c.l.s4 1934713408
        %v2052 = vunpack.c.0.s8 %v2051
        %v2053 = vlaneseq
        %v2054 = vshrl.u32 %v2053, 7
        %v2055 = vsub.s32 %v2052, %v2054
        %v2056 = vrot.slane %v2048, %v2055
        %v2058 = vunpack.c.l.s4 1934713408
        %v2059 = vunpack.c.0.s8 %v2058
        %v2060 = vlaneseq
        %v2061 = vshrl.u32 %v2060, 7
        %v2062 = vsub.s32 %v2059, %v2061
        %v2063 = vrot.slane %v2049, %v2062
        %v2064 = vcombine.low %v1999, %v2015
        %v2065 = vcombine.high %v1999, %v2015
        %v2067 = vunpack.c.l.s4 1934713408
        %v2068 = vunpack.c.0.s8 %v2067
        %v2069 = vlaneseq
        %v2070 = vshrl.u32 %v2069, 7
        %v2071 = vsub.s32 %v2068, %v2070
        %v2072 = vrot.slane %v2064, %v2071
        %v2074 = vunpack.c.l.s4 1934713408
        %v2075 = vunpack.c.0.s8 %v2074
        %v2076 = vlaneseq
        %v2077 = vshrl.u32 %v2076, 7
        %v2078 = vsub.s32 %v2075, %v2077
        %v2079 = vrot.slane %v2065, %v2078
        %v2080 = vcombine.low %v2024, %v2040
        %v2081 = vcombine.high %v2024, %v2040
        %v2083 = vunpack.c.l.s4 1934713408
        %v2084 = vunpack.c.0.s8 %v2083
        %v2085 = vlaneseq
        %v2086 = vshrl.u32 %v2085, 7
        %v2087 = vsub.s32 %v2084, %v2086
        %v2088 = vrot.slane %v2080, %v2087
        %v2090 = vunpack.c.l.s4 1934713408
        %v2091 = vunpack.c.0.s8 %v2090
        %v2092 = vlaneseq
        %v2093 = vshrl.u32 %v2092, 7
        %v2094 = vsub.s32 %v2091, %v2093
        %v2095 = vrot.slane %v2081, %v2094
        %v2096 = vcombine.low %v2031, %v2047
        %v2097 = vcombine.high %v2031, %v2047
        %v2099 = vunpack.c.l.s4 1934713408
        %v2100 = vunpack.c.0.s8 %v2099
        %v2101 = vlaneseq
        %v2102 = vshrl.u32 %v2101, 7
        %v2103 = vsub.s32 %v2100, %v2102
        %v2104 = vrot.slane %v2096, %v2103
        %v2106 = vunpack.c.l.s4 1934713408
        %v2107 = vunpack.c.0.s8 %v2106
        %v2108 = vlaneseq
        %v2109 = vshrl.u32 %v2108, 7
        %v2110 = vsub.s32 %v2107, %v2109
        %v2111 = vrot.slane %v2097, %v2110
        %v2112 = vcombine.low %v2056, %v2088
        %v2113 = vcombine.high %v2056, %v2088
        %v2114 = vcombine.low %v2063, %v2095
        %v2115 = vcombine.high %v2063, %v2095
        %v2116 = vcombine.low %v2072, %v2104
        %v2117 = vcombine.high %v2072, %v2104
        %v2118 = vcombine.low %v2079, %v2111
        %v2119 = vcombine.high %v2079, %v2111
        %v2120 = vcombine.low %v1976, %v1978
        %v2121 = vcombine.high %v1976, %v1978
        %v2123 = vunpack.c.l.s4 1983009808
        %v2124 = vunpack.c.0.s8 %v2123
        %v2125 = vlaneseq
        %v2126 = vshrl.u32 %v2125, 7
        %v2127 = vsub.s32 %v2124, %v2126
        %v2128 = vrot.slane %v2120, %v2127
        %v2130 = vunpack.c.l.s4 1983009808
        %v2131 = vunpack.c.0.s8 %v2130
        %v2132 = vlaneseq
        %v2133 = vshrl.u32 %v2132, 7
        %v2134 = vsub.s32 %v2131, %v2133
        %v2135 = vrot.slane %v2121, %v2134
        %v2136 = vcombine.low %v1977, %v1979
        %v2137 = vcombine.high %v1977, %v1979
        %v2139 = vunpack.c.l.s4 1983009808
        %v2140 = vunpack.c.0.s8 %v2139
        %v2141 = vlaneseq
        %v2142 = vshrl.u32 %v2141, 7
        %v2143 = vsub.s32 %v2140, %v2142
        %v2144 = vrot.slane %v2136, %v2143
        %v2146 = vunpack.c.l.s4 1983009808
        %v2147 = vunpack.c.0.s8 %v2146
        %v2148 = vlaneseq
        %v2149 = vshrl.u32 %v2148, 7
        %v2150 = vsub.s32 %v2147, %v2149
        %v2151 = vrot.slane %v2137, %v2150
        %v2152 = vcombine.low %v1980, %v1982
        %v2153 = vcombine.high %v1980, %v1982
        %v2155 = vunpack.c.l.s4 1983009808
        %v2156 = vunpack.c.0.s8 %v2155
        %v2157 = vlaneseq
        %v2158 = vshrl.u32 %v2157, 7
        %v2159 = vsub.s32 %v2156, %v2158
        %v2160 = vrot.slane %v2152, %v2159
        %v2162 = vunpack.c.l.s4 1983009808
        %v2163 = vunpack.c.0.s8 %v2162
        %v2164 = vlaneseq
        %v2165 = vshrl.u32 %v2164, 7
        %v2166 = vsub.s32 %v2163, %v2165
        %v2167 = vrot.slane %v2153, %v2166
        %v2168 = vcombine.low %v1981, %v1983
        %v2169 = vcombine.high %v1981, %v1983
        %v2171 = vunpack.c.l.s4 1983009808
        %v2172 = vunpack.c.0.s8 %v2171
        %v2173 = vlaneseq
        %v2174 = vshrl.u32 %v2173, 7
        %v2175 = vsub.s32 %v2172, %v2174
        %v2176 = vrot.slane %v2168, %v2175
        %v2178 = vunpack.c.l.s4 1983009808
        %v2179 = vunpack.c.0.s8 %v2178
        %v2180 = vlaneseq
        %v2181 = vshrl.u32 %v2180, 7
        %v2182 = vsub.s32 %v2179, %v2181
        %v2183 = vrot.slane %v2169, %v2182
        %v2184 = vcombine.low %v2128, %v2144
        %v2185 = vcombine.high %v2128, %v2144
        %v2187 = vunpack.c.l.s4 1934713408
        %v2188 = vunpack.c.0.s8 %v2187
        %v2189 = vlaneseq
        %v2190 = vshrl.u32 %v2189, 7
        %v2191 = vsub.s32 %v2188, %v2190
        %v2192 = vrot.slane %v2184, %v2191
        %v2194 = vunpack.c.l.s4 1934713408
        %v2195 = vunpack.c.0.s8 %v2194
        %v2196 = vlaneseq
        %v2197 = vshrl.u32 %v2196, 7
        %v2198 = vsub.s32 %v2195, %v2197
        %v2199 = vrot.slane %v2185, %v2198
        %v2200 = vcombine.low %v2135, %v2151
        %v2201 = vcombine.high %v2135, %v2151
        %v2203 = vunpack.c.l.s4 1934713408
        %v2204 = vunpack.c.0.s8 %v2203
        %v2205 = vlaneseq
        %v2206 = vshrl.u32 %v2205, 7
        %v2207 = vsub.s32 %v2204, %v2206
        %v2208 = vrot.slane %v2200, %v2207
        %v2210 = vunpack.c.l.s4 1934713408
        %v2211 = vunpack.c.0.s8 %v2210
        %v2212 = vlaneseq
        %v2213 = vshrl.u32 %v2212, 7
        %v2214 = vsub.s32 %v2211, %v2213
        %v2215 = vrot.slane %v2201, %v2214
        %v2216 = vcombine.low %v2160, %v2176
        %v2217 = vcombine.high %v2160, %v2176
        %v2219 = vunpack.c.l.s4 1934713408
        %v2220 = vunpack.c.0.s8 %v2219
        %v2221 = vlaneseq
        %v2222 = vshrl.u32 %v2221, 7
        %v2223 = vsub.s32 %v2220, %v2222
        %v2224 = vrot.slane %v2216, %v2223
        %v2226 = vunpack.c.l.s4 1934713408
        %v2227 = vunpack.c.0.s8 %v2226
        %v2228 = vlaneseq
        %v2229 = vshrl.u32 %v2228, 7
        %v2230 = vsub.s32 %v2227, %v2229
        %v2231 = vrot.slane %v2217, %v2230
        %v2232 = vcombine.low %v2167, %v2183
        %v2233 = vcombine.high %v2167, %v2183
        %v2235 = vunpack.c.l.s4 1934713408
        %v2236 = vunpack.c.0.s8 %v2235
        %v2237 = vlaneseq
        %v2238 = vshrl.u32 %v2237, 7
        %v2239 = vsub.s32 %v2236, %v2238
        %v2240 = vrot.slane %v2232, %v2239
        %v2242 = vunpack.c.l.s4 1934713408
        %v2243 = vunpack.c.0.s8 %v2242
        %v2244 = vlaneseq
        %v2245 = vshrl.u32 %v2244, 7
        %v2246 = vsub.s32 %v2243, %v2245
        %v2247 = vrot.slane %v2233, %v2246
        %v2248 = vcombine.low %v2192, %v2224
        %v2249 = vcombine.high %v2192, %v2224
        %v2250 = vcombine.low %v2199, %v2231
        %v2251 = vcombine.high %v2199, %v2231
        %v2252 = vcombine.low %v2208, %v2240
        %v2253 = vcombine.high %v2208, %v2240
        %v2254 = vcombine.low %v2215, %v2247
        %v2255 = vcombine.high %v2215, %v2247
        %vm2256 = vcmask 64512
        %v2258 = vsel %vm2256, %v932, 0
        %v2261 = vsel %vm2256, %v1522, 0
        %2263 = vmatprep.subr.mxu0 0.0
        %2264 = vmatpush1.xpose.msra.mxu0 0.0
        %2265 = vmatprep.subr.mxu0 0.0
        %2266 = vmatpush1.xpose.msra.mxu0 0.0
        %2267 = vmatprep.subr.mxu0 0.0
        %2268 = vmatpush1.xpose.msra.mxu0 0.0
        %2269 = vmatprep.subr.mxu0 0.0
        %2270 = vmatpush1.xpose.msra.mxu0 0.0
        %2271 = vmatprep.subr.mxu0 0.0
        %2272 = vmatpush1.xpose.msra.mxu0 0.0
        %2273 = vmatprep.subr.mxu0 0.0
        %2274 = vmatpush1.xpose.msra.mxu0 0.0
        %2275 = vmatprep.subr.mxu0 0.0
        %2276 = vmatpush1.xpose.msra.mxu0 0.0
        %2277 = vmatprep.subr.mxu0 0.0
        %2278 = vmatpush1.xpose.msra.mxu0 0.0
        %2279 = vmatprep.subr.mxu0 0.0
        %2280 = vmatpush1.xpose.msra.mxu0 0.0
        %2281 = vmatprep.subr.mxu0 0.0
        %2282 = vmatpush1.xpose.msra.mxu0 0.0
        %2283 = vmatprep.subr.mxu0 0.0
        %2284 = vmatpush1.xpose.msra.mxu0 0.0
        %2285 = vmatprep.subr.mxu0 0.0
        %2286 = vmatpush1.xpose.msra.mxu0 0.0
        %2287 = vmatprep.subr.mxu0 0.0
        %2288 = vmatpush1.xpose.msra.mxu0 0.0
        %2289 = vmatprep.subr.mxu0 0.0
        %2290 = vmatpush1.xpose.msra.mxu0 0.0
        %2291 = vmatprep.subr.mxu0 0.0
        %2292 = vmatpush1.xpose.msra.mxu0 0.0
        %2293 = vmatprep.subr.mxu0 0.0
        %2294 = vmatpush1.xpose.msra.mxu0 %v2261
        %2295 = vmatprep.subr.mxu0 0.0
        %2296 = vmatpush2.xpose.msra.mxu0 0.0
        %2297 = vmatprep.subr.mxu0 0.0
        %2298 = vmatpush2.xpose.msra.mxu0 0.0
        %2299 = vmatprep.subr.mxu0 0.0
        %2300 = vmatpush2.xpose.msra.mxu0 0.0
        %2301 = vmatprep.subr.mxu0 0.0
        %2302 = vmatpush2.xpose.msra.mxu0 0.0
        %2303 = vmatprep.subr.mxu0 0.0
        %2304 = vmatpush2.xpose.msra.mxu0 0.0
        %2305 = vmatprep.subr.mxu0 0.0
        %2306 = vmatpush2.xpose.msra.mxu0 0.0
        %2307 = vmatprep.subr.mxu0 0.0
        %2308 = vmatpush2.xpose.msra.mxu0 0.0
        %2309 = vmatprep.subr.mxu0 0.0
        %2310 = vmatpush2.xpose.msra.mxu0 0.0
        %2311 = vmatprep.subr.mxu0 0.0
        %2312 = vmatpush2.xpose.msra.mxu0 0.0
        %2313 = vmatprep.subr.mxu0 0.0
        %2314 = vmatpush2.xpose.msra.mxu0 0.0
        %2315 = vmatprep.subr.mxu0 0.0
        %2316 = vmatpush2.xpose.msra.mxu0 0.0
        %2317 = vmatprep.subr.mxu0 0.0
        %2318 = vmatpush2.xpose.msra.mxu0 0.0
        %2319 = vmatprep.subr.mxu0 0.0
        %2320 = vmatpush2.xpose.msra.mxu0 0.0
        %2321 = vmatprep.subr.mxu0 0.0
        %2322 = vmatpush2.xpose.msra.mxu0 0.0
        %2323 = vmatprep.subr.mxu0 0.0
        %2324 = vmatpush2.xpose.msra.mxu0 0.0
        %2325 = vmatprep.subr.mxu0 0.0
        %2326 = vmatpush2.xpose.msra.mxu0 0.0
        %2327 = vmatprep.mubr.f32.mxu0 0.0
        %2328 = vmatmul.mubr.f32.gmra.mxu0 %v2258
        %v2329 = vpop.f32.mrf.mxu0
        %v2330 = vadd.f32 0.0, %v2329
        %v2331 = vpop.f32.mrf.mxu0
        %2332 = vdwg.mxu0
        %v2334 = vsel %vm2256, %v933, 0
        %v2337 = vsel %vm2256, %v1523, 0
        %2339 = vmatprep.subr.mxu0 0.0
        %2340 = vmatpush1.xpose.msra.mxu0 0.0
        %2341 = vmatprep.subr.mxu0 0.0
        %2342 = vmatpush1.xpose.msra.mxu0 0.0
        %2343 = vmatprep.subr.mxu0 0.0
        %2344 = vmatpush1.xpose.msra.mxu0 0.0
        %2345 = vmatprep.subr.mxu0 0.0
        %2346 = vmatpush1.xpose.msra.mxu0 0.0
        %2347 = vmatprep.subr.mxu0 0.0
        %2348 = vmatpush1.xpose.msra.mxu0 0.0
        %2349 = vmatprep.subr.mxu0 0.0
        %2350 = vmatpush1.xpose.msra.mxu0 0.0
        %2351 = vmatprep.subr.mxu0 0.0
        %2352 = vmatpush1.xpose.msra.mxu0 0.0
        %2353 = vmatprep.subr.mxu0 0.0
        %2354 = vmatpush1.xpose.msra.mxu0 0.0
        %2355 = vmatprep.subr.mxu0 0.0
        %2356 = vmatpush1.xpose.msra.mxu0 0.0
        %2357 = vmatprep.subr.mxu0 0.0
        %2358 = vmatpush1.xpose.msra.mxu0 0.0
        %2359 = vmatprep.subr.mxu0 0.0
        %2360 = vmatpush1.xpose.msra.mxu0 0.0
        %2361 = vmatprep.subr.mxu0 0.0
        %2362 = vmatpush1.xpose.msra.mxu0 0.0
        %2363 = vmatprep.subr.mxu0 0.0
        %2364 = vmatpush1.xpose.msra.mxu0 0.0
        %2365 = vmatprep.subr.mxu0 0.0
        %2366 = vmatpush1.xpose.msra.mxu0 0.0
        %2367 = vmatprep.subr.mxu0 0.0
        %2368 = vmatpush1.xpose.msra.mxu0 0.0
        %2369 = vmatprep.subr.mxu0 0.0
        %2370 = vmatpush1.xpose.msra.mxu0 %v2337
        %2371 = vmatprep.subr.mxu0 0.0
        %2372 = vmatpush2.xpose.msra.mxu0 0.0
        %2373 = vmatprep.subr.mxu0 0.0
        %2374 = vmatpush2.xpose.msra.mxu0 0.0
        %2375 = vmatprep.subr.mxu0 0.0
        %2376 = vmatpush2.xpose.msra.mxu0 0.0
        %2377 = vmatprep.subr.mxu0 0.0
        %2378 = vmatpush2.xpose.msra.mxu0 0.0
        %2379 = vmatprep.subr.mxu0 0.0
        %2380 = vmatpush2.xpose.msra.mxu0 0.0
        %2381 = vmatprep.subr.mxu0 0.0
        %2382 = vmatpush2.xpose.msra.mxu0 0.0
        %2383 = vmatprep.subr.mxu0 0.0
        %2384 = vmatpush2.xpose.msra.mxu0 0.0
        %2385 = vmatprep.subr.mxu0 0.0
        %2386 = vmatpush2.xpose.msra.mxu0 0.0
        %2387 = vmatprep.subr.mxu0 0.0
        %2388 = vmatpush2.xpose.msra.mxu0 0.0
        %2389 = vmatprep.subr.mxu0 0.0
        %2390 = vmatpush2.xpose.msra.mxu0 0.0
        %2391 = vmatprep.subr.mxu0 0.0
        %2392 = vmatpush2.xpose.msra.mxu0 0.0
        %2393 = vmatprep.subr.mxu0 0.0
        %2394 = vmatpush2.xpose.msra.mxu0 0.0
        %2395 = vmatprep.subr.mxu0 0.0
        %2396 = vmatpush2.xpose.msra.mxu0 0.0
        %2397 = vmatprep.subr.mxu0 0.0
        %2398 = vmatpush2.xpose.msra.mxu0 0.0
        %2399 = vmatprep.subr.mxu0 0.0
        %2400 = vmatpush2.xpose.msra.mxu0 0.0
        %2401 = vmatprep.subr.mxu0 0.0
        %2402 = vmatpush2.xpose.msra.mxu0 0.0
        %2403 = vmatprep.mubr.f32.mxu0 0.0
        %2404 = vmatmul.mubr.f32.gmra.mxu0 %v2334
        %v2405 = vpop.f32.mrf.mxu0
        %v2406 = vadd.f32 0.0, %v2405
        %v2407 = vpop.f32.mrf.mxu0
        %2408 = vdwg.mxu0
        %v2410 = vsel %vm2256, %v934, 0
        %v2413 = vsel %vm2256, %v1524, 0
        %2415 = vmatprep.subr.mxu0 0.0
        %2416 = vmatpush1.xpose.msra.mxu0 0.0
        %2417 = vmatprep.subr.mxu0 0.0
        %2418 = vmatpush1.xpose.msra.mxu0 0.0
        %2419 = vmatprep.subr.mxu0 0.0
        %2420 = vmatpush1.xpose.msra.mxu0 0.0
        %2421 = vmatprep.subr.mxu0 0.0
        %2422 = vmatpush1.xpose.msra.mxu0 0.0
        %2423 = vmatprep.subr.mxu0 0.0
        %2424 = vmatpush1.xpose.msra.mxu0 0.0
        %2425 = vmatprep.subr.mxu0 0.0
        %2426 = vmatpush1.xpose.msra.mxu0 0.0
        %2427 = vmatprep.subr.mxu0 0.0
        %2428 = vmatpush1.xpose.msra.mxu0 0.0
        %2429 = vmatprep.subr.mxu0 0.0
        %2430 = vmatpush1.xpose.msra.mxu0 0.0
        %2431 = vmatprep.subr.mxu0 0.0
        %2432 = vmatpush1.xpose.msra.mxu0 0.0
        %2433 = vmatprep.subr.mxu0 0.0
        %2434 = vmatpush1.xpose.msra.mxu0 0.0
        %2435 = vmatprep.subr.mxu0 0.0
        %2436 = vmatpush1.xpose.msra.mxu0 0.0
        %2437 = vmatprep.subr.mxu0 0.0
        %2438 = vmatpush1.xpose.msra.mxu0 0.0
        %2439 = vmatprep.subr.mxu0 0.0
        %2440 = vmatpush1.xpose.msra.mxu0 0.0
        %2441 = vmatprep.subr.mxu0 0.0
        %2442 = vmatpush1.xpose.msra.mxu0 0.0
        %2443 = vmatprep.subr.mxu0 0.0
        %2444 = vmatpush1.xpose.msra.mxu0 0.0
        %2445 = vmatprep.subr.mxu0 0.0
        %2446 = vmatpush1.xpose.msra.mxu0 %v2413
        %2447 = vmatprep.subr.mxu0 0.0
        %2448 = vmatpush2.xpose.msra.mxu0 0.0
        %2449 = vmatprep.subr.mxu0 0.0
        %2450 = vmatpush2.xpose.msra.mxu0 0.0
        %2451 = vmatprep.subr.mxu0 0.0
        %2452 = vmatpush2.xpose.msra.mxu0 0.0
        %2453 = vmatprep.subr.mxu0 0.0
        %2454 = vmatpush2.xpose.msra.mxu0 0.0
        %2455 = vmatprep.subr.mxu0 0.0
        %2456 = vmatpush2.xpose.msra.mxu0 0.0
        %2457 = vmatprep.subr.mxu0 0.0
        %2458 = vmatpush2.xpose.msra.mxu0 0.0
        %2459 = vmatprep.subr.mxu0 0.0
        %2460 = vmatpush2.xpose.msra.mxu0 0.0
        %2461 = vmatprep.subr.mxu0 0.0
        %2462 = vmatpush2.xpose.msra.mxu0 0.0
        %2463 = vmatprep.subr.mxu0 0.0
        %2464 = vmatpush2.xpose.msra.mxu0 0.0
        %2465 = vmatprep.subr.mxu0 0.0
        %2466 = vmatpush2.xpose.msra.mxu0 0.0
        %2467 = vmatprep.subr.mxu0 0.0
        %2468 = vmatpush2.xpose.msra.mxu0 0.0
        %2469 = vmatprep.subr.mxu0 0.0
        %2470 = vmatpush2.xpose.msra.mxu0 0.0
        %2471 = vmatprep.subr.mxu0 0.0
        %2472 = vmatpush2.xpose.msra.mxu0 0.0
        %2473 = vmatprep.subr.mxu0 0.0
        %2474 = vmatpush2.xpose.msra.mxu0 0.0
        %2475 = vmatprep.subr.mxu0 0.0
        %2476 = vmatpush2.xpose.msra.mxu0 0.0
        %2477 = vmatprep.subr.mxu0 0.0
        %2478 = vmatpush2.xpose.msra.mxu0 0.0
        %2479 = vmatprep.mubr.f32.mxu0 0.0
        %2480 = vmatmul.mubr.f32.gmra.mxu0 %v2410
        %v2481 = vpop.f32.mrf.mxu0
        %v2482 = vadd.f32 0.0, %v2481
        %v2483 = vpop.f32.mrf.mxu0
        %2484 = vdwg.mxu0
        %v2486 = vsel %vm2256, %v935, 0
        %v2489 = vsel %vm2256, %v1525, 0
        %2491 = vmatprep.subr.mxu0 0.0
        %2492 = vmatpush1.xpose.msra.mxu0 0.0
        %2493 = vmatprep.subr.mxu0 0.0
        %2494 = vmatpush1.xpose.msra.mxu0 0.0
        %2495 = vmatprep.subr.mxu0 0.0
        %2496 = vmatpush1.xpose.msra.mxu0 0.0
        %2497 = vmatprep.subr.mxu0 0.0
        %2498 = vmatpush1.xpose.msra.mxu0 0.0
        %2499 = vmatprep.subr.mxu0 0.0
        %2500 = vmatpush1.xpose.msra.mxu0 0.0
        %2501 = vmatprep.subr.mxu0 0.0
        %2502 = vmatpush1.xpose.msra.mxu0 0.0
        %2503 = vmatprep.subr.mxu0 0.0
        %2504 = vmatpush1.xpose.msra.mxu0 0.0
        %2505 = vmatprep.subr.mxu0 0.0
        %2506 = vmatpush1.xpose.msra.mxu0 0.0
        %2507 = vmatprep.subr.mxu0 0.0
        %2508 = vmatpush1.xpose.msra.mxu0 0.0
        %2509 = vmatprep.subr.mxu0 0.0
        %2510 = vmatpush1.xpose.msra.mxu0 0.0
        %2511 = vmatprep.subr.mxu0 0.0
        %2512 = vmatpush1.xpose.msra.mxu0 0.0
        %2513 = vmatprep.subr.mxu0 0.0
        %2514 = vmatpush1.xpose.msra.mxu0 0.0
        %2515 = vmatprep.subr.mxu0 0.0
        %2516 = vmatpush1.xpose.msra.mxu0 0.0
        %2517 = vmatprep.subr.mxu0 0.0
        %2518 = vmatpush1.xpose.msra.mxu0 0.0
        %2519 = vmatprep.subr.mxu0 0.0
        %2520 = vmatpush1.xpose.msra.mxu0 0.0
        %2521 = vmatprep.subr.mxu0 0.0
        %2522 = vmatpush1.xpose.msra.mxu0 %v2489
        %2523 = vmatprep.subr.mxu0 0.0
        %2524 = vmatpush2.xpose.msra.mxu0 0.0
        %2525 = vmatprep.subr.mxu0 0.0
        %2526 = vmatpush2.xpose.msra.mxu0 0.0
        %2527 = vmatprep.subr.mxu0 0.0
        %2528 = vmatpush2.xpose.msra.mxu0 0.0
        %2529 = vmatprep.subr.mxu0 0.0
        %2530 = vmatpush2.xpose.msra.mxu0 0.0
        %2531 = vmatprep.subr.mxu0 0.0
        %2532 = vmatpush2.xpose.msra.mxu0 0.0
        %2533 = vmatprep.subr.mxu0 0.0
        %2534 = vmatpush2.xpose.msra.mxu0 0.0
        %2535 = vmatprep.subr.mxu0 0.0
        %2536 = vmatpush2.xpose.msra.mxu0 0.0
        %2537 = vmatprep.subr.mxu0 0.0
        %2538 = vmatpush2.xpose.msra.mxu0 0.0
        %2539 = vmatprep.subr.mxu0 0.0
        %2540 = vmatpush2.xpose.msra.mxu0 0.0
        %2541 = vmatprep.subr.mxu0 0.0
        %2542 = vmatpush2.xpose.msra.mxu0 0.0
        %2543 = vmatprep.subr.mxu0 0.0
        %2544 = vmatpush2.xpose.msra.mxu0 0.0
        %2545 = vmatprep.subr.mxu0 0.0
        %2546 = vmatpush2.xpose.msra.mxu0 0.0
        %2547 = vmatprep.subr.mxu0 0.0
        %2548 = vmatpush2.xpose.msra.mxu0 0.0
        %2549 = vmatprep.subr.mxu0 0.0
        %2550 = vmatpush2.xpose.msra.mxu0 0.0
        %2551 = vmatprep.subr.mxu0 0.0
        %2552 = vmatpush2.xpose.msra.mxu0 0.0
        %2553 = vmatprep.subr.mxu0 0.0
        %2554 = vmatpush2.xpose.msra.mxu0 0.0
        %2555 = vmatprep.mubr.f32.mxu0 0.0
        %2556 = vmatmul.mubr.f32.gmra.mxu0 %v2486
        %v2557 = vpop.f32.mrf.mxu0
        %v2558 = vadd.f32 0.0, %v2557
        %v2559 = vpop.f32.mrf.mxu0
        %2560 = vdwg.mxu0
        %v2562 = vsel %vm2256, %v936, 0
        %v2565 = vsel %vm2256, %v1526, 0
        %2567 = vmatprep.subr.mxu0 0.0
        %2568 = vmatpush1.xpose.msra.mxu0 0.0
        %2569 = vmatprep.subr.mxu0 0.0
        %2570 = vmatpush1.xpose.msra.mxu0 0.0
        %2571 = vmatprep.subr.mxu0 0.0
        %2572 = vmatpush1.xpose.msra.mxu0 0.0
        %2573 = vmatprep.subr.mxu0 0.0
        %2574 = vmatpush1.xpose.msra.mxu0 0.0
        %2575 = vmatprep.subr.mxu0 0.0
        %2576 = vmatpush1.xpose.msra.mxu0 0.0
        %2577 = vmatprep.subr.mxu0 0.0
        %2578 = vmatpush1.xpose.msra.mxu0 0.0
        %2579 = vmatprep.subr.mxu0 0.0
        %2580 = vmatpush1.xpose.msra.mxu0 0.0
        %2581 = vmatprep.subr.mxu0 0.0
        %2582 = vmatpush1.xpose.msra.mxu0 0.0
        %2583 = vmatprep.subr.mxu0 0.0
        %2584 = vmatpush1.xpose.msra.mxu0 0.0
        %2585 = vmatprep.subr.mxu0 0.0
        %2586 = vmatpush1.xpose.msra.mxu0 0.0
        %2587 = vmatprep.subr.mxu0 0.0
        %2588 = vmatpush1.xpose.msra.mxu0 0.0
        %2589 = vmatprep.subr.mxu0 0.0
        %2590 = vmatpush1.xpose.msra.mxu0 0.0
        %2591 = vmatprep.subr.mxu0 0.0
        %2592 = vmatpush1.xpose.msra.mxu0 0.0
        %2593 = vmatprep.subr.mxu0 0.0
        %2594 = vmatpush1.xpose.msra.mxu0 0.0
        %2595 = vmatprep.subr.mxu0 0.0
        %2596 = vmatpush1.xpose.msra.mxu0 0.0
        %2597 = vmatprep.subr.mxu0 0.0
        %2598 = vmatpush1.xpose.msra.mxu0 %v2565
        %2599 = vmatprep.subr.mxu0 0.0
        %2600 = vmatpush2.xpose.msra.mxu0 0.0
        %2601 = vmatprep.subr.mxu0 0.0
        %2602 = vmatpush2.xpose.msra.mxu0 0.0
        %2603 = vmatprep.subr.mxu0 0.0
        %2604 = vmatpush2.xpose.msra.mxu0 0.0
        %2605 = vmatprep.subr.mxu0 0.0
        %2606 = vmatpush2.xpose.msra.mxu0 0.0
        %2607 = vmatprep.subr.mxu0 0.0
        %2608 = vmatpush2.xpose.msra.mxu0 0.0
        %2609 = vmatprep.subr.mxu0 0.0
        %2610 = vmatpush2.xpose.msra.mxu0 0.0
        %2611 = vmatprep.subr.mxu0 0.0
        %2612 = vmatpush2.xpose.msra.mxu0 0.0
        %2613 = vmatprep.subr.mxu0 0.0
        %2614 = vmatpush2.xpose.msra.mxu0 0.0
        %2615 = vmatprep.subr.mxu0 0.0
        %2616 = vmatpush2.xpose.msra.mxu0 0.0
        %2617 = vmatprep.subr.mxu0 0.0
        %2618 = vmatpush2.xpose.msra.mxu0 0.0
        %2619 = vmatprep.subr.mxu0 0.0
        %2620 = vmatpush2.xpose.msra.mxu0 0.0
        %2621 = vmatprep.subr.mxu0 0.0
        %2622 = vmatpush2.xpose.msra.mxu0 0.0
        %2623 = vmatprep.subr.mxu0 0.0
        %2624 = vmatpush2.xpose.msra.mxu0 0.0
        %2625 = vmatprep.subr.mxu0 0.0
        %2626 = vmatpush2.xpose.msra.mxu0 0.0
        %2627 = vmatprep.subr.mxu0 0.0
        %2628 = vmatpush2.xpose.msra.mxu0 0.0
        %2629 = vmatprep.subr.mxu0 0.0
        %2630 = vmatpush2.xpose.msra.mxu0 0.0
        %2631 = vmatprep.mubr.f32.mxu0 0.0
        %2632 = vmatmul.mubr.f32.gmra.mxu0 %v2562
        %v2633 = vpop.f32.mrf.mxu0
        %v2634 = vadd.f32 0.0, %v2633
        %v2635 = vpop.f32.mrf.mxu0
        %2636 = vdwg.mxu0
        %v2638 = vsel %vm2256, %v937, 0
        %v2641 = vsel %vm2256, %v1527, 0
        %2643 = vmatprep.subr.mxu0 0.0
        %2644 = vmatpush1.xpose.msra.mxu0 0.0
        %2645 = vmatprep.subr.mxu0 0.0
        %2646 = vmatpush1.xpose.msra.mxu0 0.0
        %2647 = vmatprep.subr.mxu0 0.0
        %2648 = vmatpush1.xpose.msra.mxu0 0.0
        %2649 = vmatprep.subr.mxu0 0.0
        %2650 = vmatpush1.xpose.msra.mxu0 0.0
        %2651 = vmatprep.subr.mxu0 0.0
        %2652 = vmatpush1.xpose.msra.mxu0 0.0
        %2653 = vmatprep.subr.mxu0 0.0
        %2654 = vmatpush1.xpose.msra.mxu0 0.0
        %2655 = vmatprep.subr.mxu0 0.0
        %2656 = vmatpush1.xpose.msra.mxu0 0.0
        %2657 = vmatprep.subr.mxu0 0.0
        %2658 = vmatpush1.xpose.msra.mxu0 0.0
        %2659 = vmatprep.subr.mxu0 0.0
        %2660 = vmatpush1.xpose.msra.mxu0 0.0
        %2661 = vmatprep.subr.mxu0 0.0
        %2662 = vmatpush1.xpose.msra.mxu0 0.0
        %2663 = vmatprep.subr.mxu0 0.0
        %2664 = vmatpush1.xpose.msra.mxu0 0.0
        %2665 = vmatprep.subr.mxu0 0.0
        %2666 = vmatpush1.xpose.msra.mxu0 0.0
        %2667 = vmatprep.subr.mxu0 0.0
        %2668 = vmatpush1.xpose.msra.mxu0 0.0
        %2669 = vmatprep.subr.mxu0 0.0
        %2670 = vmatpush1.xpose.msra.mxu0 0.0
        %2671 = vmatprep.subr.mxu0 0.0
        %2672 = vmatpush1.xpose.msra.mxu0 0.0
        %2673 = vmatprep.subr.mxu0 0.0
        %2674 = vmatpush1.xpose.msra.mxu0 %v2641
        %2675 = vmatprep.subr.mxu0 0.0
        %2676 = vmatpush2.xpose.msra.mxu0 0.0
        %2677 = vmatprep.subr.mxu0 0.0
        %2678 = vmatpush2.xpose.msra.mxu0 0.0
        %2679 = vmatprep.subr.mxu0 0.0
        %2680 = vmatpush2.xpose.msra.mxu0 0.0
        %2681 = vmatprep.subr.mxu0 0.0
        %2682 = vmatpush2.xpose.msra.mxu0 0.0
        %2683 = vmatprep.subr.mxu0 0.0
        %2684 = vmatpush2.xpose.msra.mxu0 0.0
        %2685 = vmatprep.subr.mxu0 0.0
        %2686 = vmatpush2.xpose.msra.mxu0 0.0
        %2687 = vmatprep.subr.mxu0 0.0
        %2688 = vmatpush2.xpose.msra.mxu0 0.0
        %2689 = vmatprep.subr.mxu0 0.0
        %2690 = vmatpush2.xpose.msra.mxu0 0.0
        %2691 = vmatprep.subr.mxu0 0.0
        %2692 = vmatpush2.xpose.msra.mxu0 0.0
        %2693 = vmatprep.subr.mxu0 0.0
        %2694 = vmatpush2.xpose.msra.mxu0 0.0
        %2695 = vmatprep.subr.mxu0 0.0
        %2696 = vmatpush2.xpose.msra.mxu0 0.0
        %2697 = vmatprep.subr.mxu0 0.0
        %2698 = vmatpush2.xpose.msra.mxu0 0.0
        %2699 = vmatprep.subr.mxu0 0.0
        %2700 = vmatpush2.xpose.msra.mxu0 0.0
        %2701 = vmatprep.subr.mxu0 0.0
        %2702 = vmatpush2.xpose.msra.mxu0 0.0
        %2703 = vmatprep.subr.mxu0 0.0
        %2704 = vmatpush2.xpose.msra.mxu0 0.0
        %2705 = vmatprep.subr.mxu0 0.0
        %2706 = vmatpush2.xpose.msra.mxu0 0.0
        %2707 = vmatprep.mubr.f32.mxu0 0.0
        %2708 = vmatmul.mubr.f32.gmra.mxu0 %v2638
        %v2709 = vpop.f32.mrf.mxu0
        %v2710 = vadd.f32 0.0, %v2709
        %v2711 = vpop.f32.mrf.mxu0
        %2712 = vdwg.mxu0
        %v2714 = vsel %vm2256, %v938, 0
        %v2717 = vsel %vm2256, %v1528, 0
        %2719 = vmatprep.subr.mxu0 0.0
        %2720 = vmatpush1.xpose.msra.mxu0 0.0
        %2721 = vmatprep.subr.mxu0 0.0
        %2722 = vmatpush1.xpose.msra.mxu0 0.0
        %2723 = vmatprep.subr.mxu0 0.0
        %2724 = vmatpush1.xpose.msra.mxu0 0.0
        %2725 = vmatprep.subr.mxu0 0.0
        %2726 = vmatpush1.xpose.msra.mxu0 0.0
        %2727 = vmatprep.subr.mxu0 0.0
        %2728 = vmatpush1.xpose.msra.mxu0 0.0
        %2729 = vmatprep.subr.mxu0 0.0
        %2730 = vmatpush1.xpose.msra.mxu0 0.0
        %2731 = vmatprep.subr.mxu0 0.0
        %2732 = vmatpush1.xpose.msra.mxu0 0.0
        %2733 = vmatprep.subr.mxu0 0.0
        %2734 = vmatpush1.xpose.msra.mxu0 0.0
        %2735 = vmatprep.subr.mxu0 0.0
        %2736 = vmatpush1.xpose.msra.mxu0 0.0
        %2737 = vmatprep.subr.mxu0 0.0
        %2738 = vmatpush1.xpose.msra.mxu0 0.0
        %2739 = vmatprep.subr.mxu0 0.0
        %2740 = vmatpush1.xpose.msra.mxu0 0.0
        %2741 = vmatprep.subr.mxu0 0.0
        %2742 = vmatpush1.xpose.msra.mxu0 0.0
        %2743 = vmatprep.subr.mxu0 0.0
        %2744 = vmatpush1.xpose.msra.mxu0 0.0
        %2745 = vmatprep.subr.mxu0 0.0
        %2746 = vmatpush1.xpose.msra.mxu0 0.0
        %2747 = vmatprep.subr.mxu0 0.0
        %2748 = vmatpush1.xpose.msra.mxu0 0.0
        %2749 = vmatprep.subr.mxu0 0.0
        %2750 = vmatpush1.xpose.msra.mxu0 %v2717
        %2751 = vmatprep.subr.mxu0 0.0
        %2752 = vmatpush2.xpose.msra.mxu0 0.0
        %2753 = vmatprep.subr.mxu0 0.0
        %2754 = vmatpush2.xpose.msra.mxu0 0.0
        %2755 = vmatprep.subr.mxu0 0.0
        %2756 = vmatpush2.xpose.msra.mxu0 0.0
        %2757 = vmatprep.subr.mxu0 0.0
        %2758 = vmatpush2.xpose.msra.mxu0 0.0
        %2759 = vmatprep.subr.mxu0 0.0
        %2760 = vmatpush2.xpose.msra.mxu0 0.0
        %2761 = vmatprep.subr.mxu0 0.0
        %2762 = vmatpush2.xpose.msra.mxu0 0.0
        %2763 = vmatprep.subr.mxu0 0.0
        %2764 = vmatpush2.xpose.msra.mxu0 0.0
        %2765 = vmatprep.subr.mxu0 0.0
        %2766 = vmatpush2.xpose.msra.mxu0 0.0
        %2767 = vmatprep.subr.mxu0 0.0
        %2768 = vmatpush2.xpose.msra.mxu0 0.0
        %2769 = vmatprep.subr.mxu0 0.0
        %2770 = vmatpush2.xpose.msra.mxu0 0.0
        %2771 = vmatprep.subr.mxu0 0.0
        %2772 = vmatpush2.xpose.msra.mxu0 0.0
        %2773 = vmatprep.subr.mxu0 0.0
        %2774 = vmatpush2.xpose.msra.mxu0 0.0
        %2775 = vmatprep.subr.mxu0 0.0
        %2776 = vmatpush2.xpose.msra.mxu0 0.0
        %2777 = vmatprep.subr.mxu0 0.0
        %2778 = vmatpush2.xpose.msra.mxu0 0.0
        %2779 = vmatprep.subr.mxu0 0.0
        %2780 = vmatpush2.xpose.msra.mxu0 0.0
        %2781 = vmatprep.subr.mxu0 0.0
        %2782 = vmatpush2.xpose.msra.mxu0 0.0
        %2783 = vmatprep.mubr.f32.mxu0 0.0
        %2784 = vmatmul.mubr.f32.gmra.mxu0 %v2714
        %v2785 = vpop.f32.mrf.mxu0
        %v2786 = vadd.f32 0.0, %v2785
        %v2787 = vpop.f32.mrf.mxu0
        %2788 = vdwg.mxu0
        %v2790 = vsel %vm2256, %v939, 0
        %v2793 = vsel %vm2256, %v1529, 0
        %2795 = vmatprep.subr.mxu0 0.0
        %2796 = vmatpush1.xpose.msra.mxu0 0.0
        %2797 = vmatprep.subr.mxu0 0.0
        %2798 = vmatpush1.xpose.msra.mxu0 0.0
        %2799 = vmatprep.subr.mxu0 0.0
        %2800 = vmatpush1.xpose.msra.mxu0 0.0
        %2801 = vmatprep.subr.mxu0 0.0
        %2802 = vmatpush1.xpose.msra.mxu0 0.0
        %2803 = vmatprep.subr.mxu0 0.0
        %2804 = vmatpush1.xpose.msra.mxu0 0.0
        %2805 = vmatprep.subr.mxu0 0.0
        %2806 = vmatpush1.xpose.msra.mxu0 0.0
        %2807 = vmatprep.subr.mxu0 0.0
        %2808 = vmatpush1.xpose.msra.mxu0 0.0
        %2809 = vmatprep.subr.mxu0 0.0
        %2810 = vmatpush1.xpose.msra.mxu0 0.0
        %2811 = vmatprep.subr.mxu0 0.0
        %2812 = vmatpush1.xpose.msra.mxu0 0.0
        %2813 = vmatprep.subr.mxu0 0.0
        %2814 = vmatpush1.xpose.msra.mxu0 0.0
        %2815 = vmatprep.subr.mxu0 0.0
        %2816 = vmatpush1.xpose.msra.mxu0 0.0
        %2817 = vmatprep.subr.mxu0 0.0
        %2818 = vmatpush1.xpose.msra.mxu0 0.0
        %2819 = vmatprep.subr.mxu0 0.0
        %2820 = vmatpush1.xpose.msra.mxu0 0.0
        %2821 = vmatprep.subr.mxu0 0.0
        %2822 = vmatpush1.xpose.msra.mxu0 0.0
        %2823 = vmatprep.subr.mxu0 0.0
        %2824 = vmatpush1.xpose.msra.mxu0 0.0
        %2825 = vmatprep.subr.mxu0 0.0
        %2826 = vmatpush1.xpose.msra.mxu0 %v2793
        %2827 = vmatprep.subr.mxu0 0.0
        %2828 = vmatpush2.xpose.msra.mxu0 0.0
        %2829 = vmatprep.subr.mxu0 0.0
        %2830 = vmatpush2.xpose.msra.mxu0 0.0
        %2831 = vmatprep.subr.mxu0 0.0
        %2832 = vmatpush2.xpose.msra.mxu0 0.0
        %2833 = vmatprep.subr.mxu0 0.0
        %2834 = vmatpush2.xpose.msra.mxu0 0.0
        %2835 = vmatprep.subr.mxu0 0.0
        %2836 = vmatpush2.xpose.msra.mxu0 0.0
        %2837 = vmatprep.subr.mxu0 0.0
        %2838 = vmatpush2.xpose.msra.mxu0 0.0
        %2839 = vmatprep.subr.mxu0 0.0
        %2840 = vmatpush2.xpose.msra.mxu0 0.0
        %2841 = vmatprep.subr.mxu0 0.0
        %2842 = vmatpush2.xpose.msra.mxu0 0.0
        %2843 = vmatprep.subr.mxu0 0.0
        %2844 = vmatpush2.xpose.msra.mxu0 0.0
        %2845 = vmatprep.subr.mxu0 0.0
        %2846 = vmatpush2.xpose.msra.mxu0 0.0
        %2847 = vmatprep.subr.mxu0 0.0
        %2848 = vmatpush2.xpose.msra.mxu0 0.0
        %2849 = vmatprep.subr.mxu0 0.0
        %2850 = vmatpush2.xpose.msra.mxu0 0.0
        %2851 = vmatprep.subr.mxu0 0.0
        %2852 = vmatpush2.xpose.msra.mxu0 0.0
        %2853 = vmatprep.subr.mxu0 0.0
        %2854 = vmatpush2.xpose.msra.mxu0 0.0
        %2855 = vmatprep.subr.mxu0 0.0
        %2856 = vmatpush2.xpose.msra.mxu0 0.0
        %2857 = vmatprep.subr.mxu0 0.0
        %2858 = vmatpush2.xpose.msra.mxu0 0.0
        %2859 = vmatprep.mubr.f32.mxu0 0.0
        %2860 = vmatmul.mubr.f32.gmra.mxu0 %v2790
        %v2861 = vpop.f32.mrf.mxu0
        %v2862 = vadd.f32 0.0, %v2861
        %v2863 = vpop.f32.mrf.mxu0
        %2864 = vdwg.mxu0
        %v2866 = vsel %vm2256, %v1068, 0
        %v2869 = vsel %vm2256, %v1658, 0
        %2871 = vmatprep.subr.mxu0 0.0
        %2872 = vmatpush1.xpose.msra.mxu0 0.0
        %2873 = vmatprep.subr.mxu0 0.0
        %2874 = vmatpush1.xpose.msra.mxu0 0.0
        %2875 = vmatprep.subr.mxu0 0.0
        %2876 = vmatpush1.xpose.msra.mxu0 0.0
        %2877 = vmatprep.subr.mxu0 0.0
        %2878 = vmatpush1.xpose.msra.mxu0 0.0
        %2879 = vmatprep.subr.mxu0 0.0
        %2880 = vmatpush1.xpose.msra.mxu0 0.0
        %2881 = vmatprep.subr.mxu0 0.0
        %2882 = vmatpush1.xpose.msra.mxu0 0.0
        %2883 = vmatprep.subr.mxu0 0.0
        %2884 = vmatpush1.xpose.msra.mxu0 0.0
        %2885 = vmatprep.subr.mxu0 0.0
        %2886 = vmatpush1.xpose.msra.mxu0 0.0
        %2887 = vmatprep.subr.mxu0 0.0
        %2888 = vmatpush1.xpose.msra.mxu0 0.0
        %2889 = vmatprep.subr.mxu0 0.0
        %2890 = vmatpush1.xpose.msra.mxu0 0.0
        %2891 = vmatprep.subr.mxu0 0.0
        %2892 = vmatpush1.xpose.msra.mxu0 0.0
        %2893 = vmatprep.subr.mxu0 0.0
        %2894 = vmatpush1.xpose.msra.mxu0 0.0
        %2895 = vmatprep.subr.mxu0 0.0
        %2896 = vmatpush1.xpose.msra.mxu0 0.0
        %2897 = vmatprep.subr.mxu0 0.0
        %2898 = vmatpush1.xpose.msra.mxu0 0.0
        %2899 = vmatprep.subr.mxu0 0.0
        %2900 = vmatpush1.xpose.msra.mxu0 0.0
        %2901 = vmatprep.subr.mxu0 0.0
        %2902 = vmatpush1.xpose.msra.mxu0 %v2869
        %2903 = vmatprep.subr.mxu0 0.0
        %2904 = vmatpush2.xpose.msra.mxu0 0.0
        %2905 = vmatprep.subr.mxu0 0.0
        %2906 = vmatpush2.xpose.msra.mxu0 0.0
        %2907 = vmatprep.subr.mxu0 0.0
        %2908 = vmatpush2.xpose.msra.mxu0 0.0
        %2909 = vmatprep.subr.mxu0 0.0
        %2910 = vmatpush2.xpose.msra.mxu0 0.0
        %2911 = vmatprep.subr.mxu0 0.0
        %2912 = vmatpush2.xpose.msra.mxu0 0.0
        %2913 = vmatprep.subr.mxu0 0.0
        %2914 = vmatpush2.xpose.msra.mxu0 0.0
        %2915 = vmatprep.subr.mxu0 0.0
        %2916 = vmatpush2.xpose.msra.mxu0 0.0
        %2917 = vmatprep.subr.mxu0 0.0
        %2918 = vmatpush2.xpose.msra.mxu0 0.0
        %2919 = vmatprep.subr.mxu0 0.0
        %2920 = vmatpush2.xpose.msra.mxu0 0.0
        %2921 = vmatprep.subr.mxu0 0.0
        %2922 = vmatpush2.xpose.msra.mxu0 0.0
        %2923 = vmatprep.subr.mxu0 0.0
        %2924 = vmatpush2.xpose.msra.mxu0 0.0
        %2925 = vmatprep.subr.mxu0 0.0
        %2926 = vmatpush2.xpose.msra.mxu0 0.0
        %2927 = vmatprep.subr.mxu0 0.0
        %2928 = vmatpush2.xpose.msra.mxu0 0.0
        %2929 = vmatprep.subr.mxu0 0.0
        %2930 = vmatpush2.xpose.msra.mxu0 0.0
        %2931 = vmatprep.subr.mxu0 0.0
        %2932 = vmatpush2.xpose.msra.mxu0 0.0
        %2933 = vmatprep.subr.mxu0 0.0
        %2934 = vmatpush2.xpose.msra.mxu0 0.0
        %2935 = vmatprep.mubr.f32.mxu0 0.0
        %2936 = vmatmul.mubr.f32.gmra.mxu0 %v2866
        %v2937 = vpop.f32.mrf.mxu0
        %v2938 = vadd.f32 0.0, %v2937
        %v2939 = vpop.f32.mrf.mxu0
        %2940 = vdwg.mxu0
        %v2942 = vsel %vm2256, %v1069, 0
        %v2945 = vsel %vm2256, %v1659, 0
        %2947 = vmatprep.subr.mxu0 0.0
        %2948 = vmatpush1.xpose.msra.mxu0 0.0
        %2949 = vmatprep.subr.mxu0 0.0
        %2950 = vmatpush1.xpose.msra.mxu0 0.0
        %2951 = vmatprep.subr.mxu0 0.0
        %2952 = vmatpush1.xpose.msra.mxu0 0.0
        %2953 = vmatprep.subr.mxu0 0.0
        %2954 = vmatpush1.xpose.msra.mxu0 0.0
        %2955 = vmatprep.subr.mxu0 0.0
        %2956 = vmatpush1.xpose.msra.mxu0 0.0
        %2957 = vmatprep.subr.mxu0 0.0
        %2958 = vmatpush1.xpose.msra.mxu0 0.0
        %2959 = vmatprep.subr.mxu0 0.0
        %2960 = vmatpush1.xpose.msra.mxu0 0.0
        %2961 = vmatprep.subr.mxu0 0.0
        %2962 = vmatpush1.xpose.msra.mxu0 0.0
        %2963 = vmatprep.subr.mxu0 0.0
        %2964 = vmatpush1.xpose.msra.mxu0 0.0
        %2965 = vmatprep.subr.mxu0 0.0
        %2966 = vmatpush1.xpose.msra.mxu0 0.0
        %2967 = vmatprep.subr.mxu0 0.0
        %2968 = vmatpush1.xpose.msra.mxu0 0.0
        %2969 = vmatprep.subr.mxu0 0.0
        %2970 = vmatpush1.xpose.msra.mxu0 0.0
        %2971 = vmatprep.subr.mxu0 0.0
        %2972 = vmatpush1.xpose.msra.mxu0 0.0
        %2973 = vmatprep.subr.mxu0 0.0
        %2974 = vmatpush1.xpose.msra.mxu0 0.0
        %2975 = vmatprep.subr.mxu0 0.0
        %2976 = vmatpush1.xpose.msra.mxu0 0.0
        %2977 = vmatprep.subr.mxu0 0.0
        %2978 = vmatpush1.xpose.msra.mxu0 %v2945
        %2979 = vmatprep.subr.mxu0 0.0
        %2980 = vmatpush2.xpose.msra.mxu0 0.0
        %2981 = vmatprep.subr.mxu0 0.0
        %2982 = vmatpush2.xpose.msra.mxu0 0.0
        %2983 = vmatprep.subr.mxu0 0.0
        %2984 = vmatpush2.xpose.msra.mxu0 0.0
        %2985 = vmatprep.subr.mxu0 0.0
        %2986 = vmatpush2.xpose.msra.mxu0 0.0
        %2987 = vmatprep.subr.mxu0 0.0
        %2988 = vmatpush2.xpose.msra.mxu0 0.0
        %2989 = vmatprep.subr.mxu0 0.0
        %2990 = vmatpush2.xpose.msra.mxu0 0.0
        %2991 = vmatprep.subr.mxu0 0.0
        %2992 = vmatpush2.xpose.msra.mxu0 0.0
        %2993 = vmatprep.subr.mxu0 0.0
        %2994 = vmatpush2.xpose.msra.mxu0 0.0
        %2995 = vmatprep.subr.mxu0 0.0
        %2996 = vmatpush2.xpose.msra.mxu0 0.0
        %2997 = vmatprep.subr.mxu0 0.0
        %2998 = vmatpush2.xpose.msra.mxu0 0.0
        %2999 = vmatprep.subr.mxu0 0.0
        %3000 = vmatpush2.xpose.msra.mxu0 0.0
        %3001 = vmatprep.subr.mxu0 0.0
        %3002 = vmatpush2.xpose.msra.mxu0 0.0
        %3003 = vmatprep.subr.mxu0 0.0
        %3004 = vmatpush2.xpose.msra.mxu0 0.0
        %3005 = vmatprep.subr.mxu0 0.0
        %3006 = vmatpush2.xpose.msra.mxu0 0.0
        %3007 = vmatprep.subr.mxu0 0.0
        %3008 = vmatpush2.xpose.msra.mxu0 0.0
        %3009 = vmatprep.subr.mxu0 0.0
        %3010 = vmatpush2.xpose.msra.mxu0 0.0
        %3011 = vmatprep.mubr.f32.mxu0 0.0
        %3012 = vmatmul.mubr.f32.gmra.mxu0 %v2942
        %v3013 = vpop.f32.mrf.mxu0
        %v3014 = vadd.f32 0.0, %v3013
        %v3015 = vpop.f32.mrf.mxu0
        %3016 = vdwg.mxu0
        %v3018 = vsel %vm2256, %v1070, 0
        %v3021 = vsel %vm2256, %v1660, 0
        %3023 = vmatprep.subr.mxu0 0.0
        %3024 = vmatpush1.xpose.msra.mxu0 0.0
        %3025 = vmatprep.subr.mxu0 0.0
        %3026 = vmatpush1.xpose.msra.mxu0 0.0
        %3027 = vmatprep.subr.mxu0 0.0
        %3028 = vmatpush1.xpose.msra.mxu0 0.0
        %3029 = vmatprep.subr.mxu0 0.0
        %3030 = vmatpush1.xpose.msra.mxu0 0.0
        %3031 = vmatprep.subr.mxu0 0.0
        %3032 = vmatpush1.xpose.msra.mxu0 0.0
        %3033 = vmatprep.subr.mxu0 0.0
        %3034 = vmatpush1.xpose.msra.mxu0 0.0
        %3035 = vmatprep.subr.mxu0 0.0
        %3036 = vmatpush1.xpose.msra.mxu0 0.0
        %3037 = vmatprep.subr.mxu0 0.0
        %3038 = vmatpush1.xpose.msra.mxu0 0.0
        %3039 = vmatprep.subr.mxu0 0.0
        %3040 = vmatpush1.xpose.msra.mxu0 0.0
        %3041 = vmatprep.subr.mxu0 0.0
        %3042 = vmatpush1.xpose.msra.mxu0 0.0
        %3043 = vmatprep.subr.mxu0 0.0
        %3044 = vmatpush1.xpose.msra.mxu0 0.0
        %3045 = vmatprep.subr.mxu0 0.0
        %3046 = vmatpush1.xpose.msra.mxu0 0.0
        %3047 = vmatprep.subr.mxu0 0.0
        %3048 = vmatpush1.xpose.msra.mxu0 0.0
        %3049 = vmatprep.subr.mxu0 0.0
        %3050 = vmatpush1.xpose.msra.mxu0 0.0
        %3051 = vmatprep.subr.mxu0 0.0
        %3052 = vmatpush1.xpose.msra.mxu0 0.0
        %3053 = vmatprep.subr.mxu0 0.0
        %3054 = vmatpush1.xpose.msra.mxu0 %v3021
        %3055 = vmatprep.subr.mxu0 0.0
        %3056 = vmatpush2.xpose.msra.mxu0 0.0
        %3057 = vmatprep.subr.mxu0 0.0
        %3058 = vmatpush2.xpose.msra.mxu0 0.0
        %3059 = vmatprep.subr.mxu0 0.0
        %3060 = vmatpush2.xpose.msra.mxu0 0.0
        %3061 = vmatprep.subr.mxu0 0.0
        %3062 = vmatpush2.xpose.msra.mxu0 0.0
        %3063 = vmatprep.subr.mxu0 0.0
        %3064 = vmatpush2.xpose.msra.mxu0 0.0
        %3065 = vmatprep.subr.mxu0 0.0
        %3066 = vmatpush2.xpose.msra.mxu0 0.0
        %3067 = vmatprep.subr.mxu0 0.0
        %3068 = vmatpush2.xpose.msra.mxu0 0.0
        %3069 = vmatprep.subr.mxu0 0.0
        %3070 = vmatpush2.xpose.msra.mxu0 0.0
        %3071 = vmatprep.subr.mxu0 0.0
        %3072 = vmatpush2.xpose.msra.mxu0 0.0
        %3073 = vmatprep.subr.mxu0 0.0
        %3074 = vmatpush2.xpose.msra.mxu0 0.0
        %3075 = vmatprep.subr.mxu0 0.0
        %3076 = vmatpush2.xpose.msra.mxu0 0.0
        %3077 = vmatprep.subr.mxu0 0.0
        %3078 = vmatpush2.xpose.msra.mxu0 0.0
        %3079 = vmatprep.subr.mxu0 0.0
        %3080 = vmatpush2.xpose.msra.mxu0 0.0
        %3081 = vmatprep.subr.mxu0 0.0
        %3082 = vmatpush2.xpose.msra.mxu0 0.0
        %3083 = vmatprep.subr.mxu0 0.0
        %3084 = vmatpush2.xpose.msra.mxu0 0.0
        %3085 = vmatprep.subr.mxu0 0.0
        %3086 = vmatpush2.xpose.msra.mxu0 0.0
        %3087 = vmatprep.mubr.f32.mxu0 0.0
        %3088 = vmatmul.mubr.f32.gmra.mxu0 %v3018
        %v3089 = vpop.f32.mrf.mxu0
        %v3090 = vadd.f32 0.0, %v3089
        %v3091 = vpop.f32.mrf.mxu0
        %3092 = vdwg.mxu0
        %v3094 = vsel %vm2256, %v1071, 0
        %v3097 = vsel %vm2256, %v1661, 0
        %3099 = vmatprep.subr.mxu0 0.0
        %3100 = vmatpush1.xpose.msra.mxu0 0.0
        %3101 = vmatprep.subr.mxu0 0.0
        %3102 = vmatpush1.xpose.msra.mxu0 0.0
        %3103 = vmatprep.subr.mxu0 0.0
        %3104 = vmatpush1.xpose.msra.mxu0 0.0
        %3105 = vmatprep.subr.mxu0 0.0
        %3106 = vmatpush1.xpose.msra.mxu0 0.0
        %3107 = vmatprep.subr.mxu0 0.0
        %3108 = vmatpush1.xpose.msra.mxu0 0.0
        %3109 = vmatprep.subr.mxu0 0.0
        %3110 = vmatpush1.xpose.msra.mxu0 0.0
        %3111 = vmatprep.subr.mxu0 0.0
        %3112 = vmatpush1.xpose.msra.mxu0 0.0
        %3113 = vmatprep.subr.mxu0 0.0
        %3114 = vmatpush1.xpose.msra.mxu0 0.0
        %3115 = vmatprep.subr.mxu0 0.0
        %3116 = vmatpush1.xpose.msra.mxu0 0.0
        %3117 = vmatprep.subr.mxu0 0.0
        %3118 = vmatpush1.xpose.msra.mxu0 0.0
        %3119 = vmatprep.subr.mxu0 0.0
        %3120 = vmatpush1.xpose.msra.mxu0 0.0
        %3121 = vmatprep.subr.mxu0 0.0
        %3122 = vmatpush1.xpose.msra.mxu0 0.0
        %3123 = vmatprep.subr.mxu0 0.0
        %3124 = vmatpush1.xpose.msra.mxu0 0.0
        %3125 = vmatprep.subr.mxu0 0.0
        %3126 = vmatpush1.xpose.msra.mxu0 0.0
        %3127 = vmatprep.subr.mxu0 0.0
        %3128 = vmatpush1.xpose.msra.mxu0 0.0
        %3129 = vmatprep.subr.mxu0 0.0
        %3130 = vmatpush1.xpose.msra.mxu0 %v3097
        %3131 = vmatprep.subr.mxu0 0.0
        %3132 = vmatpush2.xpose.msra.mxu0 0.0
        %3133 = vmatprep.subr.mxu0 0.0
        %3134 = vmatpush2.xpose.msra.mxu0 0.0
        %3135 = vmatprep.subr.mxu0 0.0
        %3136 = vmatpush2.xpose.msra.mxu0 0.0
        %3137 = vmatprep.subr.mxu0 0.0
        %3138 = vmatpush2.xpose.msra.mxu0 0.0
        %3139 = vmatprep.subr.mxu0 0.0
        %3140 = vmatpush2.xpose.msra.mxu0 0.0
        %3141 = vmatprep.subr.mxu0 0.0
        %3142 = vmatpush2.xpose.msra.mxu0 0.0
        %3143 = vmatprep.subr.mxu0 0.0
        %3144 = vmatpush2.xpose.msra.mxu0 0.0
        %3145 = vmatprep.subr.mxu0 0.0
        %3146 = vmatpush2.xpose.msra.mxu0 0.0
        %3147 = vmatprep.subr.mxu0 0.0
        %3148 = vmatpush2.xpose.msra.mxu0 0.0
        %3149 = vmatprep.subr.mxu0 0.0
        %3150 = vmatpush2.xpose.msra.mxu0 0.0
        %3151 = vmatprep.subr.mxu0 0.0
        %3152 = vmatpush2.xpose.msra.mxu0 0.0
        %3153 = vmatprep.subr.mxu0 0.0
        %3154 = vmatpush2.xpose.msra.mxu0 0.0
        %3155 = vmatprep.subr.mxu0 0.0
        %3156 = vmatpush2.xpose.msra.mxu0 0.0
        %3157 = vmatprep.subr.mxu0 0.0
        %3158 = vmatpush2.xpose.msra.mxu0 0.0
        %3159 = vmatprep.subr.mxu0 0.0
        %3160 = vmatpush2.xpose.msra.mxu0 0.0
        %3161 = vmatprep.subr.mxu0 0.0
        %3162 = vmatpush2.xpose.msra.mxu0 0.0
        %3163 = vmatprep.mubr.f32.mxu0 0.0
        %3164 = vmatmul.mubr.f32.gmra.mxu0 %v3094
        %v3165 = vpop.f32.mrf.mxu0
        %v3166 = vadd.f32 0.0, %v3165
        %v3167 = vpop.f32.mrf.mxu0
        %3168 = vdwg.mxu0
        %v3170 = vsel %vm2256, %v1072, 0
        %v3173 = vsel %vm2256, %v1662, 0
        %3175 = vmatprep.subr.mxu0 0.0
        %3176 = vmatpush1.xpose.msra.mxu0 0.0
        %3177 = vmatprep.subr.mxu0 0.0
        %3178 = vmatpush1.xpose.msra.mxu0 0.0
        %3179 = vmatprep.subr.mxu0 0.0
        %3180 = vmatpush1.xpose.msra.mxu0 0.0
        %3181 = vmatprep.subr.mxu0 0.0
        %3182 = vmatpush1.xpose.msra.mxu0 0.0
        %3183 = vmatprep.subr.mxu0 0.0
        %3184 = vmatpush1.xpose.msra.mxu0 0.0
        %3185 = vmatprep.subr.mxu0 0.0
        %3186 = vmatpush1.xpose.msra.mxu0 0.0
        %3187 = vmatprep.subr.mxu0 0.0
        %3188 = vmatpush1.xpose.msra.mxu0 0.0
        %3189 = vmatprep.subr.mxu0 0.0
        %3190 = vmatpush1.xpose.msra.mxu0 0.0
        %3191 = vmatprep.subr.mxu0 0.0
        %3192 = vmatpush1.xpose.msra.mxu0 0.0
        %3193 = vmatprep.subr.mxu0 0.0
        %3194 = vmatpush1.xpose.msra.mxu0 0.0
        %3195 = vmatprep.subr.mxu0 0.0
        %3196 = vmatpush1.xpose.msra.mxu0 0.0
        %3197 = vmatprep.subr.mxu0 0.0
        %3198 = vmatpush1.xpose.msra.mxu0 0.0
        %3199 = vmatprep.subr.mxu0 0.0
        %3200 = vmatpush1.xpose.msra.mxu0 0.0
        %3201 = vmatprep.subr.mxu0 0.0
        %3202 = vmatpush1.xpose.msra.mxu0 0.0
        %3203 = vmatprep.subr.mxu0 0.0
        %3204 = vmatpush1.xpose.msra.mxu0 0.0
        %3205 = vmatprep.subr.mxu0 0.0
        %3206 = vmatpush1.xpose.msra.mxu0 %v3173
        %3207 = vmatprep.subr.mxu0 0.0
        %3208 = vmatpush2.xpose.msra.mxu0 0.0
        %3209 = vmatprep.subr.mxu0 0.0
        %3210 = vmatpush2.xpose.msra.mxu0 0.0
        %3211 = vmatprep.subr.mxu0 0.0
        %3212 = vmatpush2.xpose.msra.mxu0 0.0
        %3213 = vmatprep.subr.mxu0 0.0
        %3214 = vmatpush2.xpose.msra.mxu0 0.0
        %3215 = vmatprep.subr.mxu0 0.0
        %3216 = vmatpush2.xpose.msra.mxu0 0.0
        %3217 = vmatprep.subr.mxu0 0.0
        %3218 = vmatpush2.xpose.msra.mxu0 0.0
        %3219 = vmatprep.subr.mxu0 0.0
        %3220 = vmatpush2.xpose.msra.mxu0 0.0
        %3221 = vmatprep.subr.mxu0 0.0
        %3222 = vmatpush2.xpose.msra.mxu0 0.0
        %3223 = vmatprep.subr.mxu0 0.0
        %3224 = vmatpush2.xpose.msra.mxu0 0.0
        %3225 = vmatprep.subr.mxu0 0.0
        %3226 = vmatpush2.xpose.msra.mxu0 0.0
        %3227 = vmatprep.subr.mxu0 0.0
        %3228 = vmatpush2.xpose.msra.mxu0 0.0
        %3229 = vmatprep.subr.mxu0 0.0
        %3230 = vmatpush2.xpose.msra.mxu0 0.0
        %3231 = vmatprep.subr.mxu0 0.0
        %3232 = vmatpush2.xpose.msra.mxu0 0.0
        %3233 = vmatprep.subr.mxu0 0.0
        %3234 = vmatpush2.xpose.msra.mxu0 0.0
        %3235 = vmatprep.subr.mxu0 0.0
        %3236 = vmatpush2.xpose.msra.mxu0 0.0
        %3237 = vmatprep.subr.mxu0 0.0
        %3238 = vmatpush2.xpose.msra.mxu0 0.0
        %3239 = vmatprep.mubr.f32.mxu0 0.0
        %3240 = vmatmul.mubr.f32.gmra.mxu0 %v3170
        %v3241 = vpop.f32.mrf.mxu0
        %v3242 = vadd.f32 0.0, %v3241
        %v3243 = vpop.f32.mrf.mxu0
        %3244 = vdwg.mxu0
        %v3246 = vsel %vm2256, %v1073, 0
        %v3249 = vsel %vm2256, %v1663, 0
        %3251 = vmatprep.subr.mxu0 0.0
        %3252 = vmatpush1.xpose.msra.mxu0 0.0
        %3253 = vmatprep.subr.mxu0 0.0
        %3254 = vmatpush1.xpose.msra.mxu0 0.0
        %3255 = vmatprep.subr.mxu0 0.0
        %3256 = vmatpush1.xpose.msra.mxu0 0.0
        %3257 = vmatprep.subr.mxu0 0.0
        %3258 = vmatpush1.xpose.msra.mxu0 0.0
        %3259 = vmatprep.subr.mxu0 0.0
        %3260 = vmatpush1.xpose.msra.mxu0 0.0
        %3261 = vmatprep.subr.mxu0 0.0
        %3262 = vmatpush1.xpose.msra.mxu0 0.0
        %3263 = vmatprep.subr.mxu0 0.0
        %3264 = vmatpush1.xpose.msra.mxu0 0.0
        %3265 = vmatprep.subr.mxu0 0.0
        %3266 = vmatpush1.xpose.msra.mxu0 0.0
        %3267 = vmatprep.subr.mxu0 0.0
        %3268 = vmatpush1.xpose.msra.mxu0 0.0
        %3269 = vmatprep.subr.mxu0 0.0
        %3270 = vmatpush1.xpose.msra.mxu0 0.0
        %3271 = vmatprep.subr.mxu0 0.0
        %3272 = vmatpush1.xpose.msra.mxu0 0.0
        %3273 = vmatprep.subr.mxu0 0.0
        %3274 = vmatpush1.xpose.msra.mxu0 0.0
        %3275 = vmatprep.subr.mxu0 0.0
        %3276 = vmatpush1.xpose.msra.mxu0 0.0
        %3277 = vmatprep.subr.mxu0 0.0
        %3278 = vmatpush1.xpose.msra.mxu0 0.0
        %3279 = vmatprep.subr.mxu0 0.0
        %3280 = vmatpush1.xpose.msra.mxu0 0.0
        %3281 = vmatprep.subr.mxu0 0.0
        %3282 = vmatpush1.xpose.msra.mxu0 %v3249
        %3283 = vmatprep.subr.mxu0 0.0
        %3284 = vmatpush2.xpose.msra.mxu0 0.0
        %3285 = vmatprep.subr.mxu0 0.0
        %3286 = vmatpush2.xpose.msra.mxu0 0.0
        %3287 = vmatprep.subr.mxu0 0.0
        %3288 = vmatpush2.xpose.msra.mxu0 0.0
        %3289 = vmatprep.subr.mxu0 0.0
        %3290 = vmatpush2.xpose.msra.mxu0 0.0
        %3291 = vmatprep.subr.mxu0 0.0
        %3292 = vmatpush2.xpose.msra.mxu0 0.0
        %3293 = vmatprep.subr.mxu0 0.0
        %3294 = vmatpush2.xpose.msra.mxu0 0.0
        %3295 = vmatprep.subr.mxu0 0.0
        %3296 = vmatpush2.xpose.msra.mxu0 0.0
        %3297 = vmatprep.subr.mxu0 0.0
        %3298 = vmatpush2.xpose.msra.mxu0 0.0
        %3299 = vmatprep.subr.mxu0 0.0
        %3300 = vmatpush2.xpose.msra.mxu0 0.0
        %3301 = vmatprep.subr.mxu0 0.0
        %3302 = vmatpush2.xpose.msra.mxu0 0.0
        %3303 = vmatprep.subr.mxu0 0.0
        %3304 = vmatpush2.xpose.msra.mxu0 0.0
        %3305 = vmatprep.subr.mxu0 0.0
        %3306 = vmatpush2.xpose.msra.mxu0 0.0
        %3307 = vmatprep.subr.mxu0 0.0
        %3308 = vmatpush2.xpose.msra.mxu0 0.0
        %3309 = vmatprep.subr.mxu0 0.0
        %3310 = vmatpush2.xpose.msra.mxu0 0.0
        %3311 = vmatprep.subr.mxu0 0.0
        %3312 = vmatpush2.xpose.msra.mxu0 0.0
        %3313 = vmatprep.subr.mxu0 0.0
        %3314 = vmatpush2.xpose.msra.mxu0 0.0
        %3315 = vmatprep.mubr.f32.mxu0 0.0
        %3316 = vmatmul.mubr.f32.gmra.mxu0 %v3246
        %v3317 = vpop.f32.mrf.mxu0
        %v3318 = vadd.f32 0.0, %v3317
        %v3319 = vpop.f32.mrf.mxu0
        %3320 = vdwg.mxu0
        %v3322 = vsel %vm2256, %v1074, 0
        %v3325 = vsel %vm2256, %v1664, 0
        %3327 = vmatprep.subr.mxu0 0.0
        %3328 = vmatpush1.xpose.msra.mxu0 0.0
        %3329 = vmatprep.subr.mxu0 0.0
        %3330 = vmatpush1.xpose.msra.mxu0 0.0
        %3331 = vmatprep.subr.mxu0 0.0
        %3332 = vmatpush1.xpose.msra.mxu0 0.0
        %3333 = vmatprep.subr.mxu0 0.0
        %3334 = vmatpush1.xpose.msra.mxu0 0.0
        %3335 = vmatprep.subr.mxu0 0.0
        %3336 = vmatpush1.xpose.msra.mxu0 0.0
        %3337 = vmatprep.subr.mxu0 0.0
        %3338 = vmatpush1.xpose.msra.mxu0 0.0
        %3339 = vmatprep.subr.mxu0 0.0
        %3340 = vmatpush1.xpose.msra.mxu0 0.0
        %3341 = vmatprep.subr.mxu0 0.0
        %3342 = vmatpush1.xpose.msra.mxu0 0.0
        %3343 = vmatprep.subr.mxu0 0.0
        %3344 = vmatpush1.xpose.msra.mxu0 0.0
        %3345 = vmatprep.subr.mxu0 0.0
        %3346 = vmatpush1.xpose.msra.mxu0 0.0
        %3347 = vmatprep.subr.mxu0 0.0
        %3348 = vmatpush1.xpose.msra.mxu0 0.0
        %3349 = vmatprep.subr.mxu0 0.0
        %3350 = vmatpush1.xpose.msra.mxu0 0.0
        %3351 = vmatprep.subr.mxu0 0.0
        %3352 = vmatpush1.xpose.msra.mxu0 0.0
        %3353 = vmatprep.subr.mxu0 0.0
        %3354 = vmatpush1.xpose.msra.mxu0 0.0
        %3355 = vmatprep.subr.mxu0 0.0
        %3356 = vmatpush1.xpose.msra.mxu0 0.0
        %3357 = vmatprep.subr.mxu0 0.0
        %3358 = vmatpush1.xpose.msra.mxu0 %v3325
        %3359 = vmatprep.subr.mxu0 0.0
        %3360 = vmatpush2.xpose.msra.mxu0 0.0
        %3361 = vmatprep.subr.mxu0 0.0
        %3362 = vmatpush2.xpose.msra.mxu0 0.0
        %3363 = vmatprep.subr.mxu0 0.0
        %3364 = vmatpush2.xpose.msra.mxu0 0.0
        %3365 = vmatprep.subr.mxu0 0.0
        %3366 = vmatpush2.xpose.msra.mxu0 0.0
        %3367 = vmatprep.subr.mxu0 0.0
        %3368 = vmatpush2.xpose.msra.mxu0 0.0
        %3369 = vmatprep.subr.mxu0 0.0
        %3370 = vmatpush2.xpose.msra.mxu0 0.0
        %3371 = vmatprep.subr.mxu0 0.0
        %3372 = vmatpush2.xpose.msra.mxu0 0.0
        %3373 = vmatprep.subr.mxu0 0.0
        %3374 = vmatpush2.xpose.msra.mxu0 0.0
        %3375 = vmatprep.subr.mxu0 0.0
        %3376 = vmatpush2.xpose.msra.mxu0 0.0
        %3377 = vmatprep.subr.mxu0 0.0
        %3378 = vmatpush2.xpose.msra.mxu0 0.0
        %3379 = vmatprep.subr.mxu0 0.0
        %3380 = vmatpush2.xpose.msra.mxu0 0.0
        %3381 = vmatprep.subr.mxu0 0.0
        %3382 = vmatpush2.xpose.msra.mxu0 0.0
        %3383 = vmatprep.subr.mxu0 0.0
        %3384 = vmatpush2.xpose.msra.mxu0 0.0
        %3385 = vmatprep.subr.mxu0 0.0
        %3386 = vmatpush2.xpose.msra.mxu0 0.0
        %3387 = vmatprep.subr.mxu0 0.0
        %3388 = vmatpush2.xpose.msra.mxu0 0.0
        %3389 = vmatprep.subr.mxu0 0.0
        %3390 = vmatpush2.xpose.msra.mxu0 0.0
        %3391 = vmatprep.mubr.f32.mxu0 0.0
        %3392 = vmatmul.mubr.f32.gmra.mxu0 %v3322
        %v3393 = vpop.f32.mrf.mxu0
        %v3394 = vadd.f32 0.0, %v3393
        %v3395 = vpop.f32.mrf.mxu0
        %3396 = vdwg.mxu0
        %v3398 = vsel %vm2256, %v1075, 0
        %v3401 = vsel %vm2256, %v1665, 0
        %3403 = vmatprep.subr.mxu0 0.0
        %3404 = vmatpush1.xpose.msra.mxu0 0.0
        %3405 = vmatprep.subr.mxu0 0.0
        %3406 = vmatpush1.xpose.msra.mxu0 0.0
        %3407 = vmatprep.subr.mxu0 0.0
        %3408 = vmatpush1.xpose.msra.mxu0 0.0
        %3409 = vmatprep.subr.mxu0 0.0
        %3410 = vmatpush1.xpose.msra.mxu0 0.0
        %3411 = vmatprep.subr.mxu0 0.0
        %3412 = vmatpush1.xpose.msra.mxu0 0.0
        %3413 = vmatprep.subr.mxu0 0.0
        %3414 = vmatpush1.xpose.msra.mxu0 0.0
        %3415 = vmatprep.subr.mxu0 0.0
        %3416 = vmatpush1.xpose.msra.mxu0 0.0
        %3417 = vmatprep.subr.mxu0 0.0
        %3418 = vmatpush1.xpose.msra.mxu0 0.0
        %3419 = vmatprep.subr.mxu0 0.0
        %3420 = vmatpush1.xpose.msra.mxu0 0.0
        %3421 = vmatprep.subr.mxu0 0.0
        %3422 = vmatpush1.xpose.msra.mxu0 0.0
        %3423 = vmatprep.subr.mxu0 0.0
        %3424 = vmatpush1.xpose.msra.mxu0 0.0
        %3425 = vmatprep.subr.mxu0 0.0
        %3426 = vmatpush1.xpose.msra.mxu0 0.0
        %3427 = vmatprep.subr.mxu0 0.0
        %3428 = vmatpush1.xpose.msra.mxu0 0.0
        %3429 = vmatprep.subr.mxu0 0.0
        %3430 = vmatpush1.xpose.msra.mxu0 0.0
        %3431 = vmatprep.subr.mxu0 0.0
        %3432 = vmatpush1.xpose.msra.mxu0 0.0
        %3433 = vmatprep.subr.mxu0 0.0
        %3434 = vmatpush1.xpose.msra.mxu0 %v3401
        %3435 = vmatprep.subr.mxu0 0.0
        %3436 = vmatpush2.xpose.msra.mxu0 0.0
        %3437 = vmatprep.subr.mxu0 0.0
        %3438 = vmatpush2.xpose.msra.mxu0 0.0
        %3439 = vmatprep.subr.mxu0 0.0
        %3440 = vmatpush2.xpose.msra.mxu0 0.0
        %3441 = vmatprep.subr.mxu0 0.0
        %3442 = vmatpush2.xpose.msra.mxu0 0.0
        %3443 = vmatprep.subr.mxu0 0.0
        %3444 = vmatpush2.xpose.msra.mxu0 0.0
        %3445 = vmatprep.subr.mxu0 0.0
        %3446 = vmatpush2.xpose.msra.mxu0 0.0
        %3447 = vmatprep.subr.mxu0 0.0
        %3448 = vmatpush2.xpose.msra.mxu0 0.0
        %3449 = vmatprep.subr.mxu0 0.0
        %3450 = vmatpush2.xpose.msra.mxu0 0.0
        %3451 = vmatprep.subr.mxu0 0.0
        %3452 = vmatpush2.xpose.msra.mxu0 0.0
        %3453 = vmatprep.subr.mxu0 0.0
        %3454 = vmatpush2.xpose.msra.mxu0 0.0
        %3455 = vmatprep.subr.mxu0 0.0
        %3456 = vmatpush2.xpose.msra.mxu0 0.0
        %3457 = vmatprep.subr.mxu0 0.0
        %3458 = vmatpush2.xpose.msra.mxu0 0.0
        %3459 = vmatprep.subr.mxu0 0.0
        %3460 = vmatpush2.xpose.msra.mxu0 0.0
        %3461 = vmatprep.subr.mxu0 0.0
        %3462 = vmatpush2.xpose.msra.mxu0 0.0
        %3463 = vmatprep.subr.mxu0 0.0
        %3464 = vmatpush2.xpose.msra.mxu0 0.0
        %3465 = vmatprep.subr.mxu0 0.0
        %3466 = vmatpush2.xpose.msra.mxu0 0.0
        %3467 = vmatprep.mubr.f32.mxu0 0.0
        %3468 = vmatmul.mubr.f32.gmra.mxu0 %v3398
        %v3469 = vpop.f32.mrf.mxu0
        %v3470 = vadd.f32 0.0, %v3469
        %v3471 = vpop.f32.mrf.mxu0
        %3472 = vdwg.mxu0
        %v3473 = vsel %vm2256, %v2330, -inf
        %3474 = vmax.xlane.f32.xlu0 %v3473
        %v3475 = vpop.xlane.xlu0 %3474
        %v3476 = vsel %vm2256, %v2406, -inf
        %3477 = vmax.xlane.f32.xlu0 %v3476
        %v3478 = vpop.xlane.xlu0 %3477
        %v3479 = vsel %vm2256, %v2482, -inf
        %3480 = vmax.xlane.f32.xlu0 %v3479
        %v3481 = vpop.xlane.xlu0 %3480
        %v3482 = vsel %vm2256, %v2558, -inf
        %3483 = vmax.xlane.f32.xlu0 %v3482
        %v3484 = vpop.xlane.xlu0 %3483
        %v3485 = vsel %vm2256, %v2634, -inf
        %3486 = vmax.xlane.f32.xlu0 %v3485
        %v3487 = vpop.xlane.xlu0 %3486
        %v3488 = vsel %vm2256, %v2710, -inf
        %3489 = vmax.xlane.f32.xlu0 %v3488
        %v3490 = vpop.xlane.xlu0 %3489
        %v3491 = vsel %vm2256, %v2786, -inf
        %3492 = vmax.xlane.f32.xlu0 %v3491
        %v3493 = vpop.xlane.xlu0 %3492
        %v3494 = vsel %vm2256, %v2862, -inf
        %3495 = vmax.xlane.f32.xlu0 %v3494
        %v3496 = vpop.xlane.xlu0 %3495
        %v3497 = vsel %vm2256, %v2938, -inf
        %3498 = vmax.xlane.f32.xlu0 %v3497
        %v3499 = vpop.xlane.xlu0 %3498
        %v3500 = vsel %vm2256, %v3014, -inf
        %3501 = vmax.xlane.f32.xlu0 %v3500
        %v3502 = vpop.xlane.xlu0 %3501
        %v3503 = vsel %vm2256, %v3090, -inf
        %3504 = vmax.xlane.f32.xlu0 %v3503
        %v3505 = vpop.xlane.xlu0 %3504
        %v3506 = vsel %vm2256, %v3166, -inf
        %3507 = vmax.xlane.f32.xlu0 %v3506
        %v3508 = vpop.xlane.xlu0 %3507
        %v3509 = vsel %vm2256, %v3242, -inf
        %3510 = vmax.xlane.f32.xlu0 %v3509
        %v3511 = vpop.xlane.xlu0 %3510
        %v3512 = vsel %vm2256, %v3318, -inf
        %3513 = vmax.xlane.f32.xlu0 %v3512
        %v3514 = vpop.xlane.xlu0 %3513
        %v3515 = vsel %vm2256, %v3394, -inf
        %3516 = vmax.xlane.f32.xlu0 %v3515
        %v3517 = vpop.xlane.xlu0 %3516
        %v3518 = vsel %vm2256, %v3470, -inf
        %3519 = vmax.xlane.f32.xlu0 %v3518
        %v3520 = vpop.xlane.xlu0 %3519
        %v3521 = vsub.f32 %v2330, %v3475
        %v3522 = vsub.f32 %v2406, %v3478
        %v3523 = vsub.f32 %v2482, %v3481
        %v3524 = vsub.f32 %v2558, %v3484
        %v3525 = vsub.f32 %v2634, %v3487
        %v3526 = vsub.f32 %v2710, %v3490
        %v3527 = vsub.f32 %v2786, %v3493
        %v3528 = vsub.f32 %v2862, %v3496
        %v3529 = vsub.f32 %v2938, %v3499
        %v3530 = vsub.f32 %v3014, %v3502
        %v3531 = vsub.f32 %v3090, %v3505
        %v3532 = vsub.f32 %v3166, %v3508
        %v3533 = vsub.f32 %v3242, %v3511
        %v3534 = vsub.f32 %v3318, %v3514
        %v3535 = vsub.f32 %v3394, %v3517
        %v3536 = vsub.f32 %v3470, %v3520
        %v3537 = vmul.f32 %v3521, 1.442695
        %v3538 = vpow.pop %v3537
        %v3539 = vmul.f32 %v3522, 1.442695
        %v3540 = vpow.pop %v3539
        %v3541 = vmul.f32 %v3523, 1.442695
        %v3542 = vpow.pop %v3541
        %v3543 = vmul.f32 %v3524, 1.442695
        %v3544 = vpow.pop %v3543
        %v3545 = vmul.f32 %v3525, 1.442695
        %v3546 = vpow.pop %v3545
        %v3547 = vmul.f32 %v3526, 1.442695
        %v3548 = vpow.pop %v3547
        %v3549 = vmul.f32 %v3527, 1.442695
        %v3550 = vpow.pop %v3549
        %v3551 = vmul.f32 %v3528, 1.442695
        %v3552 = vpow.pop %v3551
        %v3553 = vmul.f32 %v3529, 1.442695
        %v3554 = vpow.pop %v3553
        %v3555 = vmul.f32 %v3530, 1.442695
        %v3556 = vpow.pop %v3555
        %v3557 = vmul.f32 %v3531, 1.442695
        %v3558 = vpow.pop %v3557
        %v3559 = vmul.f32 %v3532, 1.442695
        %v3560 = vpow.pop %v3559
        %v3561 = vmul.f32 %v3533, 1.442695
        %v3562 = vpow.pop %v3561
        %v3563 = vmul.f32 %v3534, 1.442695
        %v3564 = vpow.pop %v3563
        %v3565 = vmul.f32 %v3535, 1.442695
        %v3566 = vpow.pop %v3565
        %v3567 = vmul.f32 %v3536, 1.442695
        %v3568 = vpow.pop %v3567
        %v3569 = vsel %vm2256, %v3538, 0.0
        %3570 = vadd.xlane.f32.xlu0 %v3569
        %v3571 = vpop.xlane.xlu0 %3570
        %v3572 = vsel %vm2256, %v3540, 0.0
        %3573 = vadd.xlane.f32.xlu0 %v3572
        %v3574 = vpop.xlane.xlu0 %3573
        %v3575 = vsel %vm2256, %v3542, 0.0
        %3576 = vadd.xlane.f32.xlu0 %v3575
        %v3577 = vpop.xlane.xlu0 %3576
        %v3578 = vsel %vm2256, %v3544, 0.0
        %3579 = vadd.xlane.f32.xlu0 %v3578
        %v3580 = vpop.xlane.xlu0 %3579
        %v3581 = vsel %vm2256, %v3546, 0.0
        %3582 = vadd.xlane.f32.xlu0 %v3581
        %v3583 = vpop.xlane.xlu0 %3582
        %v3584 = vsel %vm2256, %v3548, 0.0
        %3585 = vadd.xlane.f32.xlu0 %v3584
        %v3586 = vpop.xlane.xlu0 %3585
        %v3587 = vsel %vm2256, %v3550, 0.0
        %3588 = vadd.xlane.f32.xlu0 %v3587
        %v3589 = vpop.xlane.xlu0 %3588
        %v3590 = vsel %vm2256, %v3552, 0.0
        %3591 = vadd.xlane.f32.xlu0 %v3590
        %v3592 = vpop.xlane.xlu0 %3591
        %v3593 = vsel %vm2256, %v3554, 0.0
        %3594 = vadd.xlane.f32.xlu0 %v3593
        %v3595 = vpop.xlane.xlu0 %3594
        %v3596 = vsel %vm2256, %v3556, 0.0
        %3597 = vadd.xlane.f32.xlu0 %v3596
        %v3598 = vpop.xlane.xlu0 %3597
        %v3599 = vsel %vm2256, %v3558, 0.0
        %3600 = vadd.xlane.f32.xlu0 %v3599
        %v3601 = vpop.xlane.xlu0 %3600
        %v3602 = vsel %vm2256, %v3560, 0.0
        %3603 = vadd.xlane.f32.xlu0 %v3602
        %v3604 = vpop.xlane.xlu0 %3603
        %v3605 = vsel %vm2256, %v3562, 0.0
        %3606 = vadd.xlane.f32.xlu0 %v3605
        %v3607 = vpop.xlane.xlu0 %3606
        %v3608 = vsel %vm2256, %v3564, 0.0
        %3609 = vadd.xlane.f32.xlu0 %v3608
        %v3610 = vpop.xlane.xlu0 %3609
        %v3611 = vsel %vm2256, %v3566, 0.0
        %3612 = vadd.xlane.f32.xlu0 %v3611
        %v3613 = vpop.xlane.xlu0 %3612
        %v3614 = vsel %vm2256, %v3568, 0.0
        %3615 = vadd.xlane.f32.xlu0 %v3614
        %v3616 = vpop.xlane.xlu0 %3615
        %v3617 = vrcp.pop %v3571
        %v3618 = vrcp.pop %v3574
        %v3619 = vrcp.pop %v3577
        %v3620 = vrcp.pop %v3580
        %v3621 = vrcp.pop %v3583
        %v3622 = vrcp.pop %v3586
        %v3623 = vrcp.pop %v3589
        %v3624 = vrcp.pop %v3592
        %v3625 = vrcp.pop %v3595
        %v3626 = vrcp.pop %v3598
        %v3627 = vrcp.pop %v3601
        %v3628 = vrcp.pop %v3604
        %v3629 = vrcp.pop %v3607
        %v3630 = vrcp.pop %v3610
        %v3631 = vrcp.pop %v3613
        %v3632 = vrcp.pop %v3616
        %v3633 = vmul.f32 %v3538, %v3617
        %v3634 = vmul.f32 %v3540, %v3618
        %v3635 = vmul.f32 %v3542, %v3619
        %v3636 = vmul.f32 %v3544, %v3620
        %v3637 = vmul.f32 %v3546, %v3621
        %v3638 = vmul.f32 %v3548, %v3622
        %v3639 = vmul.f32 %v3550, %v3623
        %v3640 = vmul.f32 %v3552, %v3624
        %v3641 = vmul.f32 %v3554, %v3625
        %v3642 = vmul.f32 %v3556, %v3626
        %v3643 = vmul.f32 %v3558, %v3627
        %v3644 = vmul.f32 %v3560, %v3628
        %v3645 = vmul.f32 %v3562, %v3629
        %v3646 = vmul.f32 %v3564, %v3630
        %v3647 = vmul.f32 %v3566, %v3631
        %v3648 = vmul.f32 %v3568, %v3632
        %v3650 = vsel %vm2256, %v3633, 0
        %3652 = vmatprep.subr.mxu0 0.0
        %3653 = vmatpush1.msra.mxu0 0.0
        %3654 = vmatprep.subr.mxu0 0.0
        %3655 = vmatpush1.msra.mxu0 0.0
        %3656 = vmatprep.subr.mxu0 0.0
        %3657 = vmatpush1.msra.mxu0 0.0
        %3658 = vmatprep.subr.mxu0 0.0
        %3659 = vmatpush1.msra.mxu0 0.0
        %3660 = vmatprep.subr.mxu0 0.0
        %3661 = vmatpush1.msra.mxu0 0.0
        %3662 = vmatprep.subr.mxu0 0.0
        %3663 = vmatpush1.msra.mxu0 0.0
        %3664 = vmatprep.subr.mxu0 0.0
        %3665 = vmatpush1.msra.mxu0 0.0
        %3666 = vmatprep.subr.mxu0 0.0
        %3667 = vmatpush1.msra.mxu0 0.0
        %3668 = vmatprep.subr.mxu0 0.0
        %3669 = vmatpush1.msra.mxu0 0.0
        %3670 = vmatprep.subr.mxu0 0.0
        %3671 = vmatpush1.msra.mxu0 0.0
        %3672 = vmatprep.subr.mxu0 0.0
        %3673 = vmatpush1.msra.mxu0 0.0
        %3674 = vmatprep.subr.mxu0 0.0
        %3675 = vmatpush1.msra.mxu0 0.0
        %3676 = vmatprep.subr.mxu0 0.0
        %3677 = vmatpush1.msra.mxu0 0.0
        %3678 = vmatprep.subr.mxu0 0.0
        %3679 = vmatpush1.msra.mxu0 0.0
        %3680 = vmatprep.subr.mxu0 0.0
        %3681 = vmatpush1.msra.mxu0 0.0
        %3682 = vmatprep.subr.mxu0 0.0
        %3683 = vmatpush1.msra.mxu0 %v2112
        %3684 = vmatprep.subr.mxu0 0.0
        %3685 = vmatpush2.msra.mxu0 0.0
        %3686 = vmatprep.subr.mxu0 0.0
        %3687 = vmatpush2.msra.mxu0 0.0
        %3688 = vmatprep.subr.mxu0 0.0
        %3689 = vmatpush2.msra.mxu0 0.0
        %3690 = vmatprep.subr.mxu0 0.0
        %3691 = vmatpush2.msra.mxu0 0.0
        %3692 = vmatprep.subr.mxu0 0.0
        %3693 = vmatpush2.msra.mxu0 0.0
        %3694 = vmatprep.subr.mxu0 0.0
        %3695 = vmatpush2.msra.mxu0 0.0
        %3696 = vmatprep.subr.mxu0 0.0
        %3697 = vmatpush2.msra.mxu0 0.0
        %3698 = vmatprep.subr.mxu0 0.0
        %3699 = vmatpush2.msra.mxu0 0.0
        %3700 = vmatprep.subr.mxu0 0.0
        %3701 = vmatpush2.msra.mxu0 0.0
        %3702 = vmatprep.subr.mxu0 0.0
        %3703 = vmatpush2.msra.mxu0 0.0
        %3704 = vmatprep.subr.mxu0 0.0
        %3705 = vmatpush2.msra.mxu0 0.0
        %3706 = vmatprep.subr.mxu0 0.0
        %3707 = vmatpush2.msra.mxu0 0.0
        %3708 = vmatprep.subr.mxu0 0.0
        %3709 = vmatpush2.msra.mxu0 0.0
        %3710 = vmatprep.subr.mxu0 0.0
        %3711 = vmatpush2.msra.mxu0 0.0
        %3712 = vmatprep.subr.mxu0 0.0
        %3713 = vmatpush2.msra.mxu0 0.0
        %3714 = vmatprep.subr.mxu0 0.0
        %3715 = vmatpush2.msra.mxu0 0.0
        %3716 = vmatprep.mubr.f32.mxu0 0.0
        %3717 = vmatmul.mubr.f32.gmra.mxu0 %v3650
        %v3718 = vpop.f32.mrf.mxu0
        %v3719 = vadd.f32 0.0, %v3718
        %v3720 = vpop.f32.mrf.mxu0
        %3721 = vdwg.mxu0
        %v3723 = vsel %vm2256, %v3634, 0
        %3725 = vmatprep.subr.mxu0 0.0
        %3726 = vmatpush1.msra.mxu0 0.0
        %3727 = vmatprep.subr.mxu0 0.0
        %3728 = vmatpush1.msra.mxu0 0.0
        %3729 = vmatprep.subr.mxu0 0.0
        %3730 = vmatpush1.msra.mxu0 0.0
        %3731 = vmatprep.subr.mxu0 0.0
        %3732 = vmatpush1.msra.mxu0 0.0
        %3733 = vmatprep.subr.mxu0 0.0
        %3734 = vmatpush1.msra.mxu0 0.0
        %3735 = vmatprep.subr.mxu0 0.0
        %3736 = vmatpush1.msra.mxu0 0.0
        %3737 = vmatprep.subr.mxu0 0.0
        %3738 = vmatpush1.msra.mxu0 0.0
        %3739 = vmatprep.subr.mxu0 0.0
        %3740 = vmatpush1.msra.mxu0 0.0
        %3741 = vmatprep.subr.mxu0 0.0
        %3742 = vmatpush1.msra.mxu0 0.0
        %3743 = vmatprep.subr.mxu0 0.0
        %3744 = vmatpush1.msra.mxu0 0.0
        %3745 = vmatprep.subr.mxu0 0.0
        %3746 = vmatpush1.msra.mxu0 0.0
        %3747 = vmatprep.subr.mxu0 0.0
        %3748 = vmatpush1.msra.mxu0 0.0
        %3749 = vmatprep.subr.mxu0 0.0
        %3750 = vmatpush1.msra.mxu0 0.0
        %3751 = vmatprep.subr.mxu0 0.0
        %3752 = vmatpush1.msra.mxu0 0.0
        %3753 = vmatprep.subr.mxu0 0.0
        %3754 = vmatpush1.msra.mxu0 0.0
        %3755 = vmatprep.subr.mxu0 0.0
        %3756 = vmatpush1.msra.mxu0 %v2113
        %3757 = vmatprep.subr.mxu0 0.0
        %3758 = vmatpush2.msra.mxu0 0.0
        %3759 = vmatprep.subr.mxu0 0.0
        %3760 = vmatpush2.msra.mxu0 0.0
        %3761 = vmatprep.subr.mxu0 0.0
        %3762 = vmatpush2.msra.mxu0 0.0
        %3763 = vmatprep.subr.mxu0 0.0
        %3764 = vmatpush2.msra.mxu0 0.0
        %3765 = vmatprep.subr.mxu0 0.0
        %3766 = vmatpush2.msra.mxu0 0.0
        %3767 = vmatprep.subr.mxu0 0.0
        %3768 = vmatpush2.msra.mxu0 0.0
        %3769 = vmatprep.subr.mxu0 0.0
        %3770 = vmatpush2.msra.mxu0 0.0
        %3771 = vmatprep.subr.mxu0 0.0
        %3772 = vmatpush2.msra.mxu0 0.0
        %3773 = vmatprep.subr.mxu0 0.0
        %3774 = vmatpush2.msra.mxu0 0.0
        %3775 = vmatprep.subr.mxu0 0.0
        %3776 = vmatpush2.msra.mxu0 0.0
        %3777 = vmatprep.subr.mxu0 0.0
        %3778 = vmatpush2.msra.mxu0 0.0
        %3779 = vmatprep.subr.mxu0 0.0
        %3780 = vmatpush2.msra.mxu0 0.0
        %3781 = vmatprep.subr.mxu0 0.0
        %3782 = vmatpush2.msra.mxu0 0.0
        %3783 = vmatprep.subr.mxu0 0.0
        %3784 = vmatpush2.msra.mxu0 0.0
        %3785 = vmatprep.subr.mxu0 0.0
        %3786 = vmatpush2.msra.mxu0 0.0
        %3787 = vmatprep.subr.mxu0 0.0
        %3788 = vmatpush2.msra.mxu0 0.0
        %3789 = vmatprep.mubr.f32.mxu0 0.0
        %3790 = vmatmul.mubr.f32.gmra.mxu0 %v3723
        %v3791 = vpop.f32.mrf.mxu0
        %v3792 = vadd.f32 0.0, %v3791
        %v3793 = vpop.f32.mrf.mxu0
        %3794 = vdwg.mxu0
        %v3796 = vsel %vm2256, %v3635, 0
        %3798 = vmatprep.subr.mxu0 0.0
        %3799 = vmatpush1.msra.mxu0 0.0
        %3800 = vmatprep.subr.mxu0 0.0
        %3801 = vmatpush1.msra.mxu0 0.0
        %3802 = vmatprep.subr.mxu0 0.0
        %3803 = vmatpush1.msra.mxu0 0.0
        %3804 = vmatprep.subr.mxu0 0.0
        %3805 = vmatpush1.msra.mxu0 0.0
        %3806 = vmatprep.subr.mxu0 0.0
        %3807 = vmatpush1.msra.mxu0 0.0
        %3808 = vmatprep.subr.mxu0 0.0
        %3809 = vmatpush1.msra.mxu0 0.0
        %3810 = vmatprep.subr.mxu0 0.0
        %3811 = vmatpush1.msra.mxu0 0.0
        %3812 = vmatprep.subr.mxu0 0.0
        %3813 = vmatpush1.msra.mxu0 0.0
        %3814 = vmatprep.subr.mxu0 0.0
        %3815 = vmatpush1.msra.mxu0 0.0
        %3816 = vmatprep.subr.mxu0 0.0
        %3817 = vmatpush1.msra.mxu0 0.0
        %3818 = vmatprep.subr.mxu0 0.0
        %3819 = vmatpush1.msra.mxu0 0.0
        %3820 = vmatprep.subr.mxu0 0.0
        %3821 = vmatpush1.msra.mxu0 0.0
        %3822 = vmatprep.subr.mxu0 0.0
        %3823 = vmatpush1.msra.mxu0 0.0
        %3824 = vmatprep.subr.mxu0 0.0
        %3825 = vmatpush1.msra.mxu0 0.0
        %3826 = vmatprep.subr.mxu0 0.0
        %3827 = vmatpush1.msra.mxu0 0.0
        %3828 = vmatprep.subr.mxu0 0.0
        %3829 = vmatpush1.msra.mxu0 %v2114
        %3830 = vmatprep.subr.mxu0 0.0
        %3831 = vmatpush2.msra.mxu0 0.0
        %3832 = vmatprep.subr.mxu0 0.0
        %3833 = vmatpush2.msra.mxu0 0.0
        %3834 = vmatprep.subr.mxu0 0.0
        %3835 = vmatpush2.msra.mxu0 0.0
        %3836 = vmatprep.subr.mxu0 0.0
        %3837 = vmatpush2.msra.mxu0 0.0
        %3838 = vmatprep.subr.mxu0 0.0
        %3839 = vmatpush2.msra.mxu0 0.0
        %3840 = vmatprep.subr.mxu0 0.0
        %3841 = vmatpush2.msra.mxu0 0.0
        %3842 = vmatprep.subr.mxu0 0.0
        %3843 = vmatpush2.msra.mxu0 0.0
        %3844 = vmatprep.subr.mxu0 0.0
        %3845 = vmatpush2.msra.mxu0 0.0
        %3846 = vmatprep.subr.mxu0 0.0
        %3847 = vmatpush2.msra.mxu0 0.0
        %3848 = vmatprep.subr.mxu0 0.0
        %3849 = vmatpush2.msra.mxu0 0.0
        %3850 = vmatprep.subr.mxu0 0.0
        %3851 = vmatpush2.msra.mxu0 0.0
        %3852 = vmatprep.subr.mxu0 0.0
        %3853 = vmatpush2.msra.mxu0 0.0
        %3854 = vmatprep.subr.mxu0 0.0
        %3855 = vmatpush2.msra.mxu0 0.0
        %3856 = vmatprep.subr.mxu0 0.0
        %3857 = vmatpush2.msra.mxu0 0.0
        %3858 = vmatprep.subr.mxu0 0.0
        %3859 = vmatpush2.msra.mxu0 0.0
        %3860 = vmatprep.subr.mxu0 0.0
        %3861 = vmatpush2.msra.mxu0 0.0
        %3862 = vmatprep.mubr.f32.mxu0 0.0
        %3863 = vmatmul.mubr.f32.gmra.mxu0 %v3796
        %v3864 = vpop.f32.mrf.mxu0
        %v3865 = vadd.f32 0.0, %v3864
        %v3866 = vpop.f32.mrf.mxu0
        %3867 = vdwg.mxu0
        %v3869 = vsel %vm2256, %v3636, 0
        %3871 = vmatprep.subr.mxu0 0.0
        %3872 = vmatpush1.msra.mxu0 0.0
        %3873 = vmatprep.subr.mxu0 0.0
        %3874 = vmatpush1.msra.mxu0 0.0
        %3875 = vmatprep.subr.mxu0 0.0
        %3876 = vmatpush1.msra.mxu0 0.0
        %3877 = vmatprep.subr.mxu0 0.0
        %3878 = vmatpush1.msra.mxu0 0.0
        %3879 = vmatprep.subr.mxu0 0.0
        %3880 = vmatpush1.msra.mxu0 0.0
        %3881 = vmatprep.subr.mxu0 0.0
        %3882 = vmatpush1.msra.mxu0 0.0
        %3883 = vmatprep.subr.mxu0 0.0
        %3884 = vmatpush1.msra.mxu0 0.0
        %3885 = vmatprep.subr.mxu0 0.0
        %3886 = vmatpush1.msra.mxu0 0.0
        %3887 = vmatprep.subr.mxu0 0.0
        %3888 = vmatpush1.msra.mxu0 0.0
        %3889 = vmatprep.subr.mxu0 0.0
        %3890 = vmatpush1.msra.mxu0 0.0
        %3891 = vmatprep.subr.mxu0 0.0
        %3892 = vmatpush1.msra.mxu0 0.0
        %3893 = vmatprep.subr.mxu0 0.0
        %3894 = vmatpush1.msra.mxu0 0.0
        %3895 = vmatprep.subr.mxu0 0.0
        %3896 = vmatpush1.msra.mxu0 0.0
        %3897 = vmatprep.subr.mxu0 0.0
        %3898 = vmatpush1.msra.mxu0 0.0
        %3899 = vmatprep.subr.mxu0 0.0
        %3900 = vmatpush1.msra.mxu0 0.0
        %3901 = vmatprep.subr.mxu0 0.0
        %3902 = vmatpush1.msra.mxu0 %v2115
        %3903 = vmatprep.subr.mxu0 0.0
        %3904 = vmatpush2.msra.mxu0 0.0
        %3905 = vmatprep.subr.mxu0 0.0
        %3906 = vmatpush2.msra.mxu0 0.0
        %3907 = vmatprep.subr.mxu0 0.0
        %3908 = vmatpush2.msra.mxu0 0.0
        %3909 = vmatprep.subr.mxu0 0.0
        %3910 = vmatpush2.msra.mxu0 0.0
        %3911 = vmatprep.subr.mxu0 0.0
        %3912 = vmatpush2.msra.mxu0 0.0
        %3913 = vmatprep.subr.mxu0 0.0
        %3914 = vmatpush2.msra.mxu0 0.0
        %3915 = vmatprep.subr.mxu0 0.0
        %3916 = vmatpush2.msra.mxu0 0.0
        %3917 = vmatprep.subr.mxu0 0.0
        %3918 = vmatpush2.msra.mxu0 0.0
        %3919 = vmatprep.subr.mxu0 0.0
        %3920 = vmatpush2.msra.mxu0 0.0
        %3921 = vmatprep.subr.mxu0 0.0
        %3922 = vmatpush2.msra.mxu0 0.0
        %3923 = vmatprep.subr.mxu0 0.0
        %3924 = vmatpush2.msra.mxu0 0.0
        %3925 = vmatprep.subr.mxu0 0.0
        %3926 = vmatpush2.msra.mxu0 0.0
        %3927 = vmatprep.subr.mxu0 0.0
        %3928 = vmatpush2.msra.mxu0 0.0
        %3929 = vmatprep.subr.mxu0 0.0
        %3930 = vmatpush2.msra.mxu0 0.0
        %3931 = vmatprep.subr.mxu0 0.0
        %3932 = vmatpush2.msra.mxu0 0.0
        %3933 = vmatprep.subr.mxu0 0.0
        %3934 = vmatpush2.msra.mxu0 0.0
        %3935 = vmatprep.mubr.f32.mxu0 0.0
        %3936 = vmatmul.mubr.f32.gmra.mxu0 %v3869
        %v3937 = vpop.f32.mrf.mxu0
        %v3938 = vadd.f32 0.0, %v3937
        %v3939 = vpop.f32.mrf.mxu0
        %3940 = vdwg.mxu0
        %v3942 = vsel %vm2256, %v3637, 0
        %3944 = vmatprep.subr.mxu0 0.0
        %3945 = vmatpush1.msra.mxu0 0.0
        %3946 = vmatprep.subr.mxu0 0.0
        %3947 = vmatpush1.msra.mxu0 0.0
        %3948 = vmatprep.subr.mxu0 0.0
        %3949 = vmatpush1.msra.mxu0 0.0
        %3950 = vmatprep.subr.mxu0 0.0
        %3951 = vmatpush1.msra.mxu0 0.0
        %3952 = vmatprep.subr.mxu0 0.0
        %3953 = vmatpush1.msra.mxu0 0.0
        %3954 = vmatprep.subr.mxu0 0.0
        %3955 = vmatpush1.msra.mxu0 0.0
        %3956 = vmatprep.subr.mxu0 0.0
        %3957 = vmatpush1.msra.mxu0 0.0
        %3958 = vmatprep.subr.mxu0 0.0
        %3959 = vmatpush1.msra.mxu0 0.0
        %3960 = vmatprep.subr.mxu0 0.0
        %3961 = vmatpush1.msra.mxu0 0.0
        %3962 = vmatprep.subr.mxu0 0.0
        %3963 = vmatpush1.msra.mxu0 0.0
        %3964 = vmatprep.subr.mxu0 0.0
        %3965 = vmatpush1.msra.mxu0 0.0
        %3966 = vmatprep.subr.mxu0 0.0
        %3967 = vmatpush1.msra.mxu0 0.0
        %3968 = vmatprep.subr.mxu0 0.0
        %3969 = vmatpush1.msra.mxu0 0.0
        %3970 = vmatprep.subr.mxu0 0.0
        %3971 = vmatpush1.msra.mxu0 0.0
        %3972 = vmatprep.subr.mxu0 0.0
        %3973 = vmatpush1.msra.mxu0 0.0
        %3974 = vmatprep.subr.mxu0 0.0
        %3975 = vmatpush1.msra.mxu0 %v2116
        %3976 = vmatprep.subr.mxu0 0.0
        %3977 = vmatpush2.msra.mxu0 0.0
        %3978 = vmatprep.subr.mxu0 0.0
        %3979 = vmatpush2.msra.mxu0 0.0
        %3980 = vmatprep.subr.mxu0 0.0
        %3981 = vmatpush2.msra.mxu0 0.0
        %3982 = vmatprep.subr.mxu0 0.0
        %3983 = vmatpush2.msra.mxu0 0.0
        %3984 = vmatprep.subr.mxu0 0.0
        %3985 = vmatpush2.msra.mxu0 0.0
        %3986 = vmatprep.subr.mxu0 0.0
        %3987 = vmatpush2.msra.mxu0 0.0
        %3988 = vmatprep.subr.mxu0 0.0
        %3989 = vmatpush2.msra.mxu0 0.0
        %3990 = vmatprep.subr.mxu0 0.0
        %3991 = vmatpush2.msra.mxu0 0.0
        %3992 = vmatprep.subr.mxu0 0.0
        %3993 = vmatpush2.msra.mxu0 0.0
        %3994 = vmatprep.subr.mxu0 0.0
        %3995 = vmatpush2.msra.mxu0 0.0
        %3996 = vmatprep.subr.mxu0 0.0
        %3997 = vmatpush2.msra.mxu0 0.0
        %3998 = vmatprep.subr.mxu0 0.0
        %3999 = vmatpush2.msra.mxu0 0.0
        %4000 = vmatprep.subr.mxu0 0.0
        %4001 = vmatpush2.msra.mxu0 0.0
        %4002 = vmatprep.subr.mxu0 0.0
        %4003 = vmatpush2.msra.mxu0 0.0
        %4004 = vmatprep.subr.mxu0 0.0
        %4005 = vmatpush2.msra.mxu0 0.0
        %4006 = vmatprep.subr.mxu0 0.0
        %4007 = vmatpush2.msra.mxu0 0.0
        %4008 = vmatprep.mubr.f32.mxu0 0.0
        %4009 = vmatmul.mubr.f32.gmra.mxu0 %v3942
        %v4010 = vpop.f32.mrf.mxu0
        %v4011 = vadd.f32 0.0, %v4010
        %v4012 = vpop.f32.mrf.mxu0
        %4013 = vdwg.mxu0
        %v4015 = vsel %vm2256, %v3638, 0
        %4017 = vmatprep.subr.mxu0 0.0
        %4018 = vmatpush1.msra.mxu0 0.0
        %4019 = vmatprep.subr.mxu0 0.0
        %4020 = vmatpush1.msra.mxu0 0.0
        %4021 = vmatprep.subr.mxu0 0.0
        %4022 = vmatpush1.msra.mxu0 0.0
        %4023 = vmatprep.subr.mxu0 0.0
        %4024 = vmatpush1.msra.mxu0 0.0
        %4025 = vmatprep.subr.mxu0 0.0
        %4026 = vmatpush1.msra.mxu0 0.0
        %4027 = vmatprep.subr.mxu0 0.0
        %4028 = vmatpush1.msra.mxu0 0.0
        %4029 = vmatprep.subr.mxu0 0.0
        %4030 = vmatpush1.msra.mxu0 0.0
        %4031 = vmatprep.subr.mxu0 0.0
        %4032 = vmatpush1.msra.mxu0 0.0
        %4033 = vmatprep.subr.mxu0 0.0
        %4034 = vmatpush1.msra.mxu0 0.0
        %4035 = vmatprep.subr.mxu0 0.0
        %4036 = vmatpush1.msra.mxu0 0.0
        %4037 = vmatprep.subr.mxu0 0.0
        %4038 = vmatpush1.msra.mxu0 0.0
        %4039 = vmatprep.subr.mxu0 0.0
        %4040 = vmatpush1.msra.mxu0 0.0
        %4041 = vmatprep.subr.mxu0 0.0
        %4042 = vmatpush1.msra.mxu0 0.0
        %4043 = vmatprep.subr.mxu0 0.0
        %4044 = vmatpush1.msra.mxu0 0.0
        %4045 = vmatprep.subr.mxu0 0.0
        %4046 = vmatpush1.msra.mxu0 0.0
        %4047 = vmatprep.subr.mxu0 0.0
        %4048 = vmatpush1.msra.mxu0 %v2117
        %4049 = vmatprep.subr.mxu0 0.0
        %4050 = vmatpush2.msra.mxu0 0.0
        %4051 = vmatprep.subr.mxu0 0.0
        %4052 = vmatpush2.msra.mxu0 0.0
        %4053 = vmatprep.subr.mxu0 0.0
        %4054 = vmatpush2.msra.mxu0 0.0
        %4055 = vmatprep.subr.mxu0 0.0
        %4056 = vmatpush2.msra.mxu0 0.0
        %4057 = vmatprep.subr.mxu0 0.0
        %4058 = vmatpush2.msra.mxu0 0.0
        %4059 = vmatprep.subr.mxu0 0.0
        %4060 = vmatpush2.msra.mxu0 0.0
        %4061 = vmatprep.subr.mxu0 0.0
        %4062 = vmatpush2.msra.mxu0 0.0
        %4063 = vmatprep.subr.mxu0 0.0
        %4064 = vmatpush2.msra.mxu0 0.0
        %4065 = vmatprep.subr.mxu0 0.0
        %4066 = vmatpush2.msra.mxu0 0.0
        %4067 = vmatprep.subr.mxu0 0.0
        %4068 = vmatpush2.msra.mxu0 0.0
        %4069 = vmatprep.subr.mxu0 0.0
        %4070 = vmatpush2.msra.mxu0 0.0
        %4071 = vmatprep.subr.mxu0 0.0
        %4072 = vmatpush2.msra.mxu0 0.0
        %4073 = vmatprep.subr.mxu0 0.0
        %4074 = vmatpush2.msra.mxu0 0.0
        %4075 = vmatprep.subr.mxu0 0.0
        %4076 = vmatpush2.msra.mxu0 0.0
        %4077 = vmatprep.subr.mxu0 0.0
        %4078 = vmatpush2.msra.mxu0 0.0
        %4079 = vmatprep.subr.mxu0 0.0
        %4080 = vmatpush2.msra.mxu0 0.0
        %4081 = vmatprep.mubr.f32.mxu0 0.0
        %4082 = vmatmul.mubr.f32.gmra.mxu0 %v4015
        %v4083 = vpop.f32.mrf.mxu0
        %v4084 = vadd.f32 0.0, %v4083
        %v4085 = vpop.f32.mrf.mxu0
        %4086 = vdwg.mxu0
        %v4088 = vsel %vm2256, %v3639, 0
        %4090 = vmatprep.subr.mxu0 0.0
        %4091 = vmatpush1.msra.mxu0 0.0
        %4092 = vmatprep.subr.mxu0 0.0
        %4093 = vmatpush1.msra.mxu0 0.0
        %4094 = vmatprep.subr.mxu0 0.0
        %4095 = vmatpush1.msra.mxu0 0.0
        %4096 = vmatprep.subr.mxu0 0.0
        %4097 = vmatpush1.msra.mxu0 0.0
        %4098 = vmatprep.subr.mxu0 0.0
        %4099 = vmatpush1.msra.mxu0 0.0
        %4100 = vmatprep.subr.mxu0 0.0
        %4101 = vmatpush1.msra.mxu0 0.0
        %4102 = vmatprep.subr.mxu0 0.0
        %4103 = vmatpush1.msra.mxu0 0.0
        %4104 = vmatprep.subr.mxu0 0.0
        %4105 = vmatpush1.msra.mxu0 0.0
        %4106 = vmatprep.subr.mxu0 0.0
        %4107 = vmatpush1.msra.mxu0 0.0
        %4108 = vmatprep.subr.mxu0 0.0
        %4109 = vmatpush1.msra.mxu0 0.0
        %4110 = vmatprep.subr.mxu0 0.0
        %4111 = vmatpush1.msra.mxu0 0.0
        %4112 = vmatprep.subr.mxu0 0.0
        %4113 = vmatpush1.msra.mxu0 0.0
        %4114 = vmatprep.subr.mxu0 0.0
        %4115 = vmatpush1.msra.mxu0 0.0
        %4116 = vmatprep.subr.mxu0 0.0
        %4117 = vmatpush1.msra.mxu0 0.0
        %4118 = vmatprep.subr.mxu0 0.0
        %4119 = vmatpush1.msra.mxu0 0.0
        %4120 = vmatprep.subr.mxu0 0.0
        %4121 = vmatpush1.msra.mxu0 %v2118
        %4122 = vmatprep.subr.mxu0 0.0
        %4123 = vmatpush2.msra.mxu0 0.0
        %4124 = vmatprep.subr.mxu0 0.0
        %4125 = vmatpush2.msra.mxu0 0.0
        %4126 = vmatprep.subr.mxu0 0.0
        %4127 = vmatpush2.msra.mxu0 0.0
        %4128 = vmatprep.subr.mxu0 0.0
        %4129 = vmatpush2.msra.mxu0 0.0
        %4130 = vmatprep.subr.mxu0 0.0
        %4131 = vmatpush2.msra.mxu0 0.0
        %4132 = vmatprep.subr.mxu0 0.0
        %4133 = vmatpush2.msra.mxu0 0.0
        %4134 = vmatprep.subr.mxu0 0.0
        %4135 = vmatpush2.msra.mxu0 0.0
        %4136 = vmatprep.subr.mxu0 0.0
        %4137 = vmatpush2.msra.mxu0 0.0
        %4138 = vmatprep.subr.mxu0 0.0
        %4139 = vmatpush2.msra.mxu0 0.0
        %4140 = vmatprep.subr.mxu0 0.0
        %4141 = vmatpush2.msra.mxu0 0.0
        %4142 = vmatprep.subr.mxu0 0.0
        %4143 = vmatpush2.msra.mxu0 0.0
        %4144 = vmatprep.subr.mxu0 0.0
        %4145 = vmatpush2.msra.mxu0 0.0
        %4146 = vmatprep.subr.mxu0 0.0
        %4147 = vmatpush2.msra.mxu0 0.0
        %4148 = vmatprep.subr.mxu0 0.0
        %4149 = vmatpush2.msra.mxu0 0.0
        %4150 = vmatprep.subr.mxu0 0.0
        %4151 = vmatpush2.msra.mxu0 0.0
        %4152 = vmatprep.subr.mxu0 0.0
        %4153 = vmatpush2.msra.mxu0 0.0
        %4154 = vmatprep.mubr.f32.mxu0 0.0
        %4155 = vmatmul.mubr.f32.gmra.mxu0 %v4088
        %v4156 = vpop.f32.mrf.mxu0
        %v4157 = vadd.f32 0.0, %v4156
        %v4158 = vpop.f32.mrf.mxu0
        %4159 = vdwg.mxu0
        %v4161 = vsel %vm2256, %v3640, 0
        %4163 = vmatprep.subr.mxu0 0.0
        %4164 = vmatpush1.msra.mxu0 0.0
        %4165 = vmatprep.subr.mxu0 0.0
        %4166 = vmatpush1.msra.mxu0 0.0
        %4167 = vmatprep.subr.mxu0 0.0
        %4168 = vmatpush1.msra.mxu0 0.0
        %4169 = vmatprep.subr.mxu0 0.0
        %4170 = vmatpush1.msra.mxu0 0.0
        %4171 = vmatprep.subr.mxu0 0.0
        %4172 = vmatpush1.msra.mxu0 0.0
        %4173 = vmatprep.subr.mxu0 0.0
        %4174 = vmatpush1.msra.mxu0 0.0
        %4175 = vmatprep.subr.mxu0 0.0
        %4176 = vmatpush1.msra.mxu0 0.0
        %4177 = vmatprep.subr.mxu0 0.0
        %4178 = vmatpush1.msra.mxu0 0.0
        %4179 = vmatprep.subr.mxu0 0.0
        %4180 = vmatpush1.msra.mxu0 0.0
        %4181 = vmatprep.subr.mxu0 0.0
        %4182 = vmatpush1.msra.mxu0 0.0
        %4183 = vmatprep.subr.mxu0 0.0
        %4184 = vmatpush1.msra.mxu0 0.0
        %4185 = vmatprep.subr.mxu0 0.0
        %4186 = vmatpush1.msra.mxu0 0.0
        %4187 = vmatprep.subr.mxu0 0.0
        %4188 = vmatpush1.msra.mxu0 0.0
        %4189 = vmatprep.subr.mxu0 0.0
        %4190 = vmatpush1.msra.mxu0 0.0
        %4191 = vmatprep.subr.mxu0 0.0
        %4192 = vmatpush1.msra.mxu0 0.0
        %4193 = vmatprep.subr.mxu0 0.0
        %4194 = vmatpush1.msra.mxu0 %v2119
        %4195 = vmatprep.subr.mxu0 0.0
        %4196 = vmatpush2.msra.mxu0 0.0
        %4197 = vmatprep.subr.mxu0 0.0
        %4198 = vmatpush2.msra.mxu0 0.0
        %4199 = vmatprep.subr.mxu0 0.0
        %4200 = vmatpush2.msra.mxu0 0.0
        %4201 = vmatprep.subr.mxu0 0.0
        %4202 = vmatpush2.msra.mxu0 0.0
        %4203 = vmatprep.subr.mxu0 0.0
        %4204 = vmatpush2.msra.mxu0 0.0
        %4205 = vmatprep.subr.mxu0 0.0
        %4206 = vmatpush2.msra.mxu0 0.0
        %4207 = vmatprep.subr.mxu0 0.0
        %4208 = vmatpush2.msra.mxu0 0.0
        %4209 = vmatprep.subr.mxu0 0.0
        %4210 = vmatpush2.msra.mxu0 0.0
        %4211 = vmatprep.subr.mxu0 0.0
        %4212 = vmatpush2.msra.mxu0 0.0
        %4213 = vmatprep.subr.mxu0 0.0
        %4214 = vmatpush2.msra.mxu0 0.0
        %4215 = vmatprep.subr.mxu0 0.0
        %4216 = vmatpush2.msra.mxu0 0.0
        %4217 = vmatprep.subr.mxu0 0.0
        %4218 = vmatpush2.msra.mxu0 0.0
        %4219 = vmatprep.subr.mxu0 0.0
        %4220 = vmatpush2.msra.mxu0 0.0
        %4221 = vmatprep.subr.mxu0 0.0
        %4222 = vmatpush2.msra.mxu0 0.0
        %4223 = vmatprep.subr.mxu0 0.0
        %4224 = vmatpush2.msra.mxu0 0.0
        %4225 = vmatprep.subr.mxu0 0.0
        %4226 = vmatpush2.msra.mxu0 0.0
        %4227 = vmatprep.mubr.f32.mxu0 0.0
        %4228 = vmatmul.mubr.f32.gmra.mxu0 %v4161
        %v4229 = vpop.f32.mrf.mxu0
        %v4230 = vadd.f32 0.0, %v4229
        %v4231 = vpop.f32.mrf.mxu0
        %4232 = vdwg.mxu0
        %v4234 = vsel %vm2256, %v3641, 0
        %4236 = vmatprep.subr.mxu0 0.0
        %4237 = vmatpush1.msra.mxu0 0.0
        %4238 = vmatprep.subr.mxu0 0.0
        %4239 = vmatpush1.msra.mxu0 0.0
        %4240 = vmatprep.subr.mxu0 0.0
        %4241 = vmatpush1.msra.mxu0 0.0
        %4242 = vmatprep.subr.mxu0 0.0
        %4243 = vmatpush1.msra.mxu0 0.0
        %4244 = vmatprep.subr.mxu0 0.0
        %4245 = vmatpush1.msra.mxu0 0.0
        %4246 = vmatprep.subr.mxu0 0.0
        %4247 = vmatpush1.msra.mxu0 0.0
        %4248 = vmatprep.subr.mxu0 0.0
        %4249 = vmatpush1.msra.mxu0 0.0
        %4250 = vmatprep.subr.mxu0 0.0
        %4251 = vmatpush1.msra.mxu0 0.0
        %4252 = vmatprep.subr.mxu0 0.0
        %4253 = vmatpush1.msra.mxu0 0.0
        %4254 = vmatprep.subr.mxu0 0.0
        %4255 = vmatpush1.msra.mxu0 0.0
        %4256 = vmatprep.subr.mxu0 0.0
        %4257 = vmatpush1.msra.mxu0 0.0
        %4258 = vmatprep.subr.mxu0 0.0
        %4259 = vmatpush1.msra.mxu0 0.0
        %4260 = vmatprep.subr.mxu0 0.0
        %4261 = vmatpush1.msra.mxu0 0.0
        %4262 = vmatprep.subr.mxu0 0.0
        %4263 = vmatpush1.msra.mxu0 0.0
        %4264 = vmatprep.subr.mxu0 0.0
        %4265 = vmatpush1.msra.mxu0 0.0
        %4266 = vmatprep.subr.mxu0 0.0
        %4267 = vmatpush1.msra.mxu0 %v2248
        %4268 = vmatprep.subr.mxu0 0.0
        %4269 = vmatpush2.msra.mxu0 0.0
        %4270 = vmatprep.subr.mxu0 0.0
        %4271 = vmatpush2.msra.mxu0 0.0
        %4272 = vmatprep.subr.mxu0 0.0
        %4273 = vmatpush2.msra.mxu0 0.0
        %4274 = vmatprep.subr.mxu0 0.0
        %4275 = vmatpush2.msra.mxu0 0.0
        %4276 = vmatprep.subr.mxu0 0.0
        %4277 = vmatpush2.msra.mxu0 0.0
        %4278 = vmatprep.subr.mxu0 0.0
        %4279 = vmatpush2.msra.mxu0 0.0
        %4280 = vmatprep.subr.mxu0 0.0
        %4281 = vmatpush2.msra.mxu0 0.0
        %4282 = vmatprep.subr.mxu0 0.0
        %4283 = vmatpush2.msra.mxu0 0.0
        %4284 = vmatprep.subr.mxu0 0.0
        %4285 = vmatpush2.msra.mxu0 0.0
        %4286 = vmatprep.subr.mxu0 0.0
        %4287 = vmatpush2.msra.mxu0 0.0
        %4288 = vmatprep.subr.mxu0 0.0
        %4289 = vmatpush2.msra.mxu0 0.0
        %4290 = vmatprep.subr.mxu0 0.0
        %4291 = vmatpush2.msra.mxu0 0.0
        %4292 = vmatprep.subr.mxu0 0.0
        %4293 = vmatpush2.msra.mxu0 0.0
        %4294 = vmatprep.subr.mxu0 0.0
        %4295 = vmatpush2.msra.mxu0 0.0
        %4296 = vmatprep.subr.mxu0 0.0
        %4297 = vmatpush2.msra.mxu0 0.0
        %4298 = vmatprep.subr.mxu0 0.0
        %4299 = vmatpush2.msra.mxu0 0.0
        %4300 = vmatprep.mubr.f32.mxu0 0.0
        %4301 = vmatmul.mubr.f32.gmra.mxu0 %v4234
        %v4302 = vpop.f32.mrf.mxu0
        %v4303 = vadd.f32 0.0, %v4302
        %v4304 = vpop.f32.mrf.mxu0
        %4305 = vdwg.mxu0
        %v4307 = vsel %vm2256, %v3642, 0
        %4309 = vmatprep.subr.mxu0 0.0
        %4310 = vmatpush1.msra.mxu0 0.0
        %4311 = vmatprep.subr.mxu0 0.0
        %4312 = vmatpush1.msra.mxu0 0.0
        %4313 = vmatprep.subr.mxu0 0.0
        %4314 = vmatpush1.msra.mxu0 0.0
        %4315 = vmatprep.subr.mxu0 0.0
        %4316 = vmatpush1.msra.mxu0 0.0
        %4317 = vmatprep.subr.mxu0 0.0
        %4318 = vmatpush1.msra.mxu0 0.0
        %4319 = vmatprep.subr.mxu0 0.0
        %4320 = vmatpush1.msra.mxu0 0.0
        %4321 = vmatprep.subr.mxu0 0.0
        %4322 = vmatpush1.msra.mxu0 0.0
        %4323 = vmatprep.subr.mxu0 0.0
        %4324 = vmatpush1.msra.mxu0 0.0
        %4325 = vmatprep.subr.mxu0 0.0
        %4326 = vmatpush1.msra.mxu0 0.0
        %4327 = vmatprep.subr.mxu0 0.0
        %4328 = vmatpush1.msra.mxu0 0.0
        %4329 = vmatprep.subr.mxu0 0.0
        %4330 = vmatpush1.msra.mxu0 0.0
        %4331 = vmatprep.subr.mxu0 0.0
        %4332 = vmatpush1.msra.mxu0 0.0
        %4333 = vmatprep.subr.mxu0 0.0
        %4334 = vmatpush1.msra.mxu0 0.0
        %4335 = vmatprep.subr.mxu0 0.0
        %4336 = vmatpush1.msra.mxu0 0.0
        %4337 = vmatprep.subr.mxu0 0.0
        %4338 = vmatpush1.msra.mxu0 0.0
        %4339 = vmatprep.subr.mxu0 0.0
        %4340 = vmatpush1.msra.mxu0 %v2249
        %4341 = vmatprep.subr.mxu0 0.0
        %4342 = vmatpush2.msra.mxu0 0.0
        %4343 = vmatprep.subr.mxu0 0.0
        %4344 = vmatpush2.msra.mxu0 0.0
        %4345 = vmatprep.subr.mxu0 0.0
        %4346 = vmatpush2.msra.mxu0 0.0
        %4347 = vmatprep.subr.mxu0 0.0
        %4348 = vmatpush2.msra.mxu0 0.0
        %4349 = vmatprep.subr.mxu0 0.0
        %4350 = vmatpush2.msra.mxu0 0.0
        %4351 = vmatprep.subr.mxu0 0.0
        %4352 = vmatpush2.msra.mxu0 0.0
        %4353 = vmatprep.subr.mxu0 0.0
        %4354 = vmatpush2.msra.mxu0 0.0
        %4355 = vmatprep.subr.mxu0 0.0
        %4356 = vmatpush2.msra.mxu0 0.0
        %4357 = vmatprep.subr.mxu0 0.0
        %4358 = vmatpush2.msra.mxu0 0.0
        %4359 = vmatprep.subr.mxu0 0.0
        %4360 = vmatpush2.msra.mxu0 0.0
        %4361 = vmatprep.subr.mxu0 0.0
        %4362 = vmatpush2.msra.mxu0 0.0
        %4363 = vmatprep.subr.mxu0 0.0
        %4364 = vmatpush2.msra.mxu0 0.0
        %4365 = vmatprep.subr.mxu0 0.0
        %4366 = vmatpush2.msra.mxu0 0.0
        %4367 = vmatprep.subr.mxu0 0.0
        %4368 = vmatpush2.msra.mxu0 0.0
        %4369 = vmatprep.subr.mxu0 0.0
        %4370 = vmatpush2.msra.mxu0 0.0
        %4371 = vmatprep.subr.mxu0 0.0
        %4372 = vmatpush2.msra.mxu0 0.0
        %4373 = vmatprep.mubr.f32.mxu0 0.0
        %4374 = vmatmul.mubr.f32.gmra.mxu0 %v4307
        %v4375 = vpop.f32.mrf.mxu0
        %v4376 = vadd.f32 0.0, %v4375
        %v4377 = vpop.f32.mrf.mxu0
        %4378 = vdwg.mxu0
        %v4380 = vsel %vm2256, %v3643, 0
        %4382 = vmatprep.subr.mxu0 0.0
        %4383 = vmatpush1.msra.mxu0 0.0
        %4384 = vmatprep.subr.mxu0 0.0
        %4385 = vmatpush1.msra.mxu0 0.0
        %4386 = vmatprep.subr.mxu0 0.0
        %4387 = vmatpush1.msra.mxu0 0.0
        %4388 = vmatprep.subr.mxu0 0.0
        %4389 = vmatpush1.msra.mxu0 0.0
        %4390 = vmatprep.subr.mxu0 0.0
        %4391 = vmatpush1.msra.mxu0 0.0
        %4392 = vmatprep.subr.mxu0 0.0
        %4393 = vmatpush1.msra.mxu0 0.0
        %4394 = vmatprep.subr.mxu0 0.0
        %4395 = vmatpush1.msra.mxu0 0.0
        %4396 = vmatprep.subr.mxu0 0.0
        %4397 = vmatpush1.msra.mxu0 0.0
        %4398 = vmatprep.subr.mxu0 0.0
        %4399 = vmatpush1.msra.mxu0 0.0
        %4400 = vmatprep.subr.mxu0 0.0
        %4401 = vmatpush1.msra.mxu0 0.0
        %4402 = vmatprep.subr.mxu0 0.0
        %4403 = vmatpush1.msra.mxu0 0.0
        %4404 = vmatprep.subr.mxu0 0.0
        %4405 = vmatpush1.msra.mxu0 0.0
        %4406 = vmatprep.subr.mxu0 0.0
        %4407 = vmatpush1.msra.mxu0 0.0
        %4408 = vmatprep.subr.mxu0 0.0
        %4409 = vmatpush1.msra.mxu0 0.0
        %4410 = vmatprep.subr.mxu0 0.0
        %4411 = vmatpush1.msra.mxu0 0.0
        %4412 = vmatprep.subr.mxu0 0.0
        %4413 = vmatpush1.msra.mxu0 %v2250
        %4414 = vmatprep.subr.mxu0 0.0
        %4415 = vmatpush2.msra.mxu0 0.0
        %4416 = vmatprep.subr.mxu0 0.0
        %4417 = vmatpush2.msra.mxu0 0.0
        %4418 = vmatprep.subr.mxu0 0.0
        %4419 = vmatpush2.msra.mxu0 0.0
        %4420 = vmatprep.subr.mxu0 0.0
        %4421 = vmatpush2.msra.mxu0 0.0
        %4422 = vmatprep.subr.mxu0 0.0
        %4423 = vmatpush2.msra.mxu0 0.0
        %4424 = vmatprep.subr.mxu0 0.0
        %4425 = vmatpush2.msra.mxu0 0.0
        %4426 = vmatprep.subr.mxu0 0.0
        %4427 = vmatpush2.msra.mxu0 0.0
        %4428 = vmatprep.subr.mxu0 0.0
        %4429 = vmatpush2.msra.mxu0 0.0
        %4430 = vmatprep.subr.mxu0 0.0
        %4431 = vmatpush2.msra.mxu0 0.0
        %4432 = vmatprep.subr.mxu0 0.0
        %4433 = vmatpush2.msra.mxu0 0.0
        %4434 = vmatprep.subr.mxu0 0.0
        %4435 = vmatpush2.msra.mxu0 0.0
        %4436 = vmatprep.subr.mxu0 0.0
        %4437 = vmatpush2.msra.mxu0 0.0
        %4438 = vmatprep.subr.mxu0 0.0
        %4439 = vmatpush2.msra.mxu0 0.0
        %4440 = vmatprep.subr.mxu0 0.0
        %4441 = vmatpush2.msra.mxu0 0.0
        %4442 = vmatprep.subr.mxu0 0.0
        %4443 = vmatpush2.msra.mxu0 0.0
        %4444 = vmatprep.subr.mxu0 0.0
        %4445 = vmatpush2.msra.mxu0 0.0
        %4446 = vmatprep.mubr.f32.mxu0 0.0
        %4447 = vmatmul.mubr.f32.gmra.mxu0 %v4380
        %v4448 = vpop.f32.mrf.mxu0
        %v4449 = vadd.f32 0.0, %v4448
        %v4450 = vpop.f32.mrf.mxu0
        %4451 = vdwg.mxu0
        %v4453 = vsel %vm2256, %v3644, 0
        %4455 = vmatprep.subr.mxu0 0.0
        %4456 = vmatpush1.msra.mxu0 0.0
        %4457 = vmatprep.subr.mxu0 0.0
        %4458 = vmatpush1.msra.mxu0 0.0
        %4459 = vmatprep.subr.mxu0 0.0
        %4460 = vmatpush1.msra.mxu0 0.0
        %4461 = vmatprep.subr.mxu0 0.0
        %4462 = vmatpush1.msra.mxu0 0.0
        %4463 = vmatprep.subr.mxu0 0.0
        %4464 = vmatpush1.msra.mxu0 0.0
        %4465 = vmatprep.subr.mxu0 0.0
        %4466 = vmatpush1.msra.mxu0 0.0
        %4467 = vmatprep.subr.mxu0 0.0
        %4468 = vmatpush1.msra.mxu0 0.0
        %4469 = vmatprep.subr.mxu0 0.0
        %4470 = vmatpush1.msra.mxu0 0.0
        %4471 = vmatprep.subr.mxu0 0.0
        %4472 = vmatpush1.msra.mxu0 0.0
        %4473 = vmatprep.subr.mxu0 0.0
        %4474 = vmatpush1.msra.mxu0 0.0
        %4475 = vmatprep.subr.mxu0 0.0
        %4476 = vmatpush1.msra.mxu0 0.0
        %4477 = vmatprep.subr.mxu0 0.0
        %4478 = vmatpush1.msra.mxu0 0.0
        %4479 = vmatprep.subr.mxu0 0.0
        %4480 = vmatpush1.msra.mxu0 0.0
        %4481 = vmatprep.subr.mxu0 0.0
        %4482 = vmatpush1.msra.mxu0 0.0
        %4483 = vmatprep.subr.mxu0 0.0
        %4484 = vmatpush1.msra.mxu0 0.0
        %4485 = vmatprep.subr.mxu0 0.0
        %4486 = vmatpush1.msra.mxu0 %v2251
        %4487 = vmatprep.subr.mxu0 0.0
        %4488 = vmatpush2.msra.mxu0 0.0
        %4489 = vmatprep.subr.mxu0 0.0
        %4490 = vmatpush2.msra.mxu0 0.0
        %4491 = vmatprep.subr.mxu0 0.0
        %4492 = vmatpush2.msra.mxu0 0.0
        %4493 = vmatprep.subr.mxu0 0.0
        %4494 = vmatpush2.msra.mxu0 0.0
        %4495 = vmatprep.subr.mxu0 0.0
        %4496 = vmatpush2.msra.mxu0 0.0
        %4497 = vmatprep.subr.mxu0 0.0
        %4498 = vmatpush2.msra.mxu0 0.0
        %4499 = vmatprep.subr.mxu0 0.0
        %4500 = vmatpush2.msra.mxu0 0.0
        %4501 = vmatprep.subr.mxu0 0.0
        %4502 = vmatpush2.msra.mxu0 0.0
        %4503 = vmatprep.subr.mxu0 0.0
        %4504 = vmatpush2.msra.mxu0 0.0
        %4505 = vmatprep.subr.mxu0 0.0
        %4506 = vmatpush2.msra.mxu0 0.0
        %4507 = vmatprep.subr.mxu0 0.0
        %4508 = vmatpush2.msra.mxu0 0.0
        %4509 = vmatprep.subr.mxu0 0.0
        %4510 = vmatpush2.msra.mxu0 0.0
        %4511 = vmatprep.subr.mxu0 0.0
        %4512 = vmatpush2.msra.mxu0 0.0
        %4513 = vmatprep.subr.mxu0 0.0
        %4514 = vmatpush2.msra.mxu0 0.0
        %4515 = vmatprep.subr.mxu0 0.0
        %4516 = vmatpush2.msra.mxu0 0.0
        %4517 = vmatprep.subr.mxu0 0.0
        %4518 = vmatpush2.msra.mxu0 0.0
        %4519 = vmatprep.mubr.f32.mxu0 0.0
        %4520 = vmatmul.mubr.f32.gmra.mxu0 %v4453
        %v4521 = vpop.f32.mrf.mxu0
        %v4522 = vadd.f32 0.0, %v4521
        %v4523 = vpop.f32.mrf.mxu0
        %4524 = vdwg.mxu0
        %v4526 = vsel %vm2256, %v3645, 0
        %4528 = vmatprep.subr.mxu0 0.0
        %4529 = vmatpush1.msra.mxu0 0.0
        %4530 = vmatprep.subr.mxu0 0.0
        %4531 = vmatpush1.msra.mxu0 0.0
        %4532 = vmatprep.subr.mxu0 0.0
        %4533 = vmatpush1.msra.mxu0 0.0
        %4534 = vmatprep.subr.mxu0 0.0
        %4535 = vmatpush1.msra.mxu0 0.0
        %4536 = vmatprep.subr.mxu0 0.0
        %4537 = vmatpush1.msra.mxu0 0.0
        %4538 = vmatprep.subr.mxu0 0.0
        %4539 = vmatpush1.msra.mxu0 0.0
        %4540 = vmatprep.subr.mxu0 0.0
        %4541 = vmatpush1.msra.mxu0 0.0
        %4542 = vmatprep.subr.mxu0 0.0
        %4543 = vmatpush1.msra.mxu0 0.0
        %4544 = vmatprep.subr.mxu0 0.0
        %4545 = vmatpush1.msra.mxu0 0.0
        %4546 = vmatprep.subr.mxu0 0.0
        %4547 = vmatpush1.msra.mxu0 0.0
        %4548 = vmatprep.subr.mxu0 0.0
        %4549 = vmatpush1.msra.mxu0 0.0
        %4550 = vmatprep.subr.mxu0 0.0
        %4551 = vmatpush1.msra.mxu0 0.0
        %4552 = vmatprep.subr.mxu0 0.0
        %4553 = vmatpush1.msra.mxu0 0.0
        %4554 = vmatprep.subr.mxu0 0.0
        %4555 = vmatpush1.msra.mxu0 0.0
        %4556 = vmatprep.subr.mxu0 0.0
        %4557 = vmatpush1.msra.mxu0 0.0
        %4558 = vmatprep.subr.mxu0 0.0
        %4559 = vmatpush1.msra.mxu0 %v2252
        %4560 = vmatprep.subr.mxu0 0.0
        %4561 = vmatpush2.msra.mxu0 0.0
        %4562 = vmatprep.subr.mxu0 0.0
        %4563 = vmatpush2.msra.mxu0 0.0
        %4564 = vmatprep.subr.mxu0 0.0
        %4565 = vmatpush2.msra.mxu0 0.0
        %4566 = vmatprep.subr.mxu0 0.0
        %4567 = vmatpush2.msra.mxu0 0.0
        %4568 = vmatprep.subr.mxu0 0.0
        %4569 = vmatpush2.msra.mxu0 0.0
        %4570 = vmatprep.subr.mxu0 0.0
        %4571 = vmatpush2.msra.mxu0 0.0
        %4572 = vmatprep.subr.mxu0 0.0
        %4573 = vmatpush2.msra.mxu0 0.0
        %4574 = vmatprep.subr.mxu0 0.0
        %4575 = vmatpush2.msra.mxu0 0.0
        %4576 = vmatprep.subr.mxu0 0.0
        %4577 = vmatpush2.msra.mxu0 0.0
        %4578 = vmatprep.subr.mxu0 0.0
        %4579 = vmatpush2.msra.mxu0 0.0
        %4580 = vmatprep.subr.mxu0 0.0
        %4581 = vmatpush2.msra.mxu0 0.0
        %4582 = vmatprep.subr.mxu0 0.0
        %4583 = vmatpush2.msra.mxu0 0.0
        %4584 = vmatprep.subr.mxu0 0.0
        %4585 = vmatpush2.msra.mxu0 0.0
        %4586 = vmatprep.subr.mxu0 0.0
        %4587 = vmatpush2.msra.mxu0 0.0
        %4588 = vmatprep.subr.mxu0 0.0
        %4589 = vmatpush2.msra.mxu0 0.0
        %4590 = vmatprep.subr.mxu0 0.0
        %4591 = vmatpush2.msra.mxu0 0.0
        %4592 = vmatprep.mubr.f32.mxu0 0.0
        %4593 = vmatmul.mubr.f32.gmra.mxu0 %v4526
        %v4594 = vpop.f32.mrf.mxu0
        %v4595 = vadd.f32 0.0, %v4594
        %v4596 = vpop.f32.mrf.mxu0
        %4597 = vdwg.mxu0
        %v4599 = vsel %vm2256, %v3646, 0
        %4601 = vmatprep.subr.mxu0 0.0
        %4602 = vmatpush1.msra.mxu0 0.0
        %4603 = vmatprep.subr.mxu0 0.0
        %4604 = vmatpush1.msra.mxu0 0.0
        %4605 = vmatprep.subr.mxu0 0.0
        %4606 = vmatpush1.msra.mxu0 0.0
        %4607 = vmatprep.subr.mxu0 0.0
        %4608 = vmatpush1.msra.mxu0 0.0
        %4609 = vmatprep.subr.mxu0 0.0
        %4610 = vmatpush1.msra.mxu0 0.0
        %4611 = vmatprep.subr.mxu0 0.0
        %4612 = vmatpush1.msra.mxu0 0.0
        %4613 = vmatprep.subr.mxu0 0.0
        %4614 = vmatpush1.msra.mxu0 0.0
        %4615 = vmatprep.subr.mxu0 0.0
        %4616 = vmatpush1.msra.mxu0 0.0
        %4617 = vmatprep.subr.mxu0 0.0
        %4618 = vmatpush1.msra.mxu0 0.0
        %4619 = vmatprep.subr.mxu0 0.0
        %4620 = vmatpush1.msra.mxu0 0.0
        %4621 = vmatprep.subr.mxu0 0.0
        %4622 = vmatpush1.msra.mxu0 0.0
        %4623 = vmatprep.subr.mxu0 0.0
        %4624 = vmatpush1.msra.mxu0 0.0
        %4625 = vmatprep.subr.mxu0 0.0
        %4626 = vmatpush1.msra.mxu0 0.0
        %4627 = vmatprep.subr.mxu0 0.0
        %4628 = vmatpush1.msra.mxu0 0.0
        %4629 = vmatprep.subr.mxu0 0.0
        %4630 = vmatpush1.msra.mxu0 0.0
        %4631 = vmatprep.subr.mxu0 0.0
        %4632 = vmatpush1.msra.mxu0 %v2253
        %4633 = vmatprep.subr.mxu0 0.0
        %4634 = vmatpush2.msra.mxu0 0.0
        %4635 = vmatprep.subr.mxu0 0.0
        %4636 = vmatpush2.msra.mxu0 0.0
        %4637 = vmatprep.subr.mxu0 0.0
        %4638 = vmatpush2.msra.mxu0 0.0
        %4639 = vmatprep.subr.mxu0 0.0
        %4640 = vmatpush2.msra.mxu0 0.0
        %4641 = vmatprep.subr.mxu0 0.0
        %4642 = vmatpush2.msra.mxu0 0.0
        %4643 = vmatprep.subr.mxu0 0.0
        %4644 = vmatpush2.msra.mxu0 0.0
        %4645 = vmatprep.subr.mxu0 0.0
        %4646 = vmatpush2.msra.mxu0 0.0
        %4647 = vmatprep.subr.mxu0 0.0
        %4648 = vmatpush2.msra.mxu0 0.0
        %4649 = vmatprep.subr.mxu0 0.0
        %4650 = vmatpush2.msra.mxu0 0.0
        %4651 = vmatprep.subr.mxu0 0.0
        %4652 = vmatpush2.msra.mxu0 0.0
        %4653 = vmatprep.subr.mxu0 0.0
        %4654 = vmatpush2.msra.mxu0 0.0
        %4655 = vmatprep.subr.mxu0 0.0
        %4656 = vmatpush2.msra.mxu0 0.0
        %4657 = vmatprep.subr.mxu0 0.0
        %4658 = vmatpush2.msra.mxu0 0.0
        %4659 = vmatprep.subr.mxu0 0.0
        %4660 = vmatpush2.msra.mxu0 0.0
        %4661 = vmatprep.subr.mxu0 0.0
        %4662 = vmatpush2.msra.mxu0 0.0
        %4663 = vmatprep.subr.mxu0 0.0
        %4664 = vmatpush2.msra.mxu0 0.0
        %4665 = vmatprep.mubr.f32.mxu0 0.0
        %4666 = vmatmul.mubr.f32.gmra.mxu0 %v4599
        %v4667 = vpop.f32.mrf.mxu0
        %v4668 = vadd.f32 0.0, %v4667
        %v4669 = vpop.f32.mrf.mxu0
        %4670 = vdwg.mxu0
        %v4672 = vsel %vm2256, %v3647, 0
        %4674 = vmatprep.subr.mxu0 0.0
        %4675 = vmatpush1.msra.mxu0 0.0
        %4676 = vmatprep.subr.mxu0 0.0
        %4677 = vmatpush1.msra.mxu0 0.0
        %4678 = vmatprep.subr.mxu0 0.0
        %4679 = vmatpush1.msra.mxu0 0.0
        %4680 = vmatprep.subr.mxu0 0.0
        %4681 = vmatpush1.msra.mxu0 0.0
        %4682 = vmatprep.subr.mxu0 0.0
        %4683 = vmatpush1.msra.mxu0 0.0
        %4684 = vmatprep.subr.mxu0 0.0
        %4685 = vmatpush1.msra.mxu0 0.0
        %4686 = vmatprep.subr.mxu0 0.0
        %4687 = vmatpush1.msra.mxu0 0.0
        %4688 = vmatprep.subr.mxu0 0.0
        %4689 = vmatpush1.msra.mxu0 0.0
        %4690 = vmatprep.subr.mxu0 0.0
        %4691 = vmatpush1.msra.mxu0 0.0
        %4692 = vmatprep.subr.mxu0 0.0
        %4693 = vmatpush1.msra.mxu0 0.0
        %4694 = vmatprep.subr.mxu0 0.0
        %4695 = vmatpush1.msra.mxu0 0.0
        %4696 = vmatprep.subr.mxu0 0.0
        %4697 = vmatpush1.msra.mxu0 0.0
        %4698 = vmatprep.subr.mxu0 0.0
        %4699 = vmatpush1.msra.mxu0 0.0
        %4700 = vmatprep.subr.mxu0 0.0
        %4701 = vmatpush1.msra.mxu0 0.0
        %4702 = vmatprep.subr.mxu0 0.0
        %4703 = vmatpush1.msra.mxu0 0.0
        %4704 = vmatprep.subr.mxu0 0.0
        %4705 = vmatpush1.msra.mxu0 %v2254
        %4706 = vmatprep.subr.mxu0 0.0
        %4707 = vmatpush2.msra.mxu0 0.0
        %4708 = vmatprep.subr.mxu0 0.0
        %4709 = vmatpush2.msra.mxu0 0.0
        %4710 = vmatprep.subr.mxu0 0.0
        %4711 = vmatpush2.msra.mxu0 0.0
        %4712 = vmatprep.subr.mxu0 0.0
        %4713 = vmatpush2.msra.mxu0 0.0
        %4714 = vmatprep.subr.mxu0 0.0
        %4715 = vmatpush2.msra.mxu0 0.0
        %4716 = vmatprep.subr.mxu0 0.0
        %4717 = vmatpush2.msra.mxu0 0.0
        %4718 = vmatprep.subr.mxu0 0.0
        %4719 = vmatpush2.msra.mxu0 0.0
        %4720 = vmatprep.subr.mxu0 0.0
        %4721 = vmatpush2.msra.mxu0 0.0
        %4722 = vmatprep.subr.mxu0 0.0
        %4723 = vmatpush2.msra.mxu0 0.0
        %4724 = vmatprep.subr.mxu0 0.0
        %4725 = vmatpush2.msra.mxu0 0.0
        %4726 = vmatprep.subr.mxu0 0.0
        %4727 = vmatpush2.msra.mxu0 0.0
        %4728 = vmatprep.subr.mxu0 0.0
        %4729 = vmatpush2.msra.mxu0 0.0
        %4730 = vmatprep.subr.mxu0 0.0
        %4731 = vmatpush2.msra.mxu0 0.0
        %4732 = vmatprep.subr.mxu0 0.0
        %4733 = vmatpush2.msra.mxu0 0.0
        %4734 = vmatprep.subr.mxu0 0.0
        %4735 = vmatpush2.msra.mxu0 0.0
        %4736 = vmatprep.subr.mxu0 0.0
        %4737 = vmatpush2.msra.mxu0 0.0
        %4738 = vmatprep.mubr.f32.mxu0 0.0
        %4739 = vmatmul.mubr.f32.gmra.mxu0 %v4672
        %v4740 = vpop.f32.mrf.mxu0
        %v4741 = vadd.f32 0.0, %v4740
        %v4742 = vpop.f32.mrf.mxu0
        %4743 = vdwg.mxu0
        %v4745 = vsel %vm2256, %v3648, 0
        %4747 = vmatprep.subr.mxu0 0.0
        %4748 = vmatpush1.msra.mxu0 0.0
        %4749 = vmatprep.subr.mxu0 0.0
        %4750 = vmatpush1.msra.mxu0 0.0
        %4751 = vmatprep.subr.mxu0 0.0
        %4752 = vmatpush1.msra.mxu0 0.0
        %4753 = vmatprep.subr.mxu0 0.0
        %4754 = vmatpush1.msra.mxu0 0.0
        %4755 = vmatprep.subr.mxu0 0.0
        %4756 = vmatpush1.msra.mxu0 0.0
        %4757 = vmatprep.subr.mxu0 0.0
        %4758 = vmatpush1.msra.mxu0 0.0
        %4759 = vmatprep.subr.mxu0 0.0
        %4760 = vmatpush1.msra.mxu0 0.0
        %4761 = vmatprep.subr.mxu0 0.0
        %4762 = vmatpush1.msra.mxu0 0.0
        %4763 = vmatprep.subr.mxu0 0.0
        %4764 = vmatpush1.msra.mxu0 0.0
        %4765 = vmatprep.subr.mxu0 0.0
        %4766 = vmatpush1.msra.mxu0 0.0
        %4767 = vmatprep.subr.mxu0 0.0
        %4768 = vmatpush1.msra.mxu0 0.0
        %4769 = vmatprep.subr.mxu0 0.0
        %4770 = vmatpush1.msra.mxu0 0.0
        %4771 = vmatprep.subr.mxu0 0.0
        %4772 = vmatpush1.msra.mxu0 0.0
        %4773 = vmatprep.subr.mxu0 0.0
        %4774 = vmatpush1.msra.mxu0 0.0
        %4775 = vmatprep.subr.mxu0 0.0
        %4776 = vmatpush1.msra.mxu0 0.0
        %4777 = vmatprep.subr.mxu0 0.0
        %4778 = vmatpush1.msra.mxu0 %v2255
        %4779 = vmatprep.subr.mxu0 0.0
        %4780 = vmatpush2.msra.mxu0 0.0
        %4781 = vmatprep.subr.mxu0 0.0
        %4782 = vmatpush2.msra.mxu0 0.0
        %4783 = vmatprep.subr.mxu0 0.0
        %4784 = vmatpush2.msra.mxu0 0.0
        %4785 = vmatprep.subr.mxu0 0.0
        %4786 = vmatpush2.msra.mxu0 0.0
        %4787 = vmatprep.subr.mxu0 0.0
        %4788 = vmatpush2.msra.mxu0 0.0
        %4789 = vmatprep.subr.mxu0 0.0
        %4790 = vmatpush2.msra.mxu0 0.0
        %4791 = vmatprep.subr.mxu0 0.0
        %4792 = vmatpush2.msra.mxu0 0.0
        %4793 = vmatprep.subr.mxu0 0.0
        %4794 = vmatpush2.msra.mxu0 0.0
        %4795 = vmatprep.subr.mxu0 0.0
        %4796 = vmatpush2.msra.mxu0 0.0
        %4797 = vmatprep.subr.mxu0 0.0
        %4798 = vmatpush2.msra.mxu0 0.0
        %4799 = vmatprep.subr.mxu0 0.0
        %4800 = vmatpush2.msra.mxu0 0.0
        %4801 = vmatprep.subr.mxu0 0.0
        %4802 = vmatpush2.msra.mxu0 0.0
        %4803 = vmatprep.subr.mxu0 0.0
        %4804 = vmatpush2.msra.mxu0 0.0
        %4805 = vmatprep.subr.mxu0 0.0
        %4806 = vmatpush2.msra.mxu0 0.0
        %4807 = vmatprep.subr.mxu0 0.0
        %4808 = vmatpush2.msra.mxu0 0.0
        %4809 = vmatprep.subr.mxu0 0.0
        %4810 = vmatpush2.msra.mxu0 0.0
        %4811 = vmatprep.mubr.f32.mxu0 0.0
        %4812 = vmatmul.mubr.f32.gmra.mxu0 %v4745
        %v4813 = vpop.f32.mrf.mxu0
        %v4814 = vadd.f32 0.0, %v4813
        %v4815 = vpop.f32.mrf.mxu0
        %4816 = vdwg.mxu0
        %v4817 = vcombine.low %v3719, %v3865
        %v4818 = vcombine.high %v3719, %v3865
        %v4820 = vunpack.c.l.s4 1983009808
        %v4821 = vunpack.c.0.s8 %v4820
        %v4822 = vlaneseq
        %v4823 = vshrl.u32 %v4822, 7
        %v4824 = vsub.s32 %v4821, %v4823
        %v4825 = vrot.slane %v4817, %v4824
        %v4827 = vunpack.c.l.s4 1983009808
        %v4828 = vunpack.c.0.s8 %v4827
        %v4829 = vlaneseq
        %v4830 = vshrl.u32 %v4829, 7
        %v4831 = vsub.s32 %v4828, %v4830
        %v4832 = vrot.slane %v4818, %v4831
        %v4833 = vcombine.low %v3792, %v3938
        %v4834 = vcombine.high %v3792, %v3938
        %v4836 = vunpack.c.l.s4 1983009808
        %v4837 = vunpack.c.0.s8 %v4836
        %v4838 = vlaneseq
        %v4839 = vshrl.u32 %v4838, 7
        %v4840 = vsub.s32 %v4837, %v4839
        %v4841 = vrot.slane %v4833, %v4840
        %v4843 = vunpack.c.l.s4 1983009808
        %v4844 = vunpack.c.0.s8 %v4843
        %v4845 = vlaneseq
        %v4846 = vshrl.u32 %v4845, 7
        %v4847 = vsub.s32 %v4844, %v4846
        %v4848 = vrot.slane %v4834, %v4847
        %v4849 = vcombine.low %v4011, %v4157
        %v4850 = vcombine.high %v4011, %v4157
        %v4852 = vunpack.c.l.s4 1983009808
        %v4853 = vunpack.c.0.s8 %v4852
        %v4854 = vlaneseq
        %v4855 = vshrl.u32 %v4854, 7
        %v4856 = vsub.s32 %v4853, %v4855
        %v4857 = vrot.slane %v4849, %v4856
        %v4859 = vunpack.c.l.s4 1983009808
        %v4860 = vunpack.c.0.s8 %v4859
        %v4861 = vlaneseq
        %v4862 = vshrl.u32 %v4861, 7
        %v4863 = vsub.s32 %v4860, %v4862
        %v4864 = vrot.slane %v4850, %v4863
        %v4865 = vcombine.low %v4084, %v4230
        %v4866 = vcombine.high %v4084, %v4230
        %v4868 = vunpack.c.l.s4 1983009808
        %v4869 = vunpack.c.0.s8 %v4868
        %v4870 = vlaneseq
        %v4871 = vshrl.u32 %v4870, 7
        %v4872 = vsub.s32 %v4869, %v4871
        %v4873 = vrot.slane %v4865, %v4872
        %v4875 = vunpack.c.l.s4 1983009808
        %v4876 = vunpack.c.0.s8 %v4875
        %v4877 = vlaneseq
        %v4878 = vshrl.u32 %v4877, 7
        %v4879 = vsub.s32 %v4876, %v4878
        %v4880 = vrot.slane %v4866, %v4879
        %v4881 = vcombine.low %v4825, %v4841
        %v4882 = vcombine.high %v4825, %v4841
        %v4884 = vunpack.c.l.s4 1934713408
        %v4885 = vunpack.c.0.s8 %v4884
        %v4886 = vlaneseq
        %v4887 = vshrl.u32 %v4886, 7
        %v4888 = vsub.s32 %v4885, %v4887
        %v4889 = vrot.slane %v4881, %v4888
        %v4891 = vunpack.c.l.s4 1934713408
        %v4892 = vunpack.c.0.s8 %v4891
        %v4893 = vlaneseq
        %v4894 = vshrl.u32 %v4893, 7
        %v4895 = vsub.s32 %v4892, %v4894
        %v4896 = vrot.slane %v4882, %v4895
        %v4897 = vcombine.low %v4832, %v4848
        %v4898 = vcombine.high %v4832, %v4848
        %v4900 = vunpack.c.l.s4 1934713408
        %v4901 = vunpack.c.0.s8 %v4900
        %v4902 = vlaneseq
        %v4903 = vshrl.u32 %v4902, 7
        %v4904 = vsub.s32 %v4901, %v4903
        %v4905 = vrot.slane %v4897, %v4904
        %v4907 = vunpack.c.l.s4 1934713408
        %v4908 = vunpack.c.0.s8 %v4907
        %v4909 = vlaneseq
        %v4910 = vshrl.u32 %v4909, 7
        %v4911 = vsub.s32 %v4908, %v4910
        %v4912 = vrot.slane %v4898, %v4911
        %v4913 = vcombine.low %v4857, %v4873
        %v4914 = vcombine.high %v4857, %v4873
        %v4916 = vunpack.c.l.s4 1934713408
        %v4917 = vunpack.c.0.s8 %v4916
        %v4918 = vlaneseq
        %v4919 = vshrl.u32 %v4918, 7
        %v4920 = vsub.s32 %v4917, %v4919
        %v4921 = vrot.slane %v4913, %v4920
        %v4923 = vunpack.c.l.s4 1934713408
        %v4924 = vunpack.c.0.s8 %v4923
        %v4925 = vlaneseq
        %v4926 = vshrl.u32 %v4925, 7
        %v4927 = vsub.s32 %v4924, %v4926
        %v4928 = vrot.slane %v4914, %v4927
        %v4929 = vcombine.low %v4864, %v4880
        %v4930 = vcombine.high %v4864, %v4880
        %v4932 = vunpack.c.l.s4 1934713408
        %v4933 = vunpack.c.0.s8 %v4932
        %v4934 = vlaneseq
        %v4935 = vshrl.u32 %v4934, 7
        %v4936 = vsub.s32 %v4933, %v4935
        %v4937 = vrot.slane %v4929, %v4936
        %v4939 = vunpack.c.l.s4 1934713408
        %v4940 = vunpack.c.0.s8 %v4939
        %v4941 = vlaneseq
        %v4942 = vshrl.u32 %v4941, 7
        %v4943 = vsub.s32 %v4940, %v4942
        %v4944 = vrot.slane %v4930, %v4943
        %v4945 = vcombine.low %v4889, %v4921
        %v4946 = vcombine.high %v4889, %v4921
        %v4947 = vcombine.low %v4896, %v4928
        %v4948 = vcombine.high %v4896, %v4928
        %v4949 = vcombine.low %v4905, %v4937
        %v4950 = vcombine.high %v4905, %v4937
        %v4951 = vcombine.low %v4912, %v4944
        %v4952 = vcombine.high %v4912, %v4944
        %v4953 = vcombine.low %v4303, %v4449
        %v4954 = vcombine.high %v4303, %v4449
        %v4956 = vunpack.c.l.s4 1983009808
        %v4957 = vunpack.c.0.s8 %v4956
        %v4958 = vlaneseq
        %v4959 = vshrl.u32 %v4958, 7
        %v4960 = vsub.s32 %v4957, %v4959
        %v4961 = vrot.slane %v4953, %v4960
        %v4963 = vunpack.c.l.s4 1983009808
        %v4964 = vunpack.c.0.s8 %v4963
        %v4965 = vlaneseq
        %v4966 = vshrl.u32 %v4965, 7
        %v4967 = vsub.s32 %v4964, %v4966
        %v4968 = vrot.slane %v4954, %v4967
        %v4969 = vcombine.low %v4376, %v4522
        %v4970 = vcombine.high %v4376, %v4522
        %v4972 = vunpack.c.l.s4 1983009808
        %v4973 = vunpack.c.0.s8 %v4972
        %v4974 = vlaneseq
        %v4975 = vshrl.u32 %v4974, 7
        %v4976 = vsub.s32 %v4973, %v4975
        %v4977 = vrot.slane %v4969, %v4976
        %v4979 = vunpack.c.l.s4 1983009808
        %v4980 = vunpack.c.0.s8 %v4979
        %v4981 = vlaneseq
        %v4982 = vshrl.u32 %v4981, 7
        %v4983 = vsub.s32 %v4980, %v4982
        %v4984 = vrot.slane %v4970, %v4983
        %v4985 = vcombine.low %v4595, %v4741
        %v4986 = vcombine.high %v4595, %v4741
        %v4988 = vunpack.c.l.s4 1983009808
        %v4989 = vunpack.c.0.s8 %v4988
        %v4990 = vlaneseq
        %v4991 = vshrl.u32 %v4990, 7
        %v4992 = vsub.s32 %v4989, %v4991
        %v4993 = vrot.slane %v4985, %v4992
        %v4995 = vunpack.c.l.s4 1983009808
        %v4996 = vunpack.c.0.s8 %v4995
        %v4997 = vlaneseq
        %v4998 = vshrl.u32 %v4997, 7
        %v4999 = vsub.s32 %v4996, %v4998
        %v5000 = vrot.slane %v4986, %v4999
        %v5001 = vcombine.low %v4668, %v4814
        %v5002 = vcombine.high %v4668, %v4814
        %v5004 = vunpack.c.l.s4 1983009808
        %v5005 = vunpack.c.0.s8 %v5004
        %v5006 = vlaneseq
        %v5007 = vshrl.u32 %v5006, 7
        %v5008 = vsub.s32 %v5005, %v5007
        %v5009 = vrot.slane %v5001, %v5008
        %v5011 = vunpack.c.l.s4 1983009808
        %v5012 = vunpack.c.0.s8 %v5011
        %v5013 = vlaneseq
        %v5014 = vshrl.u32 %v5013, 7
        %v5015 = vsub.s32 %v5012, %v5014
        %v5016 = vrot.slane %v5002, %v5015
        %v5017 = vcombine.low %v4961, %v4977
        %v5018 = vcombine.high %v4961, %v4977
        %v5020 = vunpack.c.l.s4 1934713408
        %v5021 = vunpack.c.0.s8 %v5020
        %v5022 = vlaneseq
        %v5023 = vshrl.u32 %v5022, 7
        %v5024 = vsub.s32 %v5021, %v5023
        %v5025 = vrot.slane %v5017, %v5024
        %v5027 = vunpack.c.l.s4 1934713408
        %v5028 = vunpack.c.0.s8 %v5027
        %v5029 = vlaneseq
        %v5030 = vshrl.u32 %v5029, 7
        %v5031 = vsub.s32 %v5028, %v5030
        %v5032 = vrot.slane %v5018, %v5031
        %v5033 = vcombine.low %v4968, %v4984
        %v5034 = vcombine.high %v4968, %v4984
        %v5036 = vunpack.c.l.s4 1934713408
        %v5037 = vunpack.c.0.s8 %v5036
        %v5038 = vlaneseq
        %v5039 = vshrl.u32 %v5038, 7
        %v5040 = vsub.s32 %v5037, %v5039
        %v5041 = vrot.slane %v5033, %v5040
        %v5043 = vunpack.c.l.s4 1934713408
        %v5044 = vunpack.c.0.s8 %v5043
        %v5045 = vlaneseq
        %v5046 = vshrl.u32 %v5045, 7
        %v5047 = vsub.s32 %v5044, %v5046
        %v5048 = vrot.slane %v5034, %v5047
        %v5049 = vcombine.low %v4993, %v5009
        %v5050 = vcombine.high %v4993, %v5009
        %v5052 = vunpack.c.l.s4 1934713408
        %v5053 = vunpack.c.0.s8 %v5052
        %v5054 = vlaneseq
        %v5055 = vshrl.u32 %v5054, 7
        %v5056 = vsub.s32 %v5053, %v5055
        %v5057 = vrot.slane %v5049, %v5056
        %v5059 = vunpack.c.l.s4 1934713408
        %v5060 = vunpack.c.0.s8 %v5059
        %v5061 = vlaneseq
        %v5062 = vshrl.u32 %v5061, 7
        %v5063 = vsub.s32 %v5060, %v5062
        %v5064 = vrot.slane %v5050, %v5063
        %v5065 = vcombine.low %v5000, %v5016
        %v5066 = vcombine.high %v5000, %v5016
        %v5068 = vunpack.c.l.s4 1934713408
        %v5069 = vunpack.c.0.s8 %v5068
        %v5070 = vlaneseq
        %v5071 = vshrl.u32 %v5070, 7
        %v5072 = vsub.s32 %v5069, %v5071
        %v5073 = vrot.slane %v5065, %v5072
        %v5075 = vunpack.c.l.s4 1934713408
        %v5076 = vunpack.c.0.s8 %v5075
        %v5077 = vlaneseq
        %v5078 = vshrl.u32 %v5077, 7
        %v5079 = vsub.s32 %v5076, %v5078
        %v5080 = vrot.slane %v5066, %v5079
        %v5081 = vcombine.low %v5025, %v5057
        %v5082 = vcombine.high %v5025, %v5057
        %v5083 = vcombine.low %v5032, %v5064
        %v5084 = vcombine.high %v5032, %v5064
        %v5085 = vcombine.low %v5041, %v5073
        %v5086 = vcombine.high %v5041, %v5073
        %v5087 = vcombine.low %v5048, %v5080
        %v5088 = vcombine.high %v5048, %v5080
        %v5089 = vcombine.low %v4945, %v4947
        %v5090 = vcombine.high %v4945, %v4947
        %v5092 = vunpack.c.l.s4 1983009808
        %v5093 = vunpack.c.0.s8 %v5092
        %v5094 = vlaneseq
        %v5095 = vshrl.u32 %v5094, 7
        %v5096 = vsub.s32 %v5093, %v5095
        %v5097 = vrot.slane %v5089, %v5096
        %v5099 = vunpack.c.l.s4 1983009808
        %v5100 = vunpack.c.0.s8 %v5099
        %v5101 = vlaneseq
        %v5102 = vshrl.u32 %v5101, 7
        %v5103 = vsub.s32 %v5100, %v5102
        %v5104 = vrot.slane %v5090, %v5103
        %v5105 = vcombine.low %v4946, %v4948
        %v5106 = vcombine.high %v4946, %v4948
        %v5108 = vunpack.c.l.s4 1983009808
        %v5109 = vunpack.c.0.s8 %v5108
        %v5110 = vlaneseq
        %v5111 = vshrl.u32 %v5110, 7
        %v5112 = vsub.s32 %v5109, %v5111
        %v5113 = vrot.slane %v5105, %v5112
        %v5115 = vunpack.c.l.s4 1983009808
        %v5116 = vunpack.c.0.s8 %v5115
        %v5117 = vlaneseq
        %v5118 = vshrl.u32 %v5117, 7
        %v5119 = vsub.s32 %v5116, %v5118
        %v5120 = vrot.slane %v5106, %v5119
        %v5121 = vcombine.low %v4949, %v4951
        %v5122 = vcombine.high %v4949, %v4951
        %v5124 = vunpack.c.l.s4 1983009808
        %v5125 = vunpack.c.0.s8 %v5124
        %v5126 = vlaneseq
        %v5127 = vshrl.u32 %v5126, 7
        %v5128 = vsub.s32 %v5125, %v5127
        %v5129 = vrot.slane %v5121, %v5128
        %v5131 = vunpack.c.l.s4 1983009808
        %v5132 = vunpack.c.0.s8 %v5131
        %v5133 = vlaneseq
        %v5134 = vshrl.u32 %v5133, 7
        %v5135 = vsub.s32 %v5132, %v5134
        %v5136 = vrot.slane %v5122, %v5135
        %v5137 = vcombine.low %v4950, %v4952
        %v5138 = vcombine.high %v4950, %v4952
        %v5140 = vunpack.c.l.s4 1983009808
        %v5141 = vunpack.c.0.s8 %v5140
        %v5142 = vlaneseq
        %v5143 = vshrl.u32 %v5142, 7
        %v5144 = vsub.s32 %v5141, %v5143
        %v5145 = vrot.slane %v5137, %v5144
        %v5147 = vunpack.c.l.s4 1983009808
        %v5148 = vunpack.c.0.s8 %v5147
        %v5149 = vlaneseq
        %v5150 = vshrl.u32 %v5149, 7
        %v5151 = vsub.s32 %v5148, %v5150
        %v5152 = vrot.slane %v5138, %v5151
        %v5153 = vcombine.low %v5097, %v5113
        %v5154 = vcombine.high %v5097, %v5113
        %v5156 = vunpack.c.l.s4 1934713408
        %v5157 = vunpack.c.0.s8 %v5156
        %v5158 = vlaneseq
        %v5159 = vshrl.u32 %v5158, 7
        %v5160 = vsub.s32 %v5157, %v5159
        %v5161 = vrot.slane %v5153, %v5160
        %v5163 = vunpack.c.l.s4 1934713408
        %v5164 = vunpack.c.0.s8 %v5163
        %v5165 = vlaneseq
        %v5166 = vshrl.u32 %v5165, 7
        %v5167 = vsub.s32 %v5164, %v5166
        %v5168 = vrot.slane %v5154, %v5167
        %v5169 = vcombine.low %v5104, %v5120
        %v5170 = vcombine.high %v5104, %v5120
        %v5172 = vunpack.c.l.s4 1934713408
        %v5173 = vunpack.c.0.s8 %v5172
        %v5174 = vlaneseq
        %v5175 = vshrl.u32 %v5174, 7
        %v5176 = vsub.s32 %v5173, %v5175
        %v5177 = vrot.slane %v5169, %v5176
        %v5179 = vunpack.c.l.s4 1934713408
        %v5180 = vunpack.c.0.s8 %v5179
        %v5181 = vlaneseq
        %v5182 = vshrl.u32 %v5181, 7
        %v5183 = vsub.s32 %v5180, %v5182
        %v5184 = vrot.slane %v5170, %v5183
        %v5185 = vcombine.low %v5129, %v5145
        %v5186 = vcombine.high %v5129, %v5145
        %v5188 = vunpack.c.l.s4 1934713408
        %v5189 = vunpack.c.0.s8 %v5188
        %v5190 = vlaneseq
        %v5191 = vshrl.u32 %v5190, 7
        %v5192 = vsub.s32 %v5189, %v5191
        %v5193 = vrot.slane %v5185, %v5192
        %v5195 = vunpack.c.l.s4 1934713408
        %v5196 = vunpack.c.0.s8 %v5195
        %v5197 = vlaneseq
        %v5198 = vshrl.u32 %v5197, 7
        %v5199 = vsub.s32 %v5196, %v5198
        %v5200 = vrot.slane %v5186, %v5199
        %v5201 = vcombine.low %v5136, %v5152
        %v5202 = vcombine.high %v5136, %v5152
        %v5204 = vunpack.c.l.s4 1934713408
        %v5205 = vunpack.c.0.s8 %v5204
        %v5206 = vlaneseq
        %v5207 = vshrl.u32 %v5206, 7
        %v5208 = vsub.s32 %v5205, %v5207
        %v5209 = vrot.slane %v5201, %v5208
        %v5211 = vunpack.c.l.s4 1934713408
        %v5212 = vunpack.c.0.s8 %v5211
        %v5213 = vlaneseq
        %v5214 = vshrl.u32 %v5213, 7
        %v5215 = vsub.s32 %v5212, %v5214
        %v5216 = vrot.slane %v5202, %v5215
        %v5217 = vcombine.low %v5161, %v5193
        %v5218 = vcombine.high %v5161, %v5193
        %v5219 = vcombine.low %v5168, %v5200
        %v5220 = vcombine.high %v5168, %v5200
        %v5221 = vcombine.low %v5177, %v5209
        %v5222 = vcombine.high %v5177, %v5209
        %v5223 = vcombine.low %v5184, %v5216
        %v5224 = vcombine.high %v5184, %v5216
        %v5225 = vcombine.low %v5081, %v5083
        %v5226 = vcombine.high %v5081, %v5083
        %v5228 = vunpack.c.l.s4 1983009808
        %v5229 = vunpack.c.0.s8 %v5228
        %v5230 = vlaneseq
        %v5231 = vshrl.u32 %v5230, 7
        %v5232 = vsub.s32 %v5229, %v5231
        %v5233 = vrot.slane %v5225, %v5232
        %v5235 = vunpack.c.l.s4 1983009808
        %v5236 = vunpack.c.0.s8 %v5235
        %v5237 = vlaneseq
        %v5238 = vshrl.u32 %v5237, 7
        %v5239 = vsub.s32 %v5236, %v5238
        %v5240 = vrot.slane %v5226, %v5239
        %v5241 = vcombine.low %v5082, %v5084
        %v5242 = vcombine.high %v5082, %v5084
        %v5244 = vunpack.c.l.s4 1983009808
        %v5245 = vunpack.c.0.s8 %v5244
        %v5246 = vlaneseq
        %v5247 = vshrl.u32 %v5246, 7
        %v5248 = vsub.s32 %v5245, %v5247
        %v5249 = vrot.slane %v5241, %v5248
        %v5251 = vunpack.c.l.s4 1983009808
        %v5252 = vunpack.c.0.s8 %v5251
        %v5253 = vlaneseq
        %v5254 = vshrl.u32 %v5253, 7
        %v5255 = vsub.s32 %v5252, %v5254
        %v5256 = vrot.slane %v5242, %v5255
        %v5257 = vcombine.low %v5085, %v5087
        %v5258 = vcombine.high %v5085, %v5087
        %v5260 = vunpack.c.l.s4 1983009808
        %v5261 = vunpack.c.0.s8 %v5260
        %v5262 = vlaneseq
        %v5263 = vshrl.u32 %v5262, 7
        %v5264 = vsub.s32 %v5261, %v5263
        %v5265 = vrot.slane %v5257, %v5264
        %v5267 = vunpack.c.l.s4 1983009808
        %v5268 = vunpack.c.0.s8 %v5267
        %v5269 = vlaneseq
        %v5270 = vshrl.u32 %v5269, 7
        %v5271 = vsub.s32 %v5268, %v5270
        %v5272 = vrot.slane %v5258, %v5271
        %v5273 = vcombine.low %v5086, %v5088
        %v5274 = vcombine.high %v5086, %v5088
        %v5276 = vunpack.c.l.s4 1983009808
        %v5277 = vunpack.c.0.s8 %v5276
        %v5278 = vlaneseq
        %v5279 = vshrl.u32 %v5278, 7
        %v5280 = vsub.s32 %v5277, %v5279
        %v5281 = vrot.slane %v5273, %v5280
        %v5283 = vunpack.c.l.s4 1983009808
        %v5284 = vunpack.c.0.s8 %v5283
        %v5285 = vlaneseq
        %v5286 = vshrl.u32 %v5285, 7
        %v5287 = vsub.s32 %v5284, %v5286
        %v5288 = vrot.slane %v5274, %v5287
        %v5289 = vcombine.low %v5233, %v5249
        %v5290 = vcombine.high %v5233, %v5249
        %v5292 = vunpack.c.l.s4 1934713408
        %v5293 = vunpack.c.0.s8 %v5292
        %v5294 = vlaneseq
        %v5295 = vshrl.u32 %v5294, 7
        %v5296 = vsub.s32 %v5293, %v5295
        %v5297 = vrot.slane %v5289, %v5296
        %v5299 = vunpack.c.l.s4 1934713408
        %v5300 = vunpack.c.0.s8 %v5299
        %v5301 = vlaneseq
        %v5302 = vshrl.u32 %v5301, 7
        %v5303 = vsub.s32 %v5300, %v5302
        %v5304 = vrot.slane %v5290, %v5303
        %v5305 = vcombine.low %v5240, %v5256
        %v5306 = vcombine.high %v5240, %v5256
        %v5308 = vunpack.c.l.s4 1934713408
        %v5309 = vunpack.c.0.s8 %v5308
        %v5310 = vlaneseq
        %v5311 = vshrl.u32 %v5310, 7
        %v5312 = vsub.s32 %v5309, %v5311
        %v5313 = vrot.slane %v5305, %v5312
        %v5315 = vunpack.c.l.s4 1934713408
        %v5316 = vunpack.c.0.s8 %v5315
        %v5317 = vlaneseq
        %v5318 = vshrl.u32 %v5317, 7
        %v5319 = vsub.s32 %v5316, %v5318
        %v5320 = vrot.slane %v5306, %v5319
        %v5321 = vcombine.low %v5265, %v5281
        %v5322 = vcombine.high %v5265, %v5281
        %v5324 = vunpack.c.l.s4 1934713408
        %v5325 = vunpack.c.0.s8 %v5324
        %v5326 = vlaneseq
        %v5327 = vshrl.u32 %v5326, 7
        %v5328 = vsub.s32 %v5325, %v5327
        %v5329 = vrot.slane %v5321, %v5328
        %v5331 = vunpack.c.l.s4 1934713408
        %v5332 = vunpack.c.0.s8 %v5331
        %v5333 = vlaneseq
        %v5334 = vshrl.u32 %v5333, 7
        %v5335 = vsub.s32 %v5332, %v5334
        %v5336 = vrot.slane %v5322, %v5335
        %v5337 = vcombine.low %v5272, %v5288
        %v5338 = vcombine.high %v5272, %v5288
        %v5340 = vunpack.c.l.s4 1934713408
        %v5341 = vunpack.c.0.s8 %v5340
        %v5342 = vlaneseq
        %v5343 = vshrl.u32 %v5342, 7
        %v5344 = vsub.s32 %v5341, %v5343
        %v5345 = vrot.slane %v5337, %v5344
        %v5347 = vunpack.c.l.s4 1934713408
        %v5348 = vunpack.c.0.s8 %v5347
        %v5349 = vlaneseq
        %v5350 = vshrl.u32 %v5349, 7
        %v5351 = vsub.s32 %v5348, %v5350
        %v5352 = vrot.slane %v5338, %v5351
        %v5353 = vcombine.low %v5297, %v5329
        %v5354 = vcombine.high %v5297, %v5329
        %v5355 = vcombine.low %v5304, %v5336
        %v5356 = vcombine.high %v5304, %v5336
        %v5357 = vcombine.low %v5313, %v5345
        %v5358 = vcombine.high %v5313, %v5345
        %v5359 = vcombine.low %v5320, %v5352
        %v5360 = vcombine.high %v5320, %v5352
        %5362 = vrot.lane.b32.xlu0 %v5218, 8
        %v5363 = vpop.permute.xlu0 %5362
        %5366 = vrot.lane.b32.xlu0 %v5219, 16
        %v5367 = vpop.permute.xlu0 %5366
        %5370 = vrot.lane.b32.xlu0 %v5220, 24
        %v5371 = vpop.permute.xlu0 %5370
        %5374 = vrot.lane.b32.xlu0 %v5221, 32
        %v5375 = vpop.permute.xlu0 %5374
        %5378 = vrot.lane.b32.xlu0 %v5222, 40
        %v5379 = vpop.permute.xlu0 %5378
        %5382 = vrot.lane.b32.xlu0 %v5223, 48
        %v5383 = vpop.permute.xlu0 %5382
        %5386 = vrot.lane.b32.xlu0 %v5224, 56
        %v5387 = vpop.permute.xlu0 %5386
        %5390 = vrot.lane.b32.xlu0 %v5353, 64
        %v5391 = vpop.permute.xlu0 %5390
        %5394 = vrot.lane.b32.xlu0 %v5354, 72
        %v5395 = vpop.permute.xlu0 %5394
        %5398 = vrot.lane.b32.xlu0 %v5355, 80
        %v5399 = vpop.permute.xlu0 %5398
        %5402 = vrot.lane.b32.xlu0 %v5356, 88
        %v5403 = vpop.permute.xlu0 %5402
        %5406 = vrot.lane.b32.xlu0 %v5357, 96
        %v5407 = vpop.permute.xlu0 %5406
        %5410 = vrot.lane.b32.xlu0 %v5358, 104
        %v5411 = vpop.permute.xlu0 %5410
        %5414 = vrot.lane.b32.xlu0 %v5359, 112
        %v5415 = vpop.permute.xlu0 %5414
        %5418 = vrot.lane.b32.xlu0 %v5360, 120
        %v5419 = vpop.permute.xlu0 %5418
        %v5421 = vsel %vm2256, %v5217, %v5363
        %vm5422 = vcmask 130048
        %v5423 = vsel %vm5422, %v5421, %v5367
        %vm5424 = vcmask 195584
        %v5425 = vsel %vm5424, %v5423, %v5371
        %vm5426 = vcmask 261120
        %v5427 = vsel %vm5426, %v5425, %v5375
        %vm5428 = vcmask 326656
        %v5429 = vsel %vm5428, %v5427, %v5379
        %vm5430 = vcmask 392192
        %v5431 = vsel %vm5430, %v5429, %v5383
        %vm5432 = vcmask 457728
        %v5433 = vsel %vm5432, %v5431, %v5387
        %vm5434 = vcmask 523264
        %v5435 = vsel %vm5434, %v5433, %v5391
        %vm5436 = vcmask 588800
        %v5437 = vsel %vm5436, %v5435, %v5395
        %vm5438 = vcmask 654336
        %v5439 = vsel %vm5438, %v5437, %v5399
        %vm5440 = vcmask 719872
        %v5441 = vsel %vm5440, %v5439, %v5403
        %vm5442 = vcmask 785408
        %v5443 = vsel %vm5442, %v5441, %v5407
        %vm5444 = vcmask 850944
        %v5445 = vsel %vm5444, %v5443, %v5411
        %vm5446 = vcmask 916480
        %v5447 = vsel %vm5446, %v5445, %v5415
        %vm5448 = vcmask 982016
        %v5449 = vsel %vm5448, %v5447, %v5419
        %v5450 = vld [vmem:[#allocation4] sm:$0xff]
        %v5451 = vld [vmem:[#allocation4 + $0x8] sm:$0xff]
        %v5452 = vld [vmem:[#allocation4 + $0x10] sm:$0xff]
        %v5453 = vld [vmem:[#allocation4 + $0x18] sm:$0xff]
        %v5454 = vld [vmem:[#allocation4 + $0x20] sm:$0xff]
        %v5455 = vld [vmem:[#allocation4 + $0x28] sm:$0xff]
        %v5456 = vld [vmem:[#allocation4 + $0x30] sm:$0xff]
        %v5457 = vld [vmem:[#allocation4 + $0x38] sm:$0xff]
        %v5458 = vld [vmem:[#allocation4 + $0x40] sm:$0xff]
        %v5459 = vld [vmem:[#allocation4 + $0x48] sm:$0xff]
        %v5460 = vld [vmem:[#allocation4 + $0x50] sm:$0xff]
        %v5461 = vld [vmem:[#allocation4 + $0x58] sm:$0xff]
        %v5462 = vld [vmem:[#allocation4 + $0x60] sm:$0xff]
        %v5463 = vld [vmem:[#allocation4 + $0x68] sm:$0xff]
        %v5464 = vld [vmem:[#allocation4 + $0x70] sm:$0xff]
        %v5465 = vld [vmem:[#allocation4 + $0x78] sm:$0xff]
        %v5466 = vld [vmem:[%s5] sm:$0x1]
        %v5468 = vlaneseq
        %v5469 = vshrl.u32 %v5468, 7
        %v5470 = vsub.s32 0, %v5469
        %v5471 = vrot.slane %v5466, %v5470
        %5473 = vmatprep.subr.mxu0 0.0
        %5474 = vmatpush1.msra.mxu0 %v5465
        %5475 = vmatprep.subr.mxu0 0.0
        %5476 = vmatpush1.msra.mxu0 %v5464
        %5477 = vmatprep.subr.mxu0 0.0
        %5478 = vmatpush1.msra.mxu0 %v5463
        %5479 = vmatprep.subr.mxu0 0.0
        %5480 = vmatpush1.msra.mxu0 %v5462
        %5481 = vmatprep.subr.mxu0 0.0
        %5482 = vmatpush1.msra.mxu0 %v5461
        %5483 = vmatprep.subr.mxu0 0.0
        %5484 = vmatpush1.msra.mxu0 %v5460
        %5485 = vmatprep.subr.mxu0 0.0
        %5486 = vmatpush1.msra.mxu0 %v5459
        %5487 = vmatprep.subr.mxu0 0.0
        %5488 = vmatpush1.msra.mxu0 %v5458
        %5489 = vmatprep.subr.mxu0 0.0
        %5490 = vmatpush1.msra.mxu0 %v5457
        %5491 = vmatprep.subr.mxu0 0.0
        %5492 = vmatpush1.msra.mxu0 %v5456
        %5493 = vmatprep.subr.mxu0 0.0
        %5494 = vmatpush1.msra.mxu0 %v5455
        %5495 = vmatprep.subr.mxu0 0.0
        %5496 = vmatpush1.msra.mxu0 %v5454
        %5497 = vmatprep.subr.mxu0 0.0
        %5498 = vmatpush1.msra.mxu0 %v5453
        %5499 = vmatprep.subr.mxu0 0.0
        %5500 = vmatpush1.msra.mxu0 %v5452
        %5501 = vmatprep.subr.mxu0 0.0
        %5502 = vmatpush1.msra.mxu0 %v5451
        %5503 = vmatprep.subr.mxu0 0.0
        %5504 = vmatpush1.msra.mxu0 %v5450
        %5505 = vmatprep.subr.mxu0 0.0
        %5506 = vmatpush2.msra.mxu0 0.0
        %5507 = vmatprep.subr.mxu0 0.0
        %5508 = vmatpush2.msra.mxu0 0.0
        %5509 = vmatprep.subr.mxu0 0.0
        %5510 = vmatpush2.msra.mxu0 0.0
        %5511 = vmatprep.subr.mxu0 0.0
        %5512 = vmatpush2.msra.mxu0 0.0
        %5513 = vmatprep.subr.mxu0 0.0
        %5514 = vmatpush2.msra.mxu0 0.0
        %5515 = vmatprep.subr.mxu0 0.0
        %5516 = vmatpush2.msra.mxu0 0.0
        %5517 = vmatprep.subr.mxu0 0.0
        %5518 = vmatpush2.msra.mxu0 0.0
        %5519 = vmatprep.subr.mxu0 0.0
        %5520 = vmatpush2.msra.mxu0 0.0
        %5521 = vmatprep.subr.mxu0 0.0
        %5522 = vmatpush2.msra.mxu0 0.0
        %5523 = vmatprep.subr.mxu0 0.0
        %5524 = vmatpush2.msra.mxu0 0.0
        %5525 = vmatprep.subr.mxu0 0.0
        %5526 = vmatpush2.msra.mxu0 0.0
        %5527 = vmatprep.subr.mxu0 0.0
        %5528 = vmatpush2.msra.mxu0 0.0
        %5529 = vmatprep.subr.mxu0 0.0
        %5530 = vmatpush2.msra.mxu0 0.0
        %5531 = vmatprep.subr.mxu0 0.0
        %5532 = vmatpush2.msra.mxu0 0.0
        %5533 = vmatprep.subr.mxu0 0.0
        %5534 = vmatpush2.msra.mxu0 0.0
        %5535 = vmatprep.subr.mxu0 0.0
        %5536 = vmatpush2.msra.mxu0 0.0
        %5537 = vmatprep.mubr.f32.mxu0 0.0
        %5538 = vmatmul.mubr.f32.gmra.mxu0 %v5449
        %v5539 = vpop.f32.mrf.mxu0
        %v5540 = vadd.f32 %v5471, %v5539
        %v5541 = vpop.f32.mrf.mxu0
        %5542 = vdwg.mxu0
        %5543 = vst [vmem:[%s276] sm:$0xff] %v5540
        %p5544 = scmp.lt.s32.totalorder %s19, 1
        %s5545 = scalar_select %p5544, %s19, 1
        %s5546 = smul.addr %s5545, 8
        %s5547 = scalar_lea.vmem %s6, %s5546
        // Predicated region
        $region53: #{attention_module.1} parent=43 // pred_check
          %p5548 = pneg %p168
        $region54: #{attention_module.1} parent=43 // pred_check_branch
          %5550 = sbr.rel (%p5548) target = $region56
        $region55: #{attention_module.1} parent=43 // pred_region
          _
        $region56: #{attention_module.1} parent=43 // pred_fallthru
          _
      $region44: #{attention_module.1} parent=5 // pred_fallthru
        _
      %p5551 = scmp.le.s32.totalorder 2, %s14
      // Predicated region
      $region57: #{attention_module.1} parent=5 // pred_check
        %p5552 = pneg %p5551
      $region58: #{attention_module.1} parent=5 // pred_check_branch
        %5554 = sbr.rel (%p5552) target = $region60
      $region59: #{attention_module.1} parent=5 // pred_region
        %s5555 = ssub.s32 %s14, 2
        // Predicated region
        $region61: #{attention_module.1} parent=59 // pred_check
          %p5556 = pneg %p174
        $region62: #{attention_module.1} parent=59 // pred_check_branch
          %5558 = sbr.rel (%p5556) target = $region64
        $region63: #{attention_module.1} parent=59 // pred_region
          %p5559 = scmp.lt.s32.totalorder %s20, 1
          %s5560 = scalar_select %p5559, %s20, 1
          %s5561 = smul.addr %s5560, 8
          %s5562 = scalar_lea.vmem %s6, %s5561
        $region64: #{attention_module.1} parent=59 // pred_fallthru
          _
      $region60: #{attention_module.1} parent=5 // pred_fallthru
        _
    $region6: #{attention_module.1} parent=1 // loop_footer
      %s18 = sadd.s32 1, %s14
    $region7: #{attention_module.1} parent=1 // loop_footer_branch
      %13 = sbr.rel target = $region3
    $region8: #{attention_module.1} parent=1 // loop_exit
      _
    %5563 = vsyncpa [#allocation3], 1
    %s5564 = scalar_lea.sflag [#allocation3], 1
    %5565 = vsyncpa %s5564, 1
    %5566 = vsyncpa [#allocation5], 1

</llo_original>
